<compile_context>
chip_gen: v6e
topology: v6e:2x2x1
jax: 0.10.0
libtpu: 0.0.40
codegen_flags: <defaults>
</compile_context>

<pallas_src>
import functools
import math

import jax
import jax.numpy as jnp
from jax.experimental import pallas as pl
from jax.experimental.pallas import tpu as pltpu


def _round_up(x, m):
    return (x + m - 1) // m * m


def _tpu_generation():
    """Best-effort TPU generation probe used to pick tile sizes / VMEM budget."""
    try:
        kind = jax.devices()[0].device_kind.lower()
    except Exception:
        return "unknown"
    if "v7" in kind:
        return "v7"
    if "v6" in kind or "trillium" in kind:
        return "v6"
    if "v5" in kind:
        return "v5"
    return "unknown"


def rag_tile_config(H, K, V):
    """Generation-dependent tiles, padded dims and VMEM limit."""
    assert K >= 1, "knowledge bank must have at least one entry (softmax mask)"
    gen = _tpu_generation()
    if gen in ("v5", "v6"):
        tm, tv_pref, vmem, even_core_blocks = 256, 1024, 96 * 1024 * 1024, False
    elif gen == "v7":
        tm, tv_pref, vmem, even_core_blocks = 128, 512, 48 * 1024 * 1024, True
    else:
        tm, tv_pref, vmem, even_core_blocks = 128, 512, 48 * 1024 * 1024, False

    TV = tv_pref if V >= tv_pref else _round_up(V, 128)
    return dict(
        H=H, K=K, V=V,
        TM=tm, TV=TV,
        Hp=_round_up(H, 128), Kp=_round_up(K, 128), Vp=_round_up(V, TV),
        vmem_limit=vmem, even_core_blocks=even_core_blocks,
    )


def prepare_static_weights(params, cfg):
    """Pad + cast static weights once, outside the per-step forward."""
    H, K, V = cfg["H"], cfg["K"], cfg["V"]
    Hp, Kp, Vp = cfg["Hp"], cfg["Kp"], cfg["Vp"]
    # sparse_training: mask the knowledge bank (mask initialized to ones).
    kb = params["knowledge_bank"] * params["sparse_mask"]
    return {
        "kb": jnp.pad(kb, ((0, Kp - K), (0, Hp - H))).astype(jnp.bfloat16),
        "wg1": jnp.pad(params["wg1"], ((0, Hp - H), (0, Hp - H))).astype(jnp.bfloat16),
        "wg2": jnp.pad(params["wg2"], ((0, Hp - H), (0, Hp - H))).astype(jnp.bfloat16),
        "bg": jnp.pad(params["bg"], ((0, 0), (0, Hp - H))),
        "wlm": jnp.pad(params["wlm"], ((0, Hp - H), (0, Vp - V))).astype(jnp.bfloat16),
        "blm": jnp.pad(params["blm"], ((0, 0), (0, Vp - V))),
    }


def rag_lm_kernel(h_ref, kb_ref, wg1_ref, wg2_ref, bg_ref, wlm_ref, blm_ref,
                  logits_ref, enh_ref, scores_ref, *, k_valid, inv_sqrt_h):
    j = pl.program_id(1)

    @pl.when(j == 0)
    def _():
        h = h_ref[...]                                    # (TM, Hp) f32
        h_bf = h.astype(jnp.bfloat16)
        kb = kb_ref[...]                                  # (Kp, Hp) bf16

        # retrieval scores (TM, Kp): contract last dims, no in-kernel kb.T.
        s = jax.lax.dot_general(
            h_bf, kb, (((1,), (1,)), ((), ())),
            preferred_element_type=jnp.float32) * inv_sqrt_h
        # mask padded knowledge entries out of the softmax.
        col = jax.lax.broadcasted_iota(jnp.int32, s.shape, 1)
        s = jnp.where(col < k_valid, s, -1e30)

        # softmax over knowledge entries (f32 path).  reciprocal(approx=True)
        # uses the EUP slot; the wrapper recomputes exact knowledge_weights.
        m = jnp.max(s, axis=-1, keepdims=True)
        e = jnp.exp(s - m)
        w = e * pl.reciprocal(jnp.sum(e, axis=-1, keepdims=True), approx=True)

        # retrieved knowledge (TM, Hp).
        r = jnp.dot(w.astype(jnp.bfloat16), kb,
                    preferred_element_type=jnp.float32)

        # gated fusion of base hidden states and retrieved knowledge (f32).
        # TODO(synk): for Hp >= 2048 on v7x, stream wg1/wg2 in Hp-chunks
        # (K-reduction via pltpu.emit_pipeline) instead of holding both
        # (Hp, Hp) weights resident in VMEM.
        g = jax.nn.sigmoid(
            jnp.dot(h_bf, wg1_ref[...], preferred_element_type=jnp.float32)
            + jnp.dot(r.astype(jnp.bfloat16), wg2_ref[...],
                      preferred_element_type=jnp.float32)
            + bg_ref[...])
        enh = g * h + (1.0 - g) * r

        scores_ref[...] = s
        # bf16 output block; index_map ignores j, so it stays resident in VMEM
        # and doubles as the lm_head LHS for every vocab tile of this row block.
        enh_ref[...] = enh.astype(jnp.bfloat16)

    # lm_head vocab tile: runs for every (i, j).
    logits_ref[...] = jnp.dot(enh_ref[...], wlm_ref[...],
                              preferred_element_type=jnp.float32) + blm_ref[...]


def rag_pallas_call(cfg, Mp, *, single_buffer_invariants=True):
    TM, TV = cfg["TM"], cfg["TV"]
    Hp, Kp, Vp = cfg["Hp"], cfg["Kp"], cfg["Vp"]
    # Grid-invariant operands: constant index_map -> single buffer saves VMEM.
    inv_kw = ({"pipeline_mode": pl.Buffered(1)}
              if single_buffer_invariants else {})
    kernel = functools.partial(rag_lm_kernel, k_valid=cfg["K"],
                               inv_sqrt_h=1.0 / math.sqrt(cfg["H"]))
    return pl.pallas_call(
        kernel,
        out_shape=(
            jax.ShapeDtypeStruct((Mp, Vp), jnp.float32),    # logits
            jax.ShapeDtypeStruct((Mp, Hp), jnp.bfloat16),   # enhanced hidden (bf16 writeback)
            jax.ShapeDtypeStruct((Mp, Kp), jnp.float32),    # retrieval scores
        ),
        grid_spec=pltpu.PrefetchScalarGridSpec(
            num_scalar_prefetch=0,
            grid=(Mp // TM, Vp // TV),
            in_specs=[
                pl.BlockSpec((TM, Hp), lambda i, j: (i, 0)),            # hidden rows
                pl.BlockSpec((Kp, Hp), lambda i, j: (0, 0), **inv_kw),  # knowledge bank
                pl.BlockSpec((Hp, Hp), lambda i, j: (0, 0), **inv_kw),  # gate W (hidden)
                pl.BlockSpec((Hp, Hp), lambda i, j: (0, 0), **inv_kw),  # gate W (retrieved)
                pl.BlockSpec((1, Hp), lambda i, j: (0, 0), **inv_kw),   # gate bias
                pl.BlockSpec((Hp, TV), lambda i, j: (0, j)),            # lm_head W tile
                pl.BlockSpec((1, TV), lambda i, j: (0, j)),             # lm_head bias tile
            ],
            out_specs=(
                pl.BlockSpec((TM, TV), lambda i, j: (i, j)),   # logits
                pl.BlockSpec((TM, Hp), lambda i, j: (i, 0)),   # enhanced hidden (resident over j)
                pl.BlockSpec((TM, Kp), lambda i, j: (i, 0)),   # retrieval scores
            ),
        ),
        compiler_params=pltpu.CompilerParams(
            # M axis is independent (megacore-parallel on v7x); the vocab axis
            # carries the resident enh block from j==0, so it stays "arbitrary".
            dimension_semantics=("parallel", "arbitrary"),
            vmem_limit_bytes=cfg["vmem_limit"],
        ),
    )


def init_params(key, V, H, K):
    ks = jax.random.split(key, 8)
    scale = 0.02
    return {
        "embed": scale * jax.random.normal(ks[0], (V, H), jnp.float32),
        "w_base": scale * jax.random.normal(ks[1], (H, H), jnp.float32),
        "b_base": jnp.zeros((H,), jnp.float32),
        "knowledge_bank": scale * jax.random.normal(ks[2], (K, H), jnp.float32),
        "sparse_mask": jnp.ones((K, H), jnp.float32),   # sparse_training init: all ones
        "wg1": scale * jax.random.normal(ks[3], (H, H), jnp.float32),
        "wg2": scale * jax.random.normal(ks[4], (H, H), jnp.float32),
        "bg": jnp.zeros((1, H), jnp.float32),
        "wv": scale * jax.random.normal(ks[5], (1, H), jnp.float32),
        "bv": jnp.zeros((1, 1), jnp.float32),
        "wlm": scale * jax.random.normal(ks[6], (H, V), jnp.float32),
        "blm": jnp.zeros((1, V), jnp.float32),
    }


def enhanced_rag_forward(params, input_ids, labels=None, *, cfg=None, static=None):
    B, S = input_ids.shape
    V, H = params["embed"].shape
    K = params["knowledge_bank"].shape[0]

    if cfg is None:
        cfg = rag_tile_config(H, K, V)
    if static is None:
        # Pre-padded / pre-cast weights; callers on a hot path should build
        # this once and pass it in.
        static = prepare_static_weights(params, cfg)

    # --- base model (glue, plain JAX): embedding + projection -> hidden_states
    emb = jnp.take(params["embed"], input_ids, axis=0)            # (B, S, H)
    hidden = jnp.tanh(emb @ params["w_base"] + params["b_base"])  # (B, S, H)

    # --- pad activations to lane-dense multiples and fold batch into M = B*S
    M = B * S
    TM = cfg["TM"]
    Mp = _round_up(M, TM)
    if cfg["even_core_blocks"]:
        Mp = _round_up(Mp, 2 * TM)    # even parallel-axis split across v7x cores
    Hp, Kp = cfg["Hp"], cfg["Kp"]
    h2 = jnp.pad(hidden.reshape(M, H), ((0, Mp - M), (0, Hp - H)))

    args = (h2, static["kb"], static["wg1"], static["wg2"], static["bg"],
            static["wlm"], static["blm"])

    # --- fused RAG + lm_head Pallas kernel ---
    try:
        logits_p, enh_p, scores_p = rag_pallas_call(
            cfg, Mp, single_buffer_invariants=True)(*args)
    except Exception:
        # pipeline_mode=pl.Buffered(1) unsupported in this jax build; fall back
        # to default double-buffering (identical semantics, extra VMEM only).
        logits_p, enh_p, scores_p = rag_pallas_call(
            cfg, Mp, single_buffer_invariants=False)(*args)

    logits = logits_p[:M, :V].reshape(B, S, V)
    enh = enh_p[:M, :H].astype(jnp.float32).reshape(B, S, H)
    scores = scores_p[:M, :K].reshape(B, S, K)

    # --- cheap aux outputs recomputed in the wrapper (avoids in-kernel
    #     lane-width-1 / K<128 masked-store writebacks) ---
    kweights = jax.nn.softmax(scores, axis=-1)                       # (B, S, K)
    ver = jax.nn.sigmoid(
        jnp.einsum("bsh,h->bs", enh, params["wv"][0]) + params["bv"][0, 0])

    # --- shifted cross-entropy loss (glue) ---
    # TODO(synk): training-only variant could fuse an online logsumexp over the
    # vocab grid axis and skip materializing f32 logits to HBM entirely.
    loss = None
    if labels is not None:
        shift_logits = logits[:, :-1, :]
        shift_labels = labels[:, 1:]
        logp = jax.nn.log_softmax(shift_logits, axis=-1)
        nll = -jnp.take_along_axis(logp, shift_labels[..., None], axis=-1)[..., 0]
        loss = jnp.mean(nll)

    # TODO(synk): LRU knowledge cache, periodic sparse-mask update and
    # speculative generation are host-side control flow with no Pallas
    # equivalent; omitted.
    return {
        "loss": loss,
        "logits": logits,
        "hidden_states": enh,
        "retrieval_scores": scores,
        "knowledge_weights": kweights,
        "uncertainties": None,
        "verification_scores": ver,
    }


if __name__ == "__main__":
    B, S, H, K, V = 2, 8, 32, 16, 64
    key = jax.random.PRNGKey(0)
    pkey, ikey, lkey = jax.random.split(key, 3)

    params = init_params(pkey, V, H, K)
    input_ids = jax.random.randint(ikey, (B, S), 0, V, dtype=jnp.int32)
    labels = jax.random.randint(lkey, (B, S), 0, V, dtype=jnp.int32)

    # Static weights padded / cast once, outside the per-step forward.
    cfg = rag_tile_config(H, K, V)
    static = prepare_static_weights(params, cfg)

    outputs = enhanced_rag_forward(params, input_ids, labels, cfg=cfg, static=static)
    jax.block_until_ready(outputs)

    assert outputs["logits"].shape == (B, S, V)
    assert outputs["hidden_states"].shape == (B, S, H)
    assert outputs["retrieval_scores"].shape == (B, S, K)
    assert outputs["knowledge_weights"].shape == (B, S, K)
    assert outputs["verification_scores"].shape == (B, S)
    assert outputs["loss"].shape == ()
    print("KERNEL_OK")
</pallas_src>

<mosaic_0001>
module attributes {stable_mosaic.version = 11 : i64} {
  func.func @rag_lm_kernel(%arg0: i32, %arg1: i32, %arg2: memref<128x128xf32, #tpu.memory_space<vmem>>, %arg3: memref<128x128xbf16, #tpu.memory_space<vmem>>, %arg4: memref<128x128xbf16, #tpu.memory_space<vmem>>, %arg5: memref<128x128xbf16, #tpu.memory_space<vmem>>, %arg6: memref<1x128xf32, #tpu.memory_space<vmem>>, %arg7: memref<128x128xbf16, #tpu.memory_space<vmem>>, %arg8: memref<1x128xf32, #tpu.memory_space<vmem>>, %arg9: memref<128x128xf32, #tpu.memory_space<vmem>>, %arg10: memref<128x128xbf16, #tpu.memory_space<vmem>>, %arg11: memref<128x128xf32, #tpu.memory_space<vmem>>) attributes {dimension_semantics = [#tpu.dimension_semantics<parallel>, #tpu.dimension_semantics<arbitrary>], iteration_bounds = array<i64: 1, 1>, scalar_prefetch = 0 : i64, scratch_operands = 0 : i64, tpu.core_type = #tpu.core_type<tc>, window_params = [{transform_indices = @transform_0, window_bounds = array<i64: 128, 128>}, {pipeline_mode = #tpu.pipeline_mode<synchronous>, transform_indices = @transform_1, window_bounds = array<i64: 128, 128>}, {pipeline_mode = #tpu.pipeline_mode<synchronous>, transform_indices = @transform_2, window_bounds = array<i64: 128, 128>}, {pipeline_mode = #tpu.pipeline_mode<synchronous>, transform_indices = @transform_3, window_bounds = array<i64: 128, 128>}, {pipeline_mode = #tpu.pipeline_mode<synchronous>, transform_indices = @transform_4, window_bounds = array<i64: 1, 128>}, {transform_indices = @transform_5, window_bounds = array<i64: 128, 128>}, {transform_indices = @transform_6, window_bounds = array<i64: 1, 128>}, {transform_indices = @transform_7, window_bounds = array<i64: 128, 128>}, {transform_indices = @transform_8, window_bounds = array<i64: 128, 128>}, {transform_indices = @transform_9, window_bounds = array<i64: 128, 128>}]} {
    %c0_i32 = arith.constant 0 : i32
    %0 = arith.cmpi eq, %arg1, %c0_i32 : i32
    %1 = arith.extui %0 : i1 to i32
    %c0_i32_0 = arith.constant 0 : i32
    %2 = arith.cmpi ne, %1, %c0_i32_0 : i32
    scf.if %2 {
      %c0_8 = arith.constant 0 : index
      %c0_9 = arith.constant 0 : index
      %10 = vector.load %arg2[%c0_8, %c0_9] : memref<128x128xf32, #tpu.memory_space<vmem>>, vector<128x128xf32>
      %11 = arith.truncf %10 : vector<128x128xf32> to vector<128x128xbf16>
      %c0_10 = arith.constant 0 : index
      %c0_11 = arith.constant 0 : index
      %12 = vector.load %arg3[%c0_10, %c0_11] : memref<128x128xbf16, #tpu.memory_space<vmem>>, vector<128x128xbf16>
      %cst_12 = arith.constant dense<0.000000e+00> : vector<128x128xf32>
      %13 = tpu.matmul %11, %12, %cst_12 {dimension_numbers = #tpu.dot_dimension_numbers<[1], [1], [0], [0], [0, 0, 1, 0], [], []>} : vector<128x128xbf16>, vector<128x128xbf16>, vector<128x128xf32> -> vector<128x128xf32>
      %cst_13 = arith.constant 0.176776692 : f32
      %14 = vector.broadcast %cst_13 : f32 to vector<128x128xf32>
      %15 = arith.mulf %13, %14 : vector<128x128xf32>
      %16 = tpu.iota {dimensions = array<i32: 1>} : vector<128x128xi32>
      %c16_i32 = arith.constant 16 : i32
      %17 = vector.broadcast %c16_i32 : i32 to vector<128x128xi32>
      %18 = arith.cmpi slt, %16, %17 : vector<128x128xi32>
      %cst_14 = arith.constant -1.000000e+30 : f32
      %19 = vector.broadcast %cst_14 : f32 to vector<128x128xf32>
      %20 = arith.select %18, %15, %19 : vector<128x128xi1>, vector<128x128xf32>
      %cst_15 = arith.constant dense<0xFF800000> : vector<128xf32>
      %21 = vector.multi_reduction <maximumf>, %20, %cst_15 [1] : vector<128x128xf32> to vector<128xf32>
      %22 = vector.shape_cast %21 : vector<128xf32> to vector<128x1xf32>
      %23 = vector.broadcast %22 : vector<128x1xf32> to vector<128x128xf32>
      %24 = arith.subf %20, %23 : vector<128x128xf32>
      %25 = math.exp %24 : vector<128x128xf32>
      %cst_16 = arith.constant dense<0.000000e+00> : vector<128xf32>
      %26 = vector.multi_reduction <add>, %25, %cst_16 [1] : vector<128x128xf32> to vector<128xf32>
      %27 = vector.shape_cast %26 : vector<128xf32> to vector<128x1xf32>
      %28 = tpu.reciprocal %27 {approx = true} : vector<128x1xf32> -> vector<128x1xf32>
      %29 = vector.broadcast %28 : vector<128x1xf32> to vector<128x128xf32>
      %30 = arith.mulf %25, %29 : vector<128x128xf32>
      %31 = arith.truncf %30 : vector<128x128xf32> to vector<128x128xbf16>
      %cst_17 = arith.constant dense<0.000000e+00> : vector<128x128xf32>
      %32 = tpu.matmul %31, %12, %cst_17 {dimension_numbers = #tpu.dot_dimension_numbers<[1], [0], [0], [1], [0, 0, 1, 1], [], []>} : vector<128x128xbf16>, vector<128x128xbf16>, vector<128x128xf32> -> vector<128x128xf32>
      %c0_18 = arith.constant 0 : index
      %c0_19 = arith.constant 0 : index
      %33 = vector.load %arg4[%c0_18, %c0_19] : memref<128x128xbf16, #tpu.memory_space<vmem>>, vector<128x128xbf16>
      %cst_20 = arith.constant dense<0.000000e+00> : vector<128x128xf32>
      %34 = tpu.matmul %11, %33, %cst_20 {dimension_numbers = #tpu.dot_dimension_numbers<[1], [0], [0], [1], [0, 0, 1, 1], [], []>} : vector<128x128xbf16>, vector<128x128xbf16>, vector<128x128xf32> -> vector<128x128xf32>
      %35 = arith.truncf %32 : vector<128x128xf32> to vector<128x128xbf16>
      %c0_21 = arith.constant 0 : index
      %c0_22 = arith.constant 0 : index
      %36 = vector.load %arg5[%c0_21, %c0_22] : memref<128x128xbf16, #tpu.memory_space<vmem>>, vector<128x128xbf16>
      %cst_23 = arith.constant dense<0.000000e+00> : vector<128x128xf32>
      %37 = tpu.matmul %35, %36, %cst_23 {dimension_numbers = #tpu.dot_dimension_numbers<[1], [0], [0], [1], [0, 0, 1, 1], [], []>} : vector<128x128xbf16>, vector<128x128xbf16>, vector<128x128xf32> -> vector<128x128xf32>
      %38 = arith.addf %34, %37 : vector<128x128xf32>
      %c0_24 = arith.constant 0 : index
      %c0_25 = arith.constant 0 : index
      %39 = vector.load %arg6[%c0_24, %c0_25] : memref<1x128xf32, #tpu.memory_space<vmem>>, vector<1x128xf32>
      %40 = vector.broadcast %39 : vector<1x128xf32> to vector<128x128xf32>
      %41 = arith.addf %38, %40 : vector<128x128xf32>
      %42 = arith.negf %41 : vector<128x128xf32>
      %43 = math.exp %42 : vector<128x128xf32>
      %cst_26 = arith.constant 1.000000e+00 : f32
      %44 = vector.broadcast %cst_26 : f32 to vector<128x128xf32>
      %45 = arith.addf %44, %43 : vector<128x128xf32>
      %46 = arith.divf %44, %45 : vector<128x128xf32>
      %47 = arith.mulf %46, %10 : vector<128x128xf32>
      %cst_27 = arith.constant 1.000000e+00 : f32
      %48 = vector.broadcast %cst_27 : f32 to vector<128x128xf32>
      %49 = arith.subf %48, %46 : vector<128x128xf32>
      %50 = arith.mulf %49, %32 : vector<128x128xf32>
      %51 = arith.addf %47, %50 : vector<128x128xf32>
      %c0_28 = arith.constant 0 : index
      %c0_29 = arith.constant 0 : index
      %52 = vector.load %arg11[%c0_28, %c0_29] : memref<128x128xf32, #tpu.memory_space<vmem>>, vector<128x128xf32>
      tpu.vector_store %arg11[%c0_28, %c0_29], %20 {strides = array<i32>} : memref<128x128xf32, #tpu.memory_space<vmem>>, vector<128x128xf32>,
      %53 = arith.truncf %51 : vector<128x128xf32> to vector<128x128xbf16>
      %c0_30 = arith.constant 0 : index
      %c0_31 = arith.constant 0 : index
      %54 = vector.load %arg10[%c0_30, %c0_31] : memref<128x128xbf16, #tpu.memory_space<vmem>>, vector<128x128xbf16>
      tpu.vector_store %arg10[%c0_30, %c0_31], %53 {strides = array<i32>} : memref<128x128xbf16, #tpu.memory_space<vmem>>, vector<128x128xbf16>,
    } else {
    }
    %c0 = arith.constant 0 : index
    %c0_1 = arith.constant 0 : index
    %3 = vector.load %arg10[%c0, %c0_1] : memref<128x128xbf16, #tpu.memory_space<vmem>>, vector<128x128xbf16>
    %c0_2 = arith.constant 0 : index
    %c0_3 = arith.constant 0 : index
    %4 = vector.load %arg7[%c0_2, %c0_3] : memref<128x128xbf16, #tpu.memory_space<vmem>>, vector<128x128xbf16>
    %cst = arith.constant dense<0.000000e+00> : vector<128x128xf32>
    %5 = tpu.matmul %3, %4, %cst {dimension_numbers = #tpu.dot_dimension_numbers<[1], [0], [0], [1], [0, 0, 1, 1], [], []>} : vector<128x128xbf16>, vector<128x128xbf16>, vector<128x128xf32> -> vector<128x128xf32>
    %c0_4 = arith.constant 0 : index
    %c0_5 = arith.constant 0 : index
    %6 = vector.load %arg8[%c0_4, %c0_5] : memref<1x128xf32, #tpu.memory_space<vmem>>, vector<1x128xf32>
    %7 = vector.broadcast %6 : vector<1x128xf32> to vector<128x128xf32>
    %8 = arith.addf %5, %7 : vector<128x128xf32>
    %c0_6 = arith.constant 0 : index
    %c0_7 = arith.constant 0 : index
    %9 = vector.load %arg9[%c0_6, %c0_7] : memref<128x128xf32, #tpu.memory_space<vmem>>, vector<128x128xf32>
    tpu.vector_store %arg9[%c0_6, %c0_7], %8 {strides = array<i32>} : memref<128x128xf32, #tpu.memory_space<vmem>>, vector<128x128xf32>,
    return
  }
  func.func @transform_0(%arg0: i32, %arg1: i32) -> (i32, i32) {
    %c0_i32 = arith.constant 0 : i32
    %c0_i32_0 = arith.constant 0 : i32
    return %arg0, %c0_i32 : i32, i32
  }
  func.func @transform_1(%arg0: i32, %arg1: i32) -> (i32, i32) {
    %c0_i32 = arith.constant 0 : i32
    %c0_i32_0 = arith.constant 0 : i32
    %c0_i32_1 = arith.constant 0 : i32
    return %c0_i32, %c0_i32_0 : i32, i32
  }
  func.func @transform_2(%arg0: i32, %arg1: i32) -> (i32, i32) {
    %c0_i32 = arith.constant 0 : i32
    %c0_i32_0 = arith.constant 0 : i32
    %c0_i32_1 = arith.constant 0 : i32
    return %c0_i32, %c0_i32_0 : i32, i32
  }
  func.func @transform_3(%arg0: i32, %arg1: i32) -> (i32, i32) {
    %c0_i32 = arith.constant 0 : i32
    %c0_i32_0 = arith.constant 0 : i32
    %c0_i32_1 = arith.constant 0 : i32
    return %c0_i32, %c0_i32_0 : i32, i32
  }
  func.func @transform_4(%arg0: i32, %arg1: i32) -> (i32, i32) {
    %c0_i32 = arith.constant 0 : i32
    %c0_i32_0 = arith.constant 0 : i32
    %c0_i32_1 = arith.constant 0 : i32
    return %c0_i32, %c0_i32_0 : i32, i32
  }
  func.func @transform_5(%arg0: i32, %arg1: i32) -> (i32, i32) {
    %c0_i32 = arith.constant 0 : i32
    %c0_i32_0 = arith.constant 0 : i32
    return %c0_i32, %arg1 : i32, i32
  }
  func.func @transform_6(%arg0: i32, %arg1: i32) -> (i32, i32) {
    %c0_i32 = arith.constant 0 : i32
    %c0_i32_0 = arith.constant 0 : i32
    return %c0_i32, %arg1 : i32, i32
  }
  func.func @transform_7(%arg0: i32, %arg1: i32) -> (i32, i32) {
    %c0_i32 = arith.constant 0 : i32
    return %arg0, %arg1 : i32, i32
  }
  func.func @transform_8(%arg0: i32, %arg1: i32) -> (i32, i32) {
    %c0_i32 = arith.constant 0 : i32
    %c0_i32_0 = arith.constant 0 : i32
    return %arg0, %c0_i32 : i32, i32
  }
  func.func @transform_9(%arg0: i32, %arg1: i32) -> (i32, i32) {
    %c0_i32 = arith.constant 0 : i32
    %c0_i32_0 = arith.constant 0 : i32
    return %arg0, %c0_i32 : i32, i32
  }
}

module attributes {stable_mosaic.version = 11 : i64} {
  func.func @rag_lm_kernel(%arg0: i32, %arg1: i32, %arg2: memref<128x128xf32, #tpu.memory_space<vmem>>, %arg3: memref<128x128xbf16, #tpu.memory_space<vmem>>, %arg4: memref<128x128xbf16, #tpu.memory_space<vmem>>, %arg5: memref<128x128xbf16, #tpu.memory_space<vmem>>, %arg6: memref<1x128xf32, #tpu.memory_space<vmem>>, %arg7: memref<128x128xbf16, #tpu.memory_space<vmem>>, %arg8: memref<1x128xf32, #tpu.memory_space<vmem>>, %arg9: memref<128x128xf32, #tpu.memory_space<vmem>>, %arg10: memref<128x128xbf16, #tpu.memory_space<vmem>>, %arg11: memref<128x128xf32, #tpu.memory_space<vmem>>) attributes {dimension_semantics = [#tpu.dimension_semantics<parallel>, #tpu.dimension_semantics<arbitrary>], iteration_bounds = array<i64: 1, 1>, scalar_prefetch = 0 : i64, scratch_operands = 0 : i64, tpu.core_type = #tpu.core_type<tc>, window_params = [{transform_indices = @transform_0, window_bounds = array<i64: 128, 128>}, {pipeline_mode = #tpu.pipeline_mode<synchronous>, transform_indices = @transform_1, window_bounds = array<i64: 128, 128>}, {pipeline_mode = #tpu.pipeline_mode<synchronous>, transform_indices = @transform_2, window_bounds = array<i64: 128, 128>}, {pipeline_mode = #tpu.pipeline_mode<synchronous>, transform_indices = @transform_3, window_bounds = array<i64: 128, 128>}, {pipeline_mode = #tpu.pipeline_mode<synchronous>, transform_indices = @transform_4, window_bounds = array<i64: 1, 128>}, {transform_indices = @transform_5, window_bounds = array<i64: 128, 128>}, {transform_indices = @transform_6, window_bounds = array<i64: 1, 128>}, {transform_indices = @transform_7, window_bounds = array<i64: 128, 128>}, {transform_indices = @transform_8, window_bounds = array<i64: 128, 128>}, {transform_indices = @transform_9, window_bounds = array<i64: 128, 128>}]} {
    %c0_i32 = arith.constant 0 : i32
    %0 = arith.cmpi eq, %arg1, %c0_i32 : i32
    %1 = arith.extui %0 : i1 to i32
    %c0_i32_0 = arith.constant 0 : i32
    %2 = arith.cmpi ne, %1, %c0_i32_0 : i32
    scf.if %2 {
      %c0_8 = arith.constant 0 : index
      %c0_9 = arith.constant 0 : index
      %10 = vector.load %arg2[%c0_8, %c0_9] : memref<128x128xf32, #tpu.memory_space<vmem>>, vector<128x128xf32>
      %11 = arith.truncf %10 : vector<128x128xf32> to vector<128x128xbf16>
      %c0_10 = arith.constant 0 : index
      %c0_11 = arith.constant 0 : index
      %12 = vector.load %arg3[%c0_10, %c0_11] : memref<128x128xbf16, #tpu.memory_space<vmem>>, vector<128x128xbf16>
      %cst_12 = arith.constant dense<0.000000e+00> : vector<128x128xf32>
      %13 = tpu.matmul %11, %12, %cst_12 {dimension_numbers = #tpu.dot_dimension_numbers<[1], [1], [0], [0], [0, 0, 1, 0], [], []>} : vector<128x128xbf16>, vector<128x128xbf16>, vector<128x128xf32> -> vector<128x128xf32>
      %cst_13 = arith.constant 0.176776692 : f32
      %14 = vector.broadcast %cst_13 : f32 to vector<128x128xf32>
      %15 = arith.mulf %13, %14 : vector<128x128xf32>
      %16 = tpu.iota {dimensions = array<i32: 1>} : vector<128x128xi32>
      %c16_i32 = arith.constant 16 : i32
      %17 = vector.broadcast %c16_i32 : i32 to vector<128x128xi32>
      %18 = arith.cmpi slt, %16, %17 : vector<128x128xi32>
      %cst_14 = arith.constant -1.000000e+30 : f32
      %19 = vector.broadcast %cst_14 : f32 to vector<128x128xf32>
      %20 = arith.select %18, %15, %19 : vector<128x128xi1>, vector<128x128xf32>
      %cst_15 = arith.constant dense<0xFF800000> : vector<128xf32>
      %21 = vector.multi_reduction <maximumf>, %20, %cst_15 [1] : vector<128x128xf32> to vector<128xf32>
      %22 = vector.shape_cast %21 : vector<128xf32> to vector<128x1xf32>
      %23 = vector.broadcast %22 : vector<128x1xf32> to vector<128x128xf32>
      %24 = arith.subf %20, %23 : vector<128x128xf32>
      %25 = math.exp %24 : vector<128x128xf32>
      %cst_16 = arith.constant dense<0.000000e+00> : vector<128xf32>
      %26 = vector.multi_reduction <add>, %25, %cst_16 [1] : vector<128x128xf32> to vector<128xf32>
      %27 = vector.shape_cast %26 : vector<128xf32> to vector<128x1xf32>
      %28 = tpu.reciprocal %27 {approx = true} : vector<128x1xf32> -> vector<128x1xf32>
      %29 = vector.broadcast %28 : vector<128x1xf32> to vector<128x128xf32>
      %30 = arith.mulf %25, %29 : vector<128x128xf32>
      %31 = arith.truncf %30 : vector<128x128xf32> to vector<128x128xbf16>
      %cst_17 = arith.constant dense<0.000000e+00> : vector<128x128xf32>
      %32 = tpu.matmul %31, %12, %cst_17 {dimension_numbers = #tpu.dot_dimension_numbers<[1], [0], [0], [1], [0, 0, 1, 1], [], []>} : vector<128x128xbf16>, vector<128x128xbf16>, vector<128x128xf32> -> vector<128x128xf32>
      %c0_18 = arith.constant 0 : index
      %c0_19 = arith.constant 0 : index
      %33 = vector.load %arg4[%c0_18, %c0_19] : memref<128x128xbf16, #tpu.memory_space<vmem>>, vector<128x128xbf16>
      %cst_20 = arith.constant dense<0.000000e+00> : vector<128x128xf32>
      %34 = tpu.matmul %11, %33, %cst_20 {dimension_numbers = #tpu.dot_dimension_numbers<[1], [0], [0], [1], [0, 0, 1, 1], [], []>} : vector<128x128xbf16>, vector<128x128xbf16>, vector<128x128xf32> -> vector<128x128xf32>
      %35 = arith.truncf %32 : vector<128x128xf32> to vector<128x128xbf16>
      %c0_21 = arith.constant 0 : index
      %c0_22 = arith.constant 0 : index
      %36 = vector.load %arg5[%c0_21, %c0_22] : memref<128x128xbf16, #tpu.memory_space<vmem>>, vector<128x128xbf16>
      %cst_23 = arith.constant dense<0.000000e+00> : vector<128x128xf32>
      %37 = tpu.matmul %35, %36, %cst_23 {dimension_numbers = #tpu.dot_dimension_numbers<[1], [0], [0], [1], [0, 0, 1, 1], [], []>} : vector<128x128xbf16>, vector<128x128xbf16>, vector<128x128xf32> -> vector<128x128xf32>
      %38 = arith.addf %34, %37 : vector<128x128xf32>
      %c0_24 = arith.constant 0 : index
      %c0_25 = arith.constant 0 : index
      %39 = vector.load %arg6[%c0_24, %c0_25] : memref<1x128xf32, #tpu.memory_space<vmem>>, vector<1x128xf32>
      %40 = vector.broadcast %39 : vector<1x128xf32> to vector<128x128xf32>
      %41 = arith.addf %38, %40 : vector<128x128xf32>
      %42 = arith.negf %41 : vector<128x128xf32>
      %43 = math.exp %42 : vector<128x128xf32>
      %cst_26 = arith.constant 1.000000e+00 : f32
      %44 = vector.broadcast %cst_26 : f32 to vector<128x128xf32>
      %45 = arith.addf %44, %43 : vector<128x128xf32>
      %46 = arith.divf %44, %45 : vector<128x128xf32>
      %47 = arith.mulf %46, %10 : vector<128x128xf32>
      %cst_27 = arith.constant 1.000000e+00 : f32
      %48 = vector.broadcast %cst_27 : f32 to vector<128x128xf32>
      %49 = arith.subf %48, %46 : vector<128x128xf32>
      %50 = arith.mulf %49, %32 : vector<128x128xf32>
      %51 = arith.addf %47, %50 : vector<128x128xf32>
      %c0_28 = arith.constant 0 : index
      %c0_29 = arith.constant 0 : index
      %52 = vector.load %arg11[%c0_28, %c0_29] : memref<128x128xf32, #tpu.memory_space<vmem>>, vector<128x128xf32>
      tpu.vector_store %arg11[%c0_28, %c0_29], %20 {strides = array<i32>} : memref<128x128xf32, #tpu.memory_space<vmem>>, vector<128x128xf32>,
      %53 = arith.truncf %51 : vector<128x128xf32> to vector<128x128xbf16>
      %c0_30 = arith.constant 0 : index
      %c0_31 = arith.constant 0 : index
      %54 = vector.load %arg10[%c0_30, %c0_31] : memref<128x128xbf16, #tpu.memory_space<vmem>>, vector<128x128xbf16>
      tpu.vector_store %arg10[%c0_30, %c0_31], %53 {strides = array<i32>} : memref<128x128xbf16, #tpu.memory_space<vmem>>, vector<128x128xbf16>,
    } else {
    }
    %c0 = arith.constant 0 : index
    %c0_1 = arith.constant 0 : index
    %3 = vector.load %arg10[%c0, %c0_1] : memref<128x128xbf16, #tpu.memory_space<vmem>>, vector<128x128xbf16>
    %c0_2 = arith.constant 0 : index
    %c0_3 = arith.constant 0 : index
    %4 = vector.load %arg7[%c0_2, %c0_3] : memref<128x128xbf16, #tpu.memory_space<vmem>>, vector<128x128xbf16>
    %cst = arith.constant dense<0.000000e+00> : vector<128x128xf32>
    %5 = tpu.matmul %3, %4, %cst {dimension_numbers = #tpu.dot_dimension_numbers<[1], [0], [0], [1], [0, 0, 1, 1], [], []>} : vector<128x128xbf16>, vector<128x128xbf16>, vector<128x128xf32> -> vector<128x128xf32>
    %c0_4 = arith.constant 0 : index
    %c0_5 = arith.constant 0 : index
    %6 = vector.load %arg8[%c0_4, %c0_5] : memref<1x128xf32, #tpu.memory_space<vmem>>, vector<1x128xf32>
    %7 = vector.broadcast %6 : vector<1x128xf32> to vector<128x128xf32>
    %8 = arith.addf %5, %7 : vector<128x128xf32>
    %c0_6 = arith.constant 0 : index
    %c0_7 = arith.constant 0 : index
    %9 = vector.load %arg9[%c0_6, %c0_7] : memref<128x128xf32, #tpu.memory_space<vmem>>, vector<128x128xf32>
    tpu.vector_store %arg9[%c0_6, %c0_7], %8 {strides = array<i32>} : memref<128x128xf32, #tpu.memory_space<vmem>>, vector<128x128xf32>,
    return
  }
  func.func @transform_0(%arg0: i32, %arg1: i32) -> (i32, i32) {
    %c0_i32 = arith.constant 0 : i32
    %c0_i32_0 = arith.constant 0 : i32
    return %arg0, %c0_i32 : i32, i32
  }
  func.func @transform_1(%arg0: i32, %arg1: i32) -> (i32, i32) {
    %c0_i32 = arith.constant 0 : i32
    %c0_i32_0 = arith.constant 0 : i32
    %c0_i32_1 = arith.constant 0 : i32
    return %c0_i32, %c0_i32_0 : i32, i32
  }
  func.func @transform_2(%arg0: i32, %arg1: i32) -> (i32, i32) {
    %c0_i32 = arith.constant 0 : i32
    %c0_i32_0 = arith.constant 0 : i32
    %c0_i32_1 = arith.constant 0 : i32
    return %c0_i32, %c0_i32_0 : i32, i32
  }
  func.func @transform_3(%arg0: i32, %arg1: i32) -> (i32, i32) {
    %c0_i32 = arith.constant 0 : i32
    %c0_i32_0 = arith.constant 0 : i32
    %c0_i32_1 = arith.constant 0 : i32
    return %c0_i32, %c0_i32_0 : i32, i32
  }
  func.func @transform_4(%arg0: i32, %arg1: i32) -> (i32, i32) {
    %c0_i32 = arith.constant 0 : i32
    %c0_i32_0 = arith.constant 0 : i32
    %c0_i32_1 = arith.constant 0 : i32
    return %c0_i32, %c0_i32_0 : i32, i32
  }
  func.func @transform_5(%arg0: i32, %arg1: i32) -> (i32, i32) {
    %c0_i32 = arith.constant 0 : i32
    %c0_i32_0 = arith.constant 0 : i32
    return %c0_i32, %arg1 : i32, i32
  }
  func.func @transform_6(%arg0: i32, %arg1: i32) -> (i32, i32) {
    %c0_i32 = arith.constant 0 : i32
    %c0_i32_0 = arith.constant 0 : i32
    return %c0_i32, %arg1 : i32, i32
  }
  func.func @transform_7(%arg0: i32, %arg1: i32) -> (i32, i32) {
    %c0_i32 = arith.constant 0 : i32
    return %arg0, %arg1 : i32, i32
  }
  func.func @transform_8(%arg0: i32, %arg1: i32) -> (i32, i32) {
    %c0_i32 = arith.constant 0 : i32
    %c0_i32_0 = arith.constant 0 : i32
    return %arg0, %c0_i32 : i32, i32
  }
  func.func @transform_9(%arg0: i32, %arg1: i32) -> (i32, i32) {
    %c0_i32 = arith.constant 0 : i32
    %c0_i32_0 = arith.constant 0 : i32
    return %arg0, %c0_i32 : i32, i32
  }
}

</mosaic_0001>

<llo_original>
// kernel: tpu_custom_call.1
$region0: #{tpu_custom_call.1}
  #allocation0 [shape = 'u32[]', space=smem, size = 0x4, offset = 0x4, fixed_abs, tag = 'smem constant byte address 0x4 - core index']
  #allocation1 [shape = 'u32[144,128]{1,0:T(1,128)}', space=vmem, size = 0x12000, scoped, tag = 'internal scratch']
  %s0 = inlined_call_operand.hbm [shape: f32[128,128], index: 0, kind: input, shape index: {}]
  %s1 = inlined_call_operand.hbm [shape: bf16[128,128], index: 1, kind: input, shape index: {}]
  %s2 = inlined_call_operand.hbm [shape: bf16[128,128], index: 2, kind: input, shape index: {}]
  %s3 = inlined_call_operand.hbm [shape: bf16[128,128], index: 3, kind: input, shape index: {}]
  %s4 = inlined_call_operand.vmem [shape: f32[1,128], index: 4, kind: input, shape index: {}]
  %s5 = inlined_call_operand.hbm [shape: bf16[128,128], index: 5, kind: input, shape index: {}]
  %s6 = inlined_call_operand.vmem [shape: f32[1,128], index: 6, kind: input, shape index: {}]
  %s7 = inlined_call_operand.hbm [shape: f32[128,128], index: 7, kind: output, shape index: {0}]
  %s8 = inlined_call_operand.hbm [shape: bf16[128,128], index: 8, kind: output, shape index: {1}]
  %s9 = inlined_call_operand.hbm [shape: f32[128,128], index: 9, kind: output, shape index: {2}]
  %10 = xla_tuple %s7, %s8, %s9
  %s11 = sld [smem:[#allocation0]]
  $region78: #{tpu_custom_call.1} parent=0
    _
  %s13 = ssub.s32 1, %s11
  %s14 = scalar_select 0, %s13, %s11
  $region1: #{tpu_custom_call.1} parent=0
    #allocation2 [shape = 'u8[65536]{0}', space=vmem, size = 0x10000, scoped, tag = 'input window, operand 0, single buffered']
    #allocation3 [shape = 's32[1]{0}', space=sflag, size = 0x4, scoped, tag = 'scoped memory for tpu_custom_call.1']
    #allocation4 [shape = 's32[1]{0}', space=sflag, size = 0x4, scoped, tag = 'scoped memory for tpu_custom_call.1']
    #allocation5 [shape = 'u8[32768]{0}', space=vmem, size = 0x8000, scoped, tag = 'input window, operand 1, single buffered']
    #allocation6 [shape = 's32[1]{0}', space=sflag, size = 0x4, scoped, tag = 'scoped memory for tpu_custom_call.1']
    #allocation7 [shape = 'u8[32768]{0}', space=vmem, size = 0x8000, scoped, tag = 'input window, operand 2, single buffered']
    #allocation8 [shape = 'u8[32768]{0}', space=vmem, size = 0x8000, scoped, tag = 'input window, operand 3, single buffered']
    #allocation9 [shape = 's32[1]{0}', space=sflag, size = 0x4, scoped, tag = 'scoped memory for tpu_custom_call.1']
    #allocation10 [shape = 'u8[32768]{0}', space=vmem, size = 0x8000, scoped, tag = 'input window, operand 5, single buffered']
    #allocation11 [shape = 'u8[65536]{0}', space=vmem, size = 0x10000, scoped, tag = 'output window, operand 0, single buffered']
    #allocation12 [shape = 'u8[32768]{0}', space=vmem, size = 0x8000, scoped, tag = 'output window, operand 1, single buffered']
    #allocation13 [shape = 's32[1]{0}', space=sflag, size = 0x4, scoped, tag = 'scoped memory for tpu_custom_call.1']
    #allocation14 [shape = 'u8[65536]{0}', space=vmem, size = 0x10000, scoped, tag = 'output window, operand 2, single buffered']
    %15 = vsyncpa [#allocation3], 0
    %16 = vsyncpa [#allocation6], 0
    %17 = vsyncpa [#allocation9], 0
    %18 = vsyncpa [#allocation4], 0
    %19 = vsyncpa [#allocation13], 0
    // Predicated region
    $region2: #{tpu_custom_call.1} parent=1 // pred_check
      _
    $region3: #{tpu_custom_call.1} parent=1 // pred_check_branch
      %21 = sbr.rel (0) target = $region5
    $region4: #{tpu_custom_call.1} parent=1 // pred_region
      %s23 = ssub.s32 2048, 2048
      %24 = vsyncadd [#allocation3], %s23
      %s25 = sshll.u32 [#allocation2], 4
      %s26 = int_to_ptr.vmem [resolvable:$true] %s25
      %31 = dma.hbm_to_vmem [thread:$0]  %s0, 2048, %s26, [#allocation3], 128, 128, 8
    $region5: #{tpu_custom_call.1} parent=1 // pred_fallthru
      _
    // Predicated region
    $region6: #{tpu_custom_call.1} parent=1 // pred_check
      _
    $region7: #{tpu_custom_call.1} parent=1 // pred_check_branch
      %33 = sbr.rel (0) target = $region9
    $region8: #{tpu_custom_call.1} parent=1 // pred_region
      %s35 = ssub.s32 1024, 1024
      %36 = vsyncadd [#allocation6], %s35
      %s37 = sshll.u32 [#allocation5], 4
      %s38 = int_to_ptr.vmem [resolvable:$true] %s37
      %43 = dma.hbm_to_vmem [thread:$0]  %s1, 1024, %s38, [#allocation6], 64, 64, 4
    $region9: #{tpu_custom_call.1} parent=1 // pred_fallthru
      _
    // Predicated region
    $region10: #{tpu_custom_call.1} parent=1 // pred_check
      _
    $region11: #{tpu_custom_call.1} parent=1 // pred_check_branch
      %45 = sbr.rel (0) target = $region13
    $region12: #{tpu_custom_call.1} parent=1 // pred_region
      %s47 = ssub.s32 1024, 1024
      %48 = vsyncadd [#allocation6], %s47
      %s49 = sshll.u32 [#allocation7], 4
      %s50 = int_to_ptr.vmem [resolvable:$true] %s49
      %55 = dma.hbm_to_vmem [thread:$0]  %s2, 1024, %s50, [#allocation6], 64, 64, 4
    $region13: #{tpu_custom_call.1} parent=1 // pred_fallthru
      _
    // Predicated region
    $region14: #{tpu_custom_call.1} parent=1 // pred_check
      _
    $region15: #{tpu_custom_call.1} parent=1 // pred_check_branch
      %57 = sbr.rel (0) target = $region17
    $region16: #{tpu_custom_call.1} parent=1 // pred_region
      %s59 = ssub.s32 1024, 1024
      %60 = vsyncadd [#allocation9], %s59
      %s61 = sshll.u32 [#allocation8], 4
      %s62 = int_to_ptr.vmem [resolvable:$true] %s61
      %67 = dma.hbm_to_vmem [thread:$0]  %s3, 1024, %s62, [#allocation9], 64, 64, 4
    $region17: #{tpu_custom_call.1} parent=1 // pred_fallthru
      _
    // Predicated region
    $region18: #{tpu_custom_call.1} parent=1 // pred_check
      _
    $region19: #{tpu_custom_call.1} parent=1 // pred_check_branch
      %69 = sbr.rel (0) target = $region21
    $region20: #{tpu_custom_call.1} parent=1 // pred_region
      _
    $region21: #{tpu_custom_call.1} parent=1 // pred_fallthru
      _
    // Predicated region
    $region22: #{tpu_custom_call.1} parent=1 // pred_check
      _
    $region23: #{tpu_custom_call.1} parent=1 // pred_check_branch
      %71 = sbr.rel (0) target = $region25
    $region24: #{tpu_custom_call.1} parent=1 // pred_region
      %s73 = ssub.s32 1024, 1024
      %74 = vsyncadd [#allocation9], %s73
      %s75 = sshll.u32 [#allocation10], 4
      %s76 = int_to_ptr.vmem [resolvable:$true] %s75
      %81 = dma.hbm_to_vmem [thread:$0]  %s5, 1024, %s76, [#allocation9], 64, 64, 4
    $region25: #{tpu_custom_call.1} parent=1 // pred_fallthru
      _
    // Predicated region
    $region26: #{tpu_custom_call.1} parent=1 // pred_check
      _
    $region27: #{tpu_custom_call.1} parent=1 // pred_check_branch
      %83 = sbr.rel (0) target = $region29
    $region28: #{tpu_custom_call.1} parent=1 // pred_region
      _
    $region29: #{tpu_custom_call.1} parent=1 // pred_fallthru
      _
    // Predicated region
    $region30: #{tpu_custom_call.1} parent=1 // pred_check
      _
    $region31: #{tpu_custom_call.1} parent=1 // pred_check_branch
      %85 = sbr.rel (0) target = $region33
    $region32: #{tpu_custom_call.1} parent=1 // pred_region
      %86 = dma.done [#allocation3], 2048
    $region33: #{tpu_custom_call.1} parent=1 // pred_fallthru
      _
    // Predicated region
    $region34: #{tpu_custom_call.1} parent=1 // pred_check
      _
    $region35: #{tpu_custom_call.1} parent=1 // pred_check_branch
      %88 = sbr.rel (0) target = $region37
    $region36: #{tpu_custom_call.1} parent=1 // pred_region
      %89 = dma.done [#allocation6], 1024
    $region37: #{tpu_custom_call.1} parent=1 // pred_fallthru
      _
    // Predicated region
    $region38: #{tpu_custom_call.1} parent=1 // pred_check
      _
    $region39: #{tpu_custom_call.1} parent=1 // pred_check_branch
      %91 = sbr.rel (0) target = $region41
    $region40: #{tpu_custom_call.1} parent=1 // pred_region
      %92 = dma.done [#allocation6], 1024
    $region41: #{tpu_custom_call.1} parent=1 // pred_fallthru
      _
    // Predicated region
    $region42: #{tpu_custom_call.1} parent=1 // pred_check
      _
    $region43: #{tpu_custom_call.1} parent=1 // pred_check_branch
      %94 = sbr.rel (0) target = $region45
    $region44: #{tpu_custom_call.1} parent=1 // pred_region
      %95 = dma.done [#allocation9], 1024
    $region45: #{tpu_custom_call.1} parent=1 // pred_fallthru
      _
    // Predicated region
    $region46: #{tpu_custom_call.1} parent=1 // pred_check
      _
    $region47: #{tpu_custom_call.1} parent=1 // pred_check_branch
      %97 = sbr.rel (0) target = $region49
    $region48: #{tpu_custom_call.1} parent=1 // pred_region
      %98 = dma.done [#allocation9], 1024
    $region49: #{tpu_custom_call.1} parent=1 // pred_fallthru
      _
    %p100 = scmp.eq.s32.totalorder 0, 0
    // Predicated region
    $region50: #{tpu_custom_call.1} parent=1 // pred_check
      %p101 = pneg %p100
    $region51: #{tpu_custom_call.1} parent=1 // pred_check_branch
      %103 = sbr.rel (%p101) target = $region53
    $region52: #{tpu_custom_call.1} parent=1 // pred_region
      %v104 = vld [vmem:[#allocation2] sm:$0xff]
      %v105 = vld [vmem:[#allocation2 + $0x8] sm:$0xff]
      %v106 = vld [vmem:[#allocation2 + $0x10] sm:$0xff]
      %v107 = vld [vmem:[#allocation2 + $0x18] sm:$0xff]
      %v108 = vld [vmem:[#allocation2 + $0x20] sm:$0xff]
      %v109 = vld [vmem:[#allocation2 + $0x28] sm:$0xff]
      %v110 = vld [vmem:[#allocation2 + $0x30] sm:$0xff]
      %v111 = vld [vmem:[#allocation2 + $0x38] sm:$0xff]
      %v112 = vld [vmem:[#allocation2 + $0x40] sm:$0xff]
      %v113 = vld [vmem:[#allocation2 + $0x48] sm:$0xff]
      %v114 = vld [vmem:[#allocation2 + $0x50] sm:$0xff]
      %v115 = vld [vmem:[#allocation2 + $0x58] sm:$0xff]
      %v116 = vld [vmem:[#allocation2 + $0x60] sm:$0xff]
      %v117 = vld [vmem:[#allocation2 + $0x68] sm:$0xff]
      %v118 = vld [vmem:[#allocation2 + $0x70] sm:$0xff]
      %v119 = vld [vmem:[#allocation2 + $0x78] sm:$0xff]
      %v120 = vpack.c.bf16 %v105, %v104
      %v121 = vpack.c.bf16 %v107, %v106
      %v122 = vpack.c.bf16 %v109, %v108
      %v123 = vpack.c.bf16 %v111, %v110
      %v124 = vpack.c.bf16 %v113, %v112
      %v125 = vpack.c.bf16 %v115, %v114
      %v126 = vpack.c.bf16 %v117, %v116
      %v127 = vpack.c.bf16 %v119, %v118
      %v128 = vld [vmem:[#allocation5] sm:$0xf]
      %v129 = vld [vmem:[#allocation5 + $0x4] sm:$0xf]
      %v130 = vld [vmem:[#allocation5 + $0x8] sm:$0xf]
      %v131 = vld [vmem:[#allocation5 + $0xc] sm:$0xf]
      %v132 = vld [vmem:[#allocation5 + $0x10] sm:$0xf]
      %v133 = vld [vmem:[#allocation5 + $0x14] sm:$0xf]
      %v134 = vld [vmem:[#allocation5 + $0x18] sm:$0xf]
      %v135 = vld [vmem:[#allocation5 + $0x1c] sm:$0xf]
      %v136 = vld [vmem:[#allocation5 + $0x20] sm:$0xf]
      %v137 = vld [vmem:[#allocation5 + $0x24] sm:$0xf]
      %v138 = vld [vmem:[#allocation5 + $0x28] sm:$0xf]
      %v139 = vld [vmem:[#allocation5 + $0x2c] sm:$0xf]
      %v140 = vld [vmem:[#allocation5 + $0x30] sm:$0xf]
      %v141 = vld [vmem:[#allocation5 + $0x34] sm:$0xf]
      %v142 = vld [vmem:[#allocation5 + $0x38] sm:$0xf]
      %v143 = vld [vmem:[#allocation5 + $0x3c] sm:$0xf]
      %v160 = vunpack.c.l.b16 %v128
      %v161 = vunpack.c.l.b16 %v129
      %v162 = vunpack.c.l.b16 %v130
      %v163 = vunpack.c.l.b16 %v131
      %v164 = vunpack.c.l.b16 %v132
      %v165 = vunpack.c.l.b16 %v133
      %v166 = vunpack.c.l.b16 %v134
      %v167 = vunpack.c.l.b16 %v135
      %v168 = vunpack.c.l.b16 %v136
      %v169 = vunpack.c.l.b16 %v137
      %v170 = vunpack.c.l.b16 %v138
      %v171 = vunpack.c.l.b16 %v139
      %v172 = vunpack.c.l.b16 %v140
      %v173 = vunpack.c.l.b16 %v141
      %v174 = vunpack.c.l.b16 %v142
      %v175 = vunpack.c.l.b16 %v143
      %v176 = vpack.c.b16 %v161, %v160
      %v177 = vpack.c.b16 %v163, %v162
      %v178 = vpack.c.b16 %v165, %v164
      %v179 = vpack.c.b16 %v167, %v166
      %v180 = vpack.c.b16 %v169, %v168
      %v181 = vpack.c.b16 %v171, %v170
      %v182 = vpack.c.b16 %v173, %v172
      %v183 = vpack.c.b16 %v175, %v174
      %192 = vmatprep.subr.bf16.mxu0 0
      %193 = vmatpush1.bf16.xpose.msra.mxu0 %v183
      %194 = vmatprep.subr.bf16.mxu0 0
      %195 = vmatpush1.bf16.xpose.msra.mxu0 %v182
      %196 = vmatprep.subr.bf16.mxu0 0
      %197 = vmatpush1.bf16.xpose.msra.mxu0 %v181
      %198 = vmatprep.subr.bf16.mxu0 0
      %199 = vmatpush1.bf16.xpose.msra.mxu0 %v180
      %200 = vmatprep.subr.bf16.mxu0 0
      %201 = vmatpush1.bf16.xpose.msra.mxu0 %v179
      %202 = vmatprep.subr.bf16.mxu0 0
      %203 = vmatpush1.bf16.xpose.msra.mxu0 %v178
      %204 = vmatprep.subr.bf16.mxu0 0
      %205 = vmatpush1.bf16.xpose.msra.mxu0 %v177
      %206 = vmatprep.subr.bf16.mxu0 0
      %207 = vmatpush1.bf16.xpose.msra.mxu0 %v176
      %208 = vmatprep.subr.bf16.mxu0 0
      %209 = vmatpush2.bf16.xpose.msra.mxu0 0
      %210 = vmatprep.subr.bf16.mxu0 0
      %211 = vmatpush2.bf16.xpose.msra.mxu0 0
      %212 = vmatprep.subr.bf16.mxu0 0
      %213 = vmatpush2.bf16.xpose.msra.mxu0 0
      %214 = vmatprep.subr.bf16.mxu0 0
      %215 = vmatpush2.bf16.xpose.msra.mxu0 0
      %216 = vmatprep.subr.bf16.mxu0 0
      %217 = vmatpush2.bf16.xpose.msra.mxu0 0
      %218 = vmatprep.subr.bf16.mxu0 0
      %219 = vmatpush2.bf16.xpose.msra.mxu0 0
      %220 = vmatprep.subr.bf16.mxu0 0
      %221 = vmatpush2.bf16.xpose.msra.mxu0 0
      %222 = vmatprep.subr.bf16.mxu0 0
      %223 = vmatpush2.bf16.xpose.msra.mxu0 0
      %224 = vmatprep.mubr.bf16.mxu0 0
      %225 = vmatmul.mubr.bf16.gmra.mxu0 %v120
      %v226 = vpop.f32.mrf.mxu0
      %v227 = vadd.f32 0.0, %v226
      %v228 = vpop.f32.mrf.mxu0
      %v229 = vpop.f32.mrf.mxu0
      %v230 = vadd.f32 0.0, %v229
      %v231 = vpop.f32.mrf.mxu0
      %232 = vmatprep.mubr.bf16.mxu0 0
      %233 = vmatmul.mubr.bf16.gmra.mxu0 %v121
      %v234 = vpop.f32.mrf.mxu0
      %v235 = vadd.f32 0.0, %v234
      %v236 = vpop.f32.mrf.mxu0
      %v237 = vpop.f32.mrf.mxu0
      %v238 = vadd.f32 0.0, %v237
      %v239 = vpop.f32.mrf.mxu0
      %240 = vmatprep.mubr.bf16.mxu0 0
      %241 = vmatmul.mubr.bf16.gmra.mxu0 %v122
      %v242 = vpop.f32.mrf.mxu0
      %v243 = vadd.f32 0.0, %v242
      %v244 = vpop.f32.mrf.mxu0
      %v245 = vpop.f32.mrf.mxu0
      %v246 = vadd.f32 0.0, %v245
      %v247 = vpop.f32.mrf.mxu0
      %248 = vmatprep.mubr.bf16.mxu0 0
      %249 = vmatmul.mubr.bf16.gmra.mxu0 %v123
      %v250 = vpop.f32.mrf.mxu0
      %v251 = vadd.f32 0.0, %v250
      %v252 = vpop.f32.mrf.mxu0
      %v253 = vpop.f32.mrf.mxu0
      %v254 = vadd.f32 0.0, %v253
      %v255 = vpop.f32.mrf.mxu0
      %256 = vmatprep.mubr.bf16.mxu0 0
      %257 = vmatmul.mubr.bf16.gmra.mxu0 %v124
      %v258 = vpop.f32.mrf.mxu0
      %v259 = vadd.f32 0.0, %v258
      %v260 = vpop.f32.mrf.mxu0
      %v261 = vpop.f32.mrf.mxu0
      %v262 = vadd.f32 0.0, %v261
      %v263 = vpop.f32.mrf.mxu0
      %264 = vmatprep.mubr.bf16.mxu0 0
      %265 = vmatmul.mubr.bf16.gmra.mxu0 %v125
      %v266 = vpop.f32.mrf.mxu0
      %v267 = vadd.f32 0.0, %v266
      %v268 = vpop.f32.mrf.mxu0
      %v269 = vpop.f32.mrf.mxu0
      %v270 = vadd.f32 0.0, %v269
      %v271 = vpop.f32.mrf.mxu0
      %272 = vmatprep.mubr.bf16.mxu0 0
      %273 = vmatmul.mubr.bf16.gmra.mxu0 %v126
      %v274 = vpop.f32.mrf.mxu0
      %v275 = vadd.f32 0.0, %v274
      %v276 = vpop.f32.mrf.mxu0
      %v277 = vpop.f32.mrf.mxu0
      %v278 = vadd.f32 0.0, %v277
      %v279 = vpop.f32.mrf.mxu0
      %280 = vmatprep.mubr.bf16.mxu0 0
      %281 = vmatmul.mubr.bf16.gmra.mxu0 %v127
      %v282 = vpop.f32.mrf.mxu0
      %v283 = vadd.f32 0.0, %v282
      %v284 = vpop.f32.mrf.mxu0
      %v285 = vpop.f32.mrf.mxu0
      %v286 = vadd.f32 0.0, %v285
      %v287 = vpop.f32.mrf.mxu0
      %288 = vdwg.mxu0
      %v289 = vmul.f32 %v227, 0.17677669
      %v290 = vmul.f32 %v230, 0.17677669
      %v291 = vmul.f32 %v235, 0.17677669
      %v292 = vmul.f32 %v238, 0.17677669
      %v293 = vmul.f32 %v243, 0.17677669
      %v294 = vmul.f32 %v246, 0.17677669
      %v295 = vmul.f32 %v251, 0.17677669
      %v296 = vmul.f32 %v254, 0.17677669
      %v297 = vmul.f32 %v259, 0.17677669
      %v298 = vmul.f32 %v262, 0.17677669
      %v299 = vmul.f32 %v267, 0.17677669
      %v300 = vmul.f32 %v270, 0.17677669
      %v301 = vmul.f32 %v275, 0.17677669
      %v302 = vmul.f32 %v278, 0.17677669
      %v303 = vmul.f32 %v283, 0.17677669
      %v304 = vmul.f32 %v286, 0.17677669
      %v305 = vlaneseq
      %v306 = vand.u32 %v305, 127
      %vm307 = vcmp.lt.s32.totalorder %v306, 16
      %v308 = vsel %vm307, %v289, -1e+30
      %v309 = vsel %vm307, %v290, -1e+30
      %v310 = vsel %vm307, %v291, -1e+30
      %v311 = vsel %vm307, %v292, -1e+30
      %v312 = vsel %vm307, %v293, -1e+30
      %v313 = vsel %vm307, %v294, -1e+30
      %v314 = vsel %vm307, %v295, -1e+30
      %v315 = vsel %vm307, %v296, -1e+30
      %v316 = vsel %vm307, %v297, -1e+30
      %v317 = vsel %vm307, %v298, -1e+30
      %v318 = vsel %vm307, %v299, -1e+30
      %v319 = vsel %vm307, %v300, -1e+30
      %v320 = vsel %vm307, %v301, -1e+30
      %v321 = vsel %vm307, %v302, -1e+30
      %v322 = vsel %vm307, %v303, -1e+30
      %v323 = vsel %vm307, %v304, -1e+30
      %324 = vmax.xlane.f32.xlu0 %v308
      %v325 = vpop.xlane.xlu0 %324
      %326 = vmax.xlane.f32.xlu0 %v309
      %v327 = vpop.xlane.xlu0 %326
      %328 = vmax.xlane.f32.xlu0 %v310
      %v329 = vpop.xlane.xlu0 %328
      %330 = vmax.xlane.f32.xlu0 %v311
      %v331 = vpop.xlane.xlu0 %330
      %332 = vmax.xlane.f32.xlu0 %v312
      %v333 = vpop.xlane.xlu0 %332
      %334 = vmax.xlane.f32.xlu0 %v313
      %v335 = vpop.xlane.xlu0 %334
      %336 = vmax.xlane.f32.xlu0 %v314
      %v337 = vpop.xlane.xlu0 %336
      %338 = vmax.xlane.f32.xlu0 %v315
      %v339 = vpop.xlane.xlu0 %338
      %340 = vmax.xlane.f32.xlu0 %v316
      %v341 = vpop.xlane.xlu0 %340
      %342 = vmax.xlane.f32.xlu0 %v317
      %v343 = vpop.xlane.xlu0 %342
      %344 = vmax.xlane.f32.xlu0 %v318
      %v345 = vpop.xlane.xlu0 %344
      %346 = vmax.xlane.f32.xlu0 %v319
      %v347 = vpop.xlane.xlu0 %346
      %348 = vmax.xlane.f32.xlu0 %v320
      %v349 = vpop.xlane.xlu0 %348
      %350 = vmax.xlane.f32.xlu0 %v321
      %v351 = vpop.xlane.xlu0 %350
      %352 = vmax.xlane.f32.xlu0 %v322
      %v353 = vpop.xlane.xlu0 %352
      %354 = vmax.xlane.f32.xlu0 %v323
      %v355 = vpop.xlane.xlu0 %354
      %v356 = vsub.f32 %v308, %v325
      %v357 = vsub.f32 %v309, %v327
      %v358 = vsub.f32 %v310, %v329
      %v359 = vsub.f32 %v311, %v331
      %v360 = vsub.f32 %v312, %v333
      %v361 = vsub.f32 %v313, %v335
      %v362 = vsub.f32 %v314, %v337
      %v363 = vsub.f32 %v315, %v339
      %v364 = vsub.f32 %v316, %v341
      %v365 = vsub.f32 %v317, %v343
      %v366 = vsub.f32 %v318, %v345
      %v367 = vsub.f32 %v319, %v347
      %v368 = vsub.f32 %v320, %v349
      %v369 = vsub.f32 %v321, %v351
      %v370 = vsub.f32 %v322, %v353
      %v371 = vsub.f32 %v323, %v355
      %v372 = vmul.f32 %v356, 1.442695
      %v373 = vpow.pop %v372
      %v374 = vmul.f32 %v357, 1.442695
      %v375 = vpow.pop %v374
      %v376 = vmul.f32 %v358, 1.442695
      %v377 = vpow.pop %v376
      %v378 = vmul.f32 %v359, 1.442695
      %v379 = vpow.pop %v378
      %v380 = vmul.f32 %v360, 1.442695
      %v381 = vpow.pop %v380
      %v382 = vmul.f32 %v361, 1.442695
      %v383 = vpow.pop %v382
      %v384 = vmul.f32 %v362, 1.442695
      %v385 = vpow.pop %v384
      %v386 = vmul.f32 %v363, 1.442695
      %v387 = vpow.pop %v386
      %v388 = vmul.f32 %v364, 1.442695
      %v389 = vpow.pop %v388
      %v390 = vmul.f32 %v365, 1.442695
      %v391 = vpow.pop %v390
      %v392 = vmul.f32 %v366, 1.442695
      %v393 = vpow.pop %v392
      %v394 = vmul.f32 %v367, 1.442695
      %v395 = vpow.pop %v394
      %v396 = vmul.f32 %v368, 1.442695
      %v397 = vpow.pop %v396
      %v398 = vmul.f32 %v369, 1.442695
      %v399 = vpow.pop %v398
      %v400 = vmul.f32 %v370, 1.442695
      %v401 = vpow.pop %v400
      %v402 = vmul.f32 %v371, 1.442695
      %v403 = vpow.pop %v402
      %404 = vadd.xlane.f32.xlu0 %v373
      %v405 = vpop.xlane.xlu0 %404
      %406 = vadd.xlane.f32.xlu0 %v375
      %v407 = vpop.xlane.xlu0 %406
      %408 = vadd.xlane.f32.xlu0 %v377
      %v409 = vpop.xlane.xlu0 %408
      %410 = vadd.xlane.f32.xlu0 %v379
      %v411 = vpop.xlane.xlu0 %410
      %412 = vadd.xlane.f32.xlu0 %v381
      %v413 = vpop.xlane.xlu0 %412
      %414 = vadd.xlane.f32.xlu0 %v383
      %v415 = vpop.xlane.xlu0 %414
      %416 = vadd.xlane.f32.xlu0 %v385
      %v417 = vpop.xlane.xlu0 %416
      %418 = vadd.xlane.f32.xlu0 %v387
      %v419 = vpop.xlane.xlu0 %418
      %420 = vadd.xlane.f32.xlu0 %v389
      %v421 = vpop.xlane.xlu0 %420
      %422 = vadd.xlane.f32.xlu0 %v391
      %v423 = vpop.xlane.xlu0 %422
      %424 = vadd.xlane.f32.xlu0 %v393
      %v425 = vpop.xlane.xlu0 %424
      %426 = vadd.xlane.f32.xlu0 %v395
      %v427 = vpop.xlane.xlu0 %426
      %428 = vadd.xlane.f32.xlu0 %v397
      %v429 = vpop.xlane.xlu0 %428
      %430 = vadd.xlane.f32.xlu0 %v399
      %v431 = vpop.xlane.xlu0 %430
      %432 = vadd.xlane.f32.xlu0 %v401
      %v433 = vpop.xlane.xlu0 %432
      %434 = vadd.xlane.f32.xlu0 %v403
      %v435 = vpop.xlane.xlu0 %434
      %v436 = vrcp.pop %v405
      %v437 = vrcp.pop %v407
      %v438 = vrcp.pop %v409
      %v439 = vrcp.pop %v411
      %v440 = vrcp.pop %v413
      %v441 = vrcp.pop %v415
      %v442 = vrcp.pop %v417
      %v443 = vrcp.pop %v419
      %v444 = vrcp.pop %v421
      %v445 = vrcp.pop %v423
      %v446 = vrcp.pop %v425
      %v447 = vrcp.pop %v427
      %v448 = vrcp.pop %v429
      %v449 = vrcp.pop %v431
      %v450 = vrcp.pop %v433
      %v451 = vrcp.pop %v435
      %v452 = vmul.f32 %v373, %v436
      %v453 = vmul.f32 %v375, %v437
      %v454 = vmul.f32 %v377, %v438
      %v455 = vmul.f32 %v379, %v439
      %v456 = vmul.f32 %v381, %v440
      %v457 = vmul.f32 %v383, %v441
      %v458 = vmul.f32 %v385, %v442
      %v459 = vmul.f32 %v387, %v443
      %v460 = vmul.f32 %v389, %v444
      %v461 = vmul.f32 %v391, %v445
      %v462 = vmul.f32 %v393, %v446
      %v463 = vmul.f32 %v395, %v447
      %v464 = vmul.f32 %v397, %v448
      %v465 = vmul.f32 %v399, %v449
      %v466 = vmul.f32 %v401, %v450
      %v467 = vmul.f32 %v403, %v451
      %v468 = vpack.c.bf16 %v453, %v452
      %v469 = vpack.c.bf16 %v455, %v454
      %v470 = vpack.c.bf16 %v457, %v456
      %v471 = vpack.c.bf16 %v459, %v458
      %v472 = vpack.c.bf16 %v461, %v460
      %v473 = vpack.c.bf16 %v463, %v462
      %v474 = vpack.c.bf16 %v465, %v464
      %v475 = vpack.c.bf16 %v467, %v466
      %476 = vmatprep.subr.bf16.mxu0 0
      %477 = vmatpush1.bf16.msra.mxu0 %v183
      %478 = vmatprep.subr.bf16.mxu0 0
      %479 = vmatpush1.bf16.msra.mxu0 %v182
      %480 = vmatprep.subr.bf16.mxu0 0
      %481 = vmatpush1.bf16.msra.mxu0 %v181
      %482 = vmatprep.subr.bf16.mxu0 0
      %483 = vmatpush1.bf16.msra.mxu0 %v180
      %484 = vmatprep.subr.bf16.mxu0 0
      %485 = vmatpush1.bf16.msra.mxu0 %v179
      %486 = vmatprep.subr.bf16.mxu0 0
      %487 = vmatpush1.bf16.msra.mxu0 %v178
      %488 = vmatprep.subr.bf16.mxu0 0
      %489 = vmatpush1.bf16.msra.mxu0 %v177
      %490 = vmatprep.subr.bf16.mxu0 0
      %491 = vmatpush1.bf16.msra.mxu0 %v176
      %492 = vmatprep.subr.bf16.mxu0 0
      %493 = vmatpush2.bf16.msra.mxu0 0
      %494 = vmatprep.subr.bf16.mxu0 0
      %495 = vmatpush2.bf16.msra.mxu0 0
      %496 = vmatprep.subr.bf16.mxu0 0
      %497 = vmatpush2.bf16.msra.mxu0 0
      %498 = vmatprep.subr.bf16.mxu0 0
      %499 = vmatpush2.bf16.msra.mxu0 0
      %500 = vmatprep.subr.bf16.mxu0 0
      %501 = vmatpush2.bf16.msra.mxu0 0
      %502 = vmatprep.subr.bf16.mxu0 0
      %503 = vmatpush2.bf16.msra.mxu0 0
      %504 = vmatprep.subr.bf16.mxu0 0
      %505 = vmatpush2.bf16.msra.mxu0 0
      %506 = vmatprep.subr.bf16.mxu0 0
      %507 = vmatpush2.bf16.msra.mxu0 0
      %508 = vmatprep.mubr.bf16.mxu0 0
      %509 = vmatmul.mubr.bf16.gmra.mxu0 %v468
      %v510 = vpop.f32.mrf.mxu0
      %v511 = vadd.f32 0.0, %v510
      %v512 = vpop.f32.mrf.mxu0
      %v513 = vpop.f32.mrf.mxu0
      %v514 = vadd.f32 0.0, %v513
      %v515 = vpop.f32.mrf.mxu0
      %516 = vmatprep.mubr.bf16.mxu0 0
      %517 = vmatmul.mubr.bf16.gmra.mxu0 %v469
      %v518 = vpop.f32.mrf.mxu0
      %v519 = vadd.f32 0.0, %v518
      %v520 = vpop.f32.mrf.mxu0
      %v521 = vpop.f32.mrf.mxu0
      %v522 = vadd.f32 0.0, %v521
      %v523 = vpop.f32.mrf.mxu0
      %524 = vmatprep.mubr.bf16.mxu0 0
      %525 = vmatmul.mubr.bf16.gmra.mxu0 %v470
      %v526 = vpop.f32.mrf.mxu0
      %v527 = vadd.f32 0.0, %v526
      %v528 = vpop.f32.mrf.mxu0
      %v529 = vpop.f32.mrf.mxu0
      %v530 = vadd.f32 0.0, %v529
      %v531 = vpop.f32.mrf.mxu0
      %532 = vmatprep.mubr.bf16.mxu0 0
      %533 = vmatmul.mubr.bf16.gmra.mxu0 %v471
      %v534 = vpop.f32.mrf.mxu0
      %v535 = vadd.f32 0.0, %v534
      %v536 = vpop.f32.mrf.mxu0
      %v537 = vpop.f32.mrf.mxu0
      %v538 = vadd.f32 0.0, %v537
      %v539 = vpop.f32.mrf.mxu0
      %540 = vmatprep.mubr.bf16.mxu0 0
      %541 = vmatmul.mubr.bf16.gmra.mxu0 %v472
      %v542 = vpop.f32.mrf.mxu0
      %v543 = vadd.f32 0.0, %v542
      %v544 = vpop.f32.mrf.mxu0
      %v545 = vpop.f32.mrf.mxu0
      %v546 = vadd.f32 0.0, %v545
      %v547 = vpop.f32.mrf.mxu0
      %548 = vmatprep.mubr.bf16.mxu0 0
      %549 = vmatmul.mubr.bf16.gmra.mxu0 %v473
      %v550 = vpop.f32.mrf.mxu0
      %v551 = vadd.f32 0.0, %v550
      %v552 = vpop.f32.mrf.mxu0
      %v553 = vpop.f32.mrf.mxu0
      %v554 = vadd.f32 0.0, %v553
      %v555 = vpop.f32.mrf.mxu0
      %556 = vmatprep.mubr.bf16.mxu0 0
      %557 = vmatmul.mubr.bf16.gmra.mxu0 %v474
      %v558 = vpop.f32.mrf.mxu0
      %v559 = vadd.f32 0.0, %v558
      %v560 = vpop.f32.mrf.mxu0
      %v561 = vpop.f32.mrf.mxu0
      %v562 = vadd.f32 0.0, %v561
      %v563 = vpop.f32.mrf.mxu0
      %564 = vmatprep.mubr.bf16.mxu0 0
      %565 = vmatmul.mubr.bf16.gmra.mxu0 %v475
      %v566 = vpop.f32.mrf.mxu0
      %v567 = vadd.f32 0.0, %v566
      %v568 = vpop.f32.mrf.mxu0
      %v569 = vpop.f32.mrf.mxu0
      %v570 = vadd.f32 0.0, %v569
      %v571 = vpop.f32.mrf.mxu0
      %572 = vdwg.mxu0
      %v573 = vld [vmem:[#allocation7] sm:$0xf]
      %v574 = vld [vmem:[#allocation7 + $0x4] sm:$0xf]
      %v575 = vld [vmem:[#allocation7 + $0x8] sm:$0xf]
      %v576 = vld [vmem:[#allocation7 + $0xc] sm:$0xf]
      %v577 = vld [vmem:[#allocation7 + $0x10] sm:$0xf]
      %v578 = vld [vmem:[#allocation7 + $0x14] sm:$0xf]
      %v579 = vld [vmem:[#allocation7 + $0x18] sm:$0xf]
      %v580 = vld [vmem:[#allocation7 + $0x1c] sm:$0xf]
      %v581 = vld [vmem:[#allocation7 + $0x20] sm:$0xf]
      %v582 = vld [vmem:[#allocation7 + $0x24] sm:$0xf]
      %v583 = vld [vmem:[#allocation7 + $0x28] sm:$0xf]
      %v584 = vld [vmem:[#allocation7 + $0x2c] sm:$0xf]
      %v585 = vld [vmem:[#allocation7 + $0x30] sm:$0xf]
      %v586 = vld [vmem:[#allocation7 + $0x34] sm:$0xf]
      %v587 = vld [vmem:[#allocation7 + $0x38] sm:$0xf]
      %v588 = vld [vmem:[#allocation7 + $0x3c] sm:$0xf]
      %v589 = vpack.c.bf16 %v514, %v511
      %v590 = vpack.c.bf16 %v522, %v519
      %v591 = vpack.c.bf16 %v530, %v527
      %v592 = vpack.c.bf16 %v538, %v535
      %v593 = vpack.c.bf16 %v546, %v543
      %v594 = vpack.c.bf16 %v554, %v551
      %v595 = vpack.c.bf16 %v562, %v559
      %v596 = vpack.c.bf16 %v570, %v567
      %v597 = vld [vmem:[#allocation8] sm:$0xf]
      %v598 = vld [vmem:[#allocation8 + $0x4] sm:$0xf]
      %v599 = vld [vmem:[#allocation8 + $0x8] sm:$0xf]
      %v600 = vld [vmem:[#allocation8 + $0xc] sm:$0xf]
      %v601 = vld [vmem:[#allocation8 + $0x10] sm:$0xf]
      %v602 = vld [vmem:[#allocation8 + $0x14] sm:$0xf]
      %v603 = vld [vmem:[#allocation8 + $0x18] sm:$0xf]
      %v604 = vld [vmem:[#allocation8 + $0x1c] sm:$0xf]
      %v605 = vld [vmem:[#allocation8 + $0x20] sm:$0xf]
      %v606 = vld [vmem:[#allocation8 + $0x24] sm:$0xf]
      %v607 = vld [vmem:[#allocation8 + $0x28] sm:$0xf]
      %v608 = vld [vmem:[#allocation8 + $0x2c] sm:$0xf]
      %v609 = vld [vmem:[#allocation8 + $0x30] sm:$0xf]
      %v610 = vld [vmem:[#allocation8 + $0x34] sm:$0xf]
      %v611 = vld [vmem:[#allocation8 + $0x38] sm:$0xf]
      %v612 = vld [vmem:[#allocation8 + $0x3c] sm:$0xf]
      %v629 = vunpack.c.l.b16 %v597
      %v630 = vunpack.c.l.b16 %v598
      %v631 = vunpack.c.l.b16 %v599
      %v632 = vunpack.c.l.b16 %v600
      %v633 = vunpack.c.l.b16 %v601
      %v634 = vunpack.c.l.b16 %v602
      %v635 = vunpack.c.l.b16 %v603
      %v636 = vunpack.c.l.b16 %v604
      %v637 = vunpack.c.l.b16 %v605
      %v638 = vunpack.c.l.b16 %v606
      %v639 = vunpack.c.l.b16 %v607
      %v640 = vunpack.c.l.b16 %v608
      %v641 = vunpack.c.l.b16 %v609
      %v642 = vunpack.c.l.b16 %v610
      %v643 = vunpack.c.l.b16 %v611
      %v644 = vunpack.c.l.b16 %v612
      %v645 = vpack.c.b16 %v630, %v629
      %v646 = vpack.c.b16 %v632, %v631
      %v647 = vpack.c.b16 %v634, %v633
      %v648 = vpack.c.b16 %v636, %v635
      %v649 = vpack.c.b16 %v638, %v637
      %v650 = vpack.c.b16 %v640, %v639
      %v651 = vpack.c.b16 %v642, %v641
      %v652 = vpack.c.b16 %v644, %v643
      %661 = vmatprep.subr.bf16.mxu0 0
      %662 = vmatpush1.bf16.msra.mxu0 %v652
      %663 = vmatprep.subr.bf16.mxu0 0
      %664 = vmatpush1.bf16.msra.mxu0 %v651
      %665 = vmatprep.subr.bf16.mxu0 0
      %666 = vmatpush1.bf16.msra.mxu0 %v650
      %667 = vmatprep.subr.bf16.mxu0 0
      %668 = vmatpush1.bf16.msra.mxu0 %v649
      %669 = vmatprep.subr.bf16.mxu0 0
      %670 = vmatpush1.bf16.msra.mxu0 %v648
      %671 = vmatprep.subr.bf16.mxu0 0
      %672 = vmatpush1.bf16.msra.mxu0 %v647
      %673 = vmatprep.subr.bf16.mxu0 0
      %674 = vmatpush1.bf16.msra.mxu0 %v646
      %675 = vmatprep.subr.bf16.mxu0 0
      %676 = vmatpush1.bf16.msra.mxu0 %v645
      %677 = vmatprep.subr.bf16.mxu0 0
      %678 = vmatpush2.bf16.msra.mxu0 0
      %679 = vmatprep.subr.bf16.mxu0 0
      %680 = vmatpush2.bf16.msra.mxu0 0
      %681 = vmatprep.subr.bf16.mxu0 0
      %682 = vmatpush2.bf16.msra.mxu0 0
      %683 = vmatprep.subr.bf16.mxu0 0
      %684 = vmatpush2.bf16.msra.mxu0 0
      %685 = vmatprep.subr.bf16.mxu0 0
      %686 = vmatpush2.bf16.msra.mxu0 0
      %687 = vmatprep.subr.bf16.mxu0 0
      %688 = vmatpush2.bf16.msra.mxu0 0
      %689 = vmatprep.subr.bf16.mxu0 0
      %690 = vmatpush2.bf16.msra.mxu0 0
      %691 = vmatprep.subr.bf16.mxu0 0
      %692 = vmatpush2.bf16.msra.mxu0 0
      %693 = vmatprep.mubr.bf16.mxu0 0
      %694 = vmatmul.mubr.bf16.gmra.mxu0 %v589
      %v695 = vpop.f32.mrf.mxu0
      %v696 = vadd.f32 0.0, %v695
      %v697 = vpop.f32.mrf.mxu0
      %v698 = vpop.f32.mrf.mxu0
      %v699 = vadd.f32 0.0, %v698
      %v700 = vpop.f32.mrf.mxu0
      %701 = vmatprep.mubr.bf16.mxu0 0
      %702 = vmatmul.mubr.bf16.gmra.mxu0 %v590
      %v703 = vpop.f32.mrf.mxu0
      %v704 = vadd.f32 0.0, %v703
      %v705 = vpop.f32.mrf.mxu0
      %v706 = vpop.f32.mrf.mxu0
      %v707 = vadd.f32 0.0, %v706
      %v708 = vpop.f32.mrf.mxu0
      %709 = vmatprep.mubr.bf16.mxu0 0
      %710 = vmatmul.mubr.bf16.gmra.mxu0 %v591
      %v711 = vpop.f32.mrf.mxu0
      %v712 = vadd.f32 0.0, %v711
      %v713 = vpop.f32.mrf.mxu0
      %v714 = vpop.f32.mrf.mxu0
      %v715 = vadd.f32 0.0, %v714
      %v716 = vpop.f32.mrf.mxu0
      %717 = vmatprep.mubr.bf16.mxu0 0
      %718 = vmatmul.mubr.bf16.gmra.mxu0 %v592
      %v719 = vpop.f32.mrf.mxu0
      %v720 = vadd.f32 0.0, %v719
      %v721 = vpop.f32.mrf.mxu0
      %v722 = vpop.f32.mrf.mxu0
      %v723 = vadd.f32 0.0, %v722
      %v724 = vpop.f32.mrf.mxu0
      %725 = vmatprep.mubr.bf16.mxu0 0
      %726 = vmatmul.mubr.bf16.gmra.mxu0 %v593
      %v727 = vpop.f32.mrf.mxu0
      %v728 = vadd.f32 0.0, %v727
      %v729 = vpop.f32.mrf.mxu0
      %v730 = vpop.f32.mrf.mxu0
      %v731 = vadd.f32 0.0, %v730
      %v732 = vpop.f32.mrf.mxu0
      %733 = vmatprep.mubr.bf16.mxu0 0
      %734 = vmatmul.mubr.bf16.gmra.mxu0 %v594
      %v735 = vpop.f32.mrf.mxu0
      %v736 = vadd.f32 0.0, %v735
      %v737 = vpop.f32.mrf.mxu0
      %v738 = vpop.f32.mrf.mxu0
      %v739 = vadd.f32 0.0, %v738
      %v740 = vpop.f32.mrf.mxu0
      %741 = vmatprep.mubr.bf16.mxu0 0
      %742 = vmatmul.mubr.bf16.gmra.mxu0 %v595
      %v743 = vpop.f32.mrf.mxu0
      %v744 = vadd.f32 0.0, %v743
      %v745 = vpop.f32.mrf.mxu0
      %v746 = vpop.f32.mrf.mxu0
      %v747 = vadd.f32 0.0, %v746
      %v748 = vpop.f32.mrf.mxu0
      %749 = vmatprep.mubr.bf16.mxu0 0
      %750 = vmatmul.mubr.bf16.gmra.mxu0 %v596
      %v751 = vpop.f32.mrf.mxu0
      %v752 = vadd.f32 0.0, %v751
      %v753 = vpop.f32.mrf.mxu0
      %v754 = vpop.f32.mrf.mxu0
      %v755 = vadd.f32 0.0, %v754
      %v756 = vpop.f32.mrf.mxu0
      %757 = vdwg.mxu0
      %v774 = vunpack.c.l.b16 %v573
      %v775 = vunpack.c.l.b16 %v574
      %v776 = vunpack.c.l.b16 %v575
      %v777 = vunpack.c.l.b16 %v576
      %v778 = vunpack.c.l.b16 %v577
      %v779 = vunpack.c.l.b16 %v578
      %v780 = vunpack.c.l.b16 %v579
      %v781 = vunpack.c.l.b16 %v580
      %v782 = vunpack.c.l.b16 %v581
      %v783 = vunpack.c.l.b16 %v582
      %v784 = vunpack.c.l.b16 %v583
      %v785 = vunpack.c.l.b16 %v584
      %v786 = vunpack.c.l.b16 %v585
      %v787 = vunpack.c.l.b16 %v586
      %v788 = vunpack.c.l.b16 %v587
      %v789 = vunpack.c.l.b16 %v588
      %v790 = vpack.c.b16 %v775, %v774
      %v791 = vpack.c.b16 %v777, %v776
      %v792 = vpack.c.b16 %v779, %v778
      %v793 = vpack.c.b16 %v781, %v780
      %v794 = vpack.c.b16 %v783, %v782
      %v795 = vpack.c.b16 %v785, %v784
      %v796 = vpack.c.b16 %v787, %v786
      %v797 = vpack.c.b16 %v789, %v788
      %806 = vmatprep.subr.bf16.mxu0 0
      %807 = vmatpush1.bf16.msra.mxu0 %v797
      %808 = vmatprep.subr.bf16.mxu0 0
      %809 = vmatpush1.bf16.msra.mxu0 %v796
      %810 = vmatprep.subr.bf16.mxu0 0
      %811 = vmatpush1.bf16.msra.mxu0 %v795
      %812 = vmatprep.subr.bf16.mxu0 0
      %813 = vmatpush1.bf16.msra.mxu0 %v794
      %814 = vmatprep.subr.bf16.mxu0 0
      %815 = vmatpush1.bf16.msra.mxu0 %v793
      %816 = vmatprep.subr.bf16.mxu0 0
      %817 = vmatpush1.bf16.msra.mxu0 %v792
      %818 = vmatprep.subr.bf16.mxu0 0
      %819 = vmatpush1.bf16.msra.mxu0 %v791
      %820 = vmatprep.subr.bf16.mxu0 0
      %821 = vmatpush1.bf16.msra.mxu0 %v790
      %822 = vmatprep.subr.bf16.mxu0 0
      %823 = vmatpush2.bf16.msra.mxu0 0
      %824 = vmatprep.subr.bf16.mxu0 0
      %825 = vmatpush2.bf16.msra.mxu0 0
      %826 = vmatprep.subr.bf16.mxu0 0
      %827 = vmatpush2.bf16.msra.mxu0 0
      %828 = vmatprep.subr.bf16.mxu0 0
      %829 = vmatpush2.bf16.msra.mxu0 0
      %830 = vmatprep.subr.bf16.mxu0 0
      %831 = vmatpush2.bf16.msra.mxu0 0
      %832 = vmatprep.subr.bf16.mxu0 0
      %833 = vmatpush2.bf16.msra.mxu0 0
      %834 = vmatprep.subr.bf16.mxu0 0
      %835 = vmatpush2.bf16.msra.mxu0 0
      %836 = vmatprep.subr.bf16.mxu0 0
      %837 = vmatpush2.bf16.msra.mxu0 0
      %838 = vmatprep.mubr.bf16.mxu0 0
      %839 = vmatmul.mubr.bf16.gmra.mxu0 %v120
      %v840 = vpop.f32.mrf.mxu0
      %v841 = vadd.f32 %v696, %v840
      %v842 = vpop.f32.mrf.mxu0
      %v843 = vpop.f32.mrf.mxu0
      %v844 = vadd.f32 %v699, %v843
      %v845 = vpop.f32.mrf.mxu0
      %846 = vmatprep.mubr.bf16.mxu0 0
      %847 = vmatmul.mubr.bf16.gmra.mxu0 %v121
      %v848 = vpop.f32.mrf.mxu0
      %v849 = vadd.f32 %v704, %v848
      %v850 = vpop.f32.mrf.mxu0
      %v851 = vpop.f32.mrf.mxu0
      %v852 = vadd.f32 %v707, %v851
      %v853 = vpop.f32.mrf.mxu0
      %854 = vmatprep.mubr.bf16.mxu0 0
      %855 = vmatmul.mubr.bf16.gmra.mxu0 %v122
      %v856 = vpop.f32.mrf.mxu0
      %v857 = vadd.f32 %v712, %v856
      %v858 = vpop.f32.mrf.mxu0
      %v859 = vpop.f32.mrf.mxu0
      %v860 = vadd.f32 %v715, %v859
      %v861 = vpop.f32.mrf.mxu0
      %862 = vmatprep.mubr.bf16.mxu0 0
      %863 = vmatmul.mubr.bf16.gmra.mxu0 %v123
      %v864 = vpop.f32.mrf.mxu0
      %v865 = vadd.f32 %v720, %v864
      %v866 = vpop.f32.mrf.mxu0
      %v867 = vpop.f32.mrf.mxu0
      %v868 = vadd.f32 %v723, %v867
      %v869 = vpop.f32.mrf.mxu0
      %870 = vmatprep.mubr.bf16.mxu0 0
      %871 = vmatmul.mubr.bf16.gmra.mxu0 %v124
      %v872 = vpop.f32.mrf.mxu0
      %v873 = vadd.f32 %v728, %v872
      %v874 = vpop.f32.mrf.mxu0
      %v875 = vpop.f32.mrf.mxu0
      %v876 = vadd.f32 %v731, %v875
      %v877 = vpop.f32.mrf.mxu0
      %878 = vmatprep.mubr.bf16.mxu0 0
      %879 = vmatmul.mubr.bf16.gmra.mxu0 %v125
      %v880 = vpop.f32.mrf.mxu0
      %v881 = vadd.f32 %v736, %v880
      %v882 = vpop.f32.mrf.mxu0
      %v883 = vpop.f32.mrf.mxu0
      %v884 = vadd.f32 %v739, %v883
      %v885 = vpop.f32.mrf.mxu0
      %886 = vmatprep.mubr.bf16.mxu0 0
      %887 = vmatmul.mubr.bf16.gmra.mxu0 %v126
      %v888 = vpop.f32.mrf.mxu0
      %v889 = vadd.f32 %v744, %v888
      %v890 = vpop.f32.mrf.mxu0
      %v891 = vpop.f32.mrf.mxu0
      %v892 = vadd.f32 %v747, %v891
      %v893 = vpop.f32.mrf.mxu0
      %894 = vmatprep.mubr.bf16.mxu0 0
      %895 = vmatmul.mubr.bf16.gmra.mxu0 %v127
      %v896 = vpop.f32.mrf.mxu0
      %v897 = vadd.f32 %v752, %v896
      %v898 = vpop.f32.mrf.mxu0
      %v899 = vpop.f32.mrf.mxu0
      %v900 = vadd.f32 %v755, %v899
      %v901 = vpop.f32.mrf.mxu0
      %902 = vdwg.mxu0
      %v903 = vld [vmem:[%s4] sm:$0x1]
      %v905 = vlaneseq
      %v906 = vshrl.u32 %v905, 7
      %v907 = vsub.s32 0, %v906
      %v908 = vrot.slane %v903, %v907
      %v910 = vadd.f32 %v841, %v908
      %v911 = vadd.f32 %v844, %v908
      %v912 = vadd.f32 %v849, %v908
      %v913 = vadd.f32 %v852, %v908
      %v914 = vadd.f32 %v857, %v908
      %v915 = vadd.f32 %v860, %v908
      %v916 = vadd.f32 %v865, %v908
      %v917 = vadd.f32 %v868, %v908
      %v918 = vadd.f32 %v873, %v908
      %v919 = vadd.f32 %v876, %v908
      %v920 = vadd.f32 %v881, %v908
      %v921 = vadd.f32 %v884, %v908
      %v922 = vadd.f32 %v889, %v908
      %v923 = vadd.f32 %v892, %v908
      %v924 = vadd.f32 %v897, %v908
      %v925 = vadd.f32 %v900, %v908
      %v926 = vxor.u32 %v910, 2147483648
      %v927 = vxor.u32 %v911, 2147483648
      %v928 = vxor.u32 %v912, 2147483648
      %v929 = vxor.u32 %v913, 2147483648
      %v930 = vxor.u32 %v914, 2147483648
      %v931 = vxor.u32 %v915, 2147483648
      %v932 = vxor.u32 %v916, 2147483648
      %v933 = vxor.u32 %v917, 2147483648
      %v934 = vxor.u32 %v918, 2147483648
      %v935 = vxor.u32 %v919, 2147483648
      %v936 = vxor.u32 %v920, 2147483648
      %v937 = vxor.u32 %v921, 2147483648
      %v938 = vxor.u32 %v922, 2147483648
      %v939 = vxor.u32 %v923, 2147483648
      %v940 = vxor.u32 %v924, 2147483648
      %v941 = vxor.u32 %v925, 2147483648
      %v942 = vmul.f32 %v926, 1.442695
      %v943 = vpow.pop %v942
      %v944 = vmul.f32 %v927, 1.442695
      %v945 = vpow.pop %v944
      %v946 = vmul.f32 %v928, 1.442695
      %v947 = vpow.pop %v946
      %v948 = vmul.f32 %v929, 1.442695
      %v949 = vpow.pop %v948
      %v950 = vmul.f32 %v930, 1.442695
      %v951 = vpow.pop %v950
      %v952 = vmul.f32 %v931, 1.442695
      %v953 = vpow.pop %v952
      %v954 = vmul.f32 %v932, 1.442695
      %v955 = vpow.pop %v954
      %v956 = vmul.f32 %v933, 1.442695
      %v957 = vpow.pop %v956
      %v958 = vmul.f32 %v934, 1.442695
      %v959 = vpow.pop %v958
      %v960 = vmul.f32 %v935, 1.442695
      %v961 = vpow.pop %v960
      %v962 = vmul.f32 %v936, 1.442695
      %v963 = vpow.pop %v962
      %v964 = vmul.f32 %v937, 1.442695
      %v965 = vpow.pop %v964
      %v966 = vmul.f32 %v938, 1.442695
      %v967 = vpow.pop %v966
      %v968 = vmul.f32 %v939, 1.442695
      %v969 = vpow.pop %v968
      %v970 = vmul.f32 %v940, 1.442695
      %v971 = vpow.pop %v970
      %v972 = vmul.f32 %v941, 1.442695
      %v973 = vpow.pop %v972
      %v974 = vadd.f32 %v943, 1.0
      %v975 = vadd.f32 %v945, 1.0
      %v976 = vadd.f32 %v947, 1.0
      %v977 = vadd.f32 %v949, 1.0
      %v978 = vadd.f32 %v951, 1.0
      %v979 = vadd.f32 %v953, 1.0
      %v980 = vadd.f32 %v955, 1.0
      %v981 = vadd.f32 %v957, 1.0
      %v982 = vadd.f32 %v959, 1.0
      %v983 = vadd.f32 %v961, 1.0
      %v984 = vadd.f32 %v963, 1.0
      %v985 = vadd.f32 %v965, 1.0
      %v986 = vadd.f32 %v967, 1.0
      %v987 = vadd.f32 %v969, 1.0
      %v988 = vadd.f32 %v971, 1.0
      %v989 = vadd.f32 %v973, 1.0
      %v990 = vrcp.pop %v974
      %v991 = vmul.f32 1.0, %v990
      %v992 = vrcp.pop %v975
      %v993 = vmul.f32 1.0, %v992
      %v994 = vrcp.pop %v976
      %v995 = vmul.f32 1.0, %v994
      %v996 = vrcp.pop %v977
      %v997 = vmul.f32 1.0, %v996
      %v998 = vrcp.pop %v978
      %v999 = vmul.f32 1.0, %v998
      %v1000 = vrcp.pop %v979
      %v1001 = vmul.f32 1.0, %v1000
      %v1002 = vrcp.pop %v980
      %v1003 = vmul.f32 1.0, %v1002
      %v1004 = vrcp.pop %v981
      %v1005 = vmul.f32 1.0, %v1004
      %v1006 = vrcp.pop %v982
      %v1007 = vmul.f32 1.0, %v1006
      %v1008 = vrcp.pop %v983
      %v1009 = vmul.f32 1.0, %v1008
      %v1010 = vrcp.pop %v984
      %v1011 = vmul.f32 1.0, %v1010
      %v1012 = vrcp.pop %v985
      %v1013 = vmul.f32 1.0, %v1012
      %v1014 = vrcp.pop %v986
      %v1015 = vmul.f32 1.0, %v1014
      %v1016 = vrcp.pop %v987
      %v1017 = vmul.f32 1.0, %v1016
      %v1018 = vrcp.pop %v988
      %v1019 = vmul.f32 1.0, %v1018
      %v1020 = vrcp.pop %v989
      %v1021 = vmul.f32 1.0, %v1020
      %v1022 = vmul.f32 %v991, %v104
      %v1023 = vmul.f32 %v993, %v105
      %v1024 = vmul.f32 %v995, %v106
      %v1025 = vmul.f32 %v997, %v107
      %v1026 = vmul.f32 %v999, %v108
      %v1027 = vmul.f32 %v1001, %v109
      %v1028 = vmul.f32 %v1003, %v110
      %v1029 = vmul.f32 %v1005, %v111
      %v1030 = vmul.f32 %v1007, %v112
      %v1031 = vmul.f32 %v1009, %v113
      %v1032 = vmul.f32 %v1011, %v114
      %v1033 = vmul.f32 %v1013, %v115
      %v1034 = vmul.f32 %v1015, %v116
      %v1035 = vmul.f32 %v1017, %v117
      %v1036 = vmul.f32 %v1019, %v118
      %v1037 = vmul.f32 %v1021, %v119
      %v1038 = vsub.f32 1.0, %v991
      %v1039 = vsub.f32 1.0, %v993
      %v1040 = vsub.f32 1.0, %v995
      %v1041 = vsub.f32 1.0, %v997
      %v1042 = vsub.f32 1.0, %v999
      %v1043 = vsub.f32 1.0, %v1001
      %v1044 = vsub.f32 1.0, %v1003
      %v1045 = vsub.f32 1.0, %v1005
      %v1046 = vsub.f32 1.0, %v1007
      %v1047 = vsub.f32 1.0, %v1009
      %v1048 = vsub.f32 1.0, %v1011
      %v1049 = vsub.f32 1.0, %v1013
      %v1050 = vsub.f32 1.0, %v1015
      %v1051 = vsub.f32 1.0, %v1017
      %v1052 = vsub.f32 1.0, %v1019
      %v1053 = vsub.f32 1.0, %v1021
      %v1054 = vmul.f32 %v1038, %v511
      %v1055 = vmul.f32 %v1039, %v514
      %v1056 = vmul.f32 %v1040, %v519
      %v1057 = vmul.f32 %v1041, %v522
      %v1058 = vmul.f32 %v1042, %v527
      %v1059 = vmul.f32 %v1043, %v530
      %v1060 = vmul.f32 %v1044, %v535
      %v1061 = vmul.f32 %v1045, %v538
      %v1062 = vmul.f32 %v1046, %v543
      %v1063 = vmul.f32 %v1047, %v546
      %v1064 = vmul.f32 %v1048, %v551
      %v1065 = vmul.f32 %v1049, %v554
      %v1066 = vmul.f32 %v1050, %v559
      %v1067 = vmul.f32 %v1051, %v562
      %v1068 = vmul.f32 %v1052, %v567
      %v1069 = vmul.f32 %v1053, %v570
      %v1070 = vadd.f32 %v1022, %v1054
      %v1071 = vadd.f32 %v1023, %v1055
      %v1072 = vadd.f32 %v1024, %v1056
      %v1073 = vadd.f32 %v1025, %v1057
      %v1074 = vadd.f32 %v1026, %v1058
      %v1075 = vadd.f32 %v1027, %v1059
      %v1076 = vadd.f32 %v1028, %v1060
      %v1077 = vadd.f32 %v1029, %v1061
      %v1078 = vadd.f32 %v1030, %v1062
      %v1079 = vadd.f32 %v1031, %v1063
      %v1080 = vadd.f32 %v1032, %v1064
      %v1081 = vadd.f32 %v1033, %v1065
      %v1082 = vadd.f32 %v1034, %v1066
      %v1083 = vadd.f32 %v1035, %v1067
      %v1084 = vadd.f32 %v1036, %v1068
      %v1085 = vadd.f32 %v1037, %v1069
      %1086 = vst [vmem:[#allocation14] sm:$0xff] %v308
      %1087 = vst [vmem:[#allocation14 + $0x8] sm:$0xff] %v309
      %1088 = vst [vmem:[#allocation14 + $0x10] sm:$0xff] %v310
      %1089 = vst [vmem:[#allocation14 + $0x18] sm:$0xff] %v311
      %1090 = vst [vmem:[#allocation14 + $0x20] sm:$0xff] %v312
      %1091 = vst [vmem:[#allocation14 + $0x28] sm:$0xff] %v313
      %1092 = vst [vmem:[#allocation14 + $0x30] sm:$0xff] %v314
      %1093 = vst [vmem:[#allocation14 + $0x38] sm:$0xff] %v315
      %1094 = vst [vmem:[#allocation14 + $0x40] sm:$0xff] %v316
      %1095 = vst [vmem:[#allocation14 + $0x48] sm:$0xff] %v317
      %1096 = vst [vmem:[#allocation14 + $0x50] sm:$0xff] %v318
      %1097 = vst [vmem:[#allocation14 + $0x58] sm:$0xff] %v319
      %1098 = vst [vmem:[#allocation14 + $0x60] sm:$0xff] %v320
      %1099 = vst [vmem:[#allocation14 + $0x68] sm:$0xff] %v321
      %1100 = vst [vmem:[#allocation14 + $0x70] sm:$0xff] %v322
      %1101 = vst [vmem:[#allocation14 + $0x78] sm:$0xff] %v323
      %v1102 = vpack.c.bf16 %v1071, %v1070
      %v1103 = vpack.c.bf16 %v1073, %v1072
      %v1104 = vpack.c.bf16 %v1075, %v1074
      %v1105 = vpack.c.bf16 %v1077, %v1076
      %v1106 = vpack.c.bf16 %v1079, %v1078
      %v1107 = vpack.c.bf16 %v1081, %v1080
      %v1108 = vpack.c.bf16 %v1083, %v1082
      %v1109 = vpack.c.bf16 %v1085, %v1084
      %v1118 = vunpack.c.l.b16 %v1102
      %v1119 = vunpack.c.h.b16 %v1102
      %v1120 = vunpack.c.l.b16 %v1103
      %v1121 = vunpack.c.h.b16 %v1103
      %v1122 = vunpack.c.l.b16 %v1104
      %v1123 = vunpack.c.h.b16 %v1104
      %v1124 = vunpack.c.l.b16 %v1105
      %v1125 = vunpack.c.h.b16 %v1105
      %v1126 = vunpack.c.l.b16 %v1106
      %v1127 = vunpack.c.h.b16 %v1106
      %v1128 = vunpack.c.l.b16 %v1107
      %v1129 = vunpack.c.h.b16 %v1107
      %v1130 = vunpack.c.l.b16 %v1108
      %v1131 = vunpack.c.h.b16 %v1108
      %v1132 = vunpack.c.l.b16 %v1109
      %v1133 = vunpack.c.h.b16 %v1109
      %v1134 = vpack.c.b16 %v1118, %v1118
      %v1135 = vpack.c.b16 %v1119, %v1119
      %v1136 = vpack.c.b16 %v1120, %v1120
      %v1137 = vpack.c.b16 %v1121, %v1121
      %v1138 = vpack.c.b16 %v1122, %v1122
      %v1139 = vpack.c.b16 %v1123, %v1123
      %v1140 = vpack.c.b16 %v1124, %v1124
      %v1141 = vpack.c.b16 %v1125, %v1125
      %v1142 = vpack.c.b16 %v1126, %v1126
      %v1143 = vpack.c.b16 %v1127, %v1127
      %v1144 = vpack.c.b16 %v1128, %v1128
      %v1145 = vpack.c.b16 %v1129, %v1129
      %v1146 = vpack.c.b16 %v1130, %v1130
      %v1147 = vpack.c.b16 %v1131, %v1131
      %v1148 = vpack.c.b16 %v1132, %v1132
      %v1149 = vpack.c.b16 %v1133, %v1133
      %1166 = vst [vmem:[#allocation12] sm:$0xf] %v1134
      %1167 = vst [vmem:[#allocation12 + $0x4] sm:$0xf] %v1135
      %1168 = vst [vmem:[#allocation12 + $0x8] sm:$0xf] %v1136
      %1169 = vst [vmem:[#allocation12 + $0xc] sm:$0xf] %v1137
      %1170 = vst [vmem:[#allocation12 + $0x10] sm:$0xf] %v1138
      %1171 = vst [vmem:[#allocation12 + $0x14] sm:$0xf] %v1139
      %1172 = vst [vmem:[#allocation12 + $0x18] sm:$0xf] %v1140
      %1173 = vst [vmem:[#allocation12 + $0x1c] sm:$0xf] %v1141
      %1174 = vst [vmem:[#allocation12 + $0x20] sm:$0xf] %v1142
      %1175 = vst [vmem:[#allocation12 + $0x24] sm:$0xf] %v1143
      %1176 = vst [vmem:[#allocation12 + $0x28] sm:$0xf] %v1144
      %1177 = vst [vmem:[#allocation12 + $0x2c] sm:$0xf] %v1145
      %1178 = vst [vmem:[#allocation12 + $0x30] sm:$0xf] %v1146
      %1179 = vst [vmem:[#allocation12 + $0x34] sm:$0xf] %v1147
      %1180 = vst [vmem:[#allocation12 + $0x38] sm:$0xf] %v1148
      %1181 = vst [vmem:[#allocation12 + $0x3c] sm:$0xf] %v1149
    $region53: #{tpu_custom_call.1} parent=1 // pred_fallthru
      _
    %v1182 = vld [vmem:[#allocation12] sm:$0xf]
    %v1183 = vld [vmem:[#allocation12 + $0x4] sm:$0xf]
    %v1184 = vld [vmem:[#allocation12 + $0x8] sm:$0xf]
    %v1185 = vld [vmem:[#allocation12 + $0xc] sm:$0xf]
    %v1186 = vld [vmem:[#allocation12 + $0x10] sm:$0xf]
    %v1187 = vld [vmem:[#allocation12 + $0x14] sm:$0xf]
    %v1188 = vld [vmem:[#allocation12 + $0x18] sm:$0xf]
    %v1189 = vld [vmem:[#allocation12 + $0x1c] sm:$0xf]
    %v1190 = vld [vmem:[#allocation12 + $0x20] sm:$0xf]
    %v1191 = vld [vmem:[#allocation12 + $0x24] sm:$0xf]
    %v1192 = vld [vmem:[#allocation12 + $0x28] sm:$0xf]
    %v1193 = vld [vmem:[#allocation12 + $0x2c] sm:$0xf]
    %v1194 = vld [vmem:[#allocation12 + $0x30] sm:$0xf]
    %v1195 = vld [vmem:[#allocation12 + $0x34] sm:$0xf]
    %v1196 = vld [vmem:[#allocation12 + $0x38] sm:$0xf]
    %v1197 = vld [vmem:[#allocation12 + $0x3c] sm:$0xf]
    %v1198 = vld [vmem:[#allocation10] sm:$0xf]
    %v1199 = vld [vmem:[#allocation10 + $0x4] sm:$0xf]
    %v1200 = vld [vmem:[#allocation10 + $0x8] sm:$0xf]
    %v1201 = vld [vmem:[#allocation10 + $0xc] sm:$0xf]
    %v1202 = vld [vmem:[#allocation10 + $0x10] sm:$0xf]
    %v1203 = vld [vmem:[#allocation10 + $0x14] sm:$0xf]
    %v1204 = vld [vmem:[#allocation10 + $0x18] sm:$0xf]
    %v1205 = vld [vmem:[#allocation10 + $0x1c] sm:$0xf]
    %v1206 = vld [vmem:[#allocation10 + $0x20] sm:$0xf]
    %v1207 = vld [vmem:[#allocation10 + $0x24] sm:$0xf]
    %v1208 = vld [vmem:[#allocation10 + $0x28] sm:$0xf]
    %v1209 = vld [vmem:[#allocation10 + $0x2c] sm:$0xf]
    %v1210 = vld [vmem:[#allocation10 + $0x30] sm:$0xf]
    %v1211 = vld [vmem:[#allocation10 + $0x34] sm:$0xf]
    %v1212 = vld [vmem:[#allocation10 + $0x38] sm:$0xf]
    %v1213 = vld [vmem:[#allocation10 + $0x3c] sm:$0xf]
    %v1214 = vld [vmem:[%s6] sm:$0x1]
    %v1216 = vlaneseq
    %v1217 = vshrl.u32 %v1216, 7
    %v1218 = vsub.s32 0, %v1217
    %v1219 = vrot.slane %v1214, %v1218
    %v1237 = vunpack.c.l.b16 %v1182
    %v1238 = vunpack.c.l.b16 %v1183
    %v1239 = vunpack.c.l.b16 %v1184
    %v1240 = vunpack.c.l.b16 %v1185
    %v1241 = vunpack.c.l.b16 %v1186
    %v1242 = vunpack.c.l.b16 %v1187
    %v1243 = vunpack.c.l.b16 %v1188
    %v1244 = vunpack.c.l.b16 %v1189
    %v1245 = vunpack.c.l.b16 %v1190
    %v1246 = vunpack.c.l.b16 %v1191
    %v1247 = vunpack.c.l.b16 %v1192
    %v1248 = vunpack.c.l.b16 %v1193
    %v1249 = vunpack.c.l.b16 %v1194
    %v1250 = vunpack.c.l.b16 %v1195
    %v1251 = vunpack.c.l.b16 %v1196
    %v1252 = vunpack.c.l.b16 %v1197
    %v1253 = vpack.c.b16 %v1238, %v1237
    %v1254 = vpack.c.b16 %v1240, %v1239
    %v1255 = vpack.c.b16 %v1242, %v1241
    %v1256 = vpack.c.b16 %v1244, %v1243
    %v1257 = vpack.c.b16 %v1246, %v1245
    %v1258 = vpack.c.b16 %v1248, %v1247
    %v1259 = vpack.c.b16 %v1250, %v1249
    %v1260 = vpack.c.b16 %v1252, %v1251
    %v1285 = vunpack.c.l.b16 %v1198
    %v1286 = vunpack.c.l.b16 %v1199
    %v1287 = vunpack.c.l.b16 %v1200
    %v1288 = vunpack.c.l.b16 %v1201
    %v1289 = vunpack.c.l.b16 %v1202
    %v1290 = vunpack.c.l.b16 %v1203
    %v1291 = vunpack.c.l.b16 %v1204
    %v1292 = vunpack.c.l.b16 %v1205
    %v1293 = vunpack.c.l.b16 %v1206
    %v1294 = vunpack.c.l.b16 %v1207
    %v1295 = vunpack.c.l.b16 %v1208
    %v1296 = vunpack.c.l.b16 %v1209
    %v1297 = vunpack.c.l.b16 %v1210
    %v1298 = vunpack.c.l.b16 %v1211
    %v1299 = vunpack.c.l.b16 %v1212
    %v1300 = vunpack.c.l.b16 %v1213
    %v1301 = vpack.c.b16 %v1286, %v1285
    %v1302 = vpack.c.b16 %v1288, %v1287
    %v1303 = vpack.c.b16 %v1290, %v1289
    %v1304 = vpack.c.b16 %v1292, %v1291
    %v1305 = vpack.c.b16 %v1294, %v1293
    %v1306 = vpack.c.b16 %v1296, %v1295
    %v1307 = vpack.c.b16 %v1298, %v1297
    %v1308 = vpack.c.b16 %v1300, %v1299
    %1317 = vmatprep.subr.bf16.mxu0 0
    %1318 = vmatpush1.bf16.msra.mxu0 %v1308
    %1319 = vmatprep.subr.bf16.mxu0 0
    %1320 = vmatpush1.bf16.msra.mxu0 %v1307
    %1321 = vmatprep.subr.bf16.mxu0 0
    %1322 = vmatpush1.bf16.msra.mxu0 %v1306
    %1323 = vmatprep.subr.bf16.mxu0 0
    %1324 = vmatpush1.bf16.msra.mxu0 %v1305
    %1325 = vmatprep.subr.bf16.mxu0 0
    %1326 = vmatpush1.bf16.msra.mxu0 %v1304
    %1327 = vmatprep.subr.bf16.mxu0 0
    %1328 = vmatpush1.bf16.msra.mxu0 %v1303
    %1329 = vmatprep.subr.bf16.mxu0 0
    %1330 = vmatpush1.bf16.msra.mxu0 %v1302
    %1331 = vmatprep.subr.bf16.mxu0 0
    %1332 = vmatpush1.bf16.msra.mxu0 %v1301
    %1333 = vmatprep.subr.bf16.mxu0 0
    %1334 = vmatpush2.bf16.msra.mxu0 0
    %1335 = vmatprep.subr.bf16.mxu0 0
    %1336 = vmatpush2.bf16.msra.mxu0 0
    %1337 = vmatprep.subr.bf16.mxu0 0
    %1338 = vmatpush2.bf16.msra.mxu0 0
    %1339 = vmatprep.subr.bf16.mxu0 0
    %1340 = vmatpush2.bf16.msra.mxu0 0
    %1341 = vmatprep.subr.bf16.mxu0 0
    %1342 = vmatpush2.bf16.msra.mxu0 0
    %1343 = vmatprep.subr.bf16.mxu0 0
    %1344 = vmatpush2.bf16.msra.mxu0 0
    %1345 = vmatprep.subr.bf16.mxu0 0
    %1346 = vmatpush2.bf16.msra.mxu0 0
    %1347 = vmatprep.subr.bf16.mxu0 0
    %1348 = vmatpush2.bf16.msra.mxu0 0
    %1349 = vmatprep.mubr.bf16.mxu0 0
    %1350 = vmatmul.mubr.bf16.gmra.mxu0 %v1253
    %v1351 = vpop.f32.mrf.mxu0
    %v1352 = vadd.f32 %v1219, %v1351
    %v1353 = vpop.f32.mrf.mxu0
    %v1354 = vpop.f32.mrf.mxu0
    %v1355 = vadd.f32 %v1219, %v1354
    %v1356 = vpop.f32.mrf.mxu0
    %1357 = vmatprep.mubr.bf16.mxu0 0
    %1358 = vmatmul.mubr.bf16.gmra.mxu0 %v1254
    %v1359 = vpop.f32.mrf.mxu0
    %v1360 = vadd.f32 %v1219, %v1359
    %v1361 = vpop.f32.mrf.mxu0
    %v1362 = vpop.f32.mrf.mxu0
    %v1363 = vadd.f32 %v1219, %v1362
    %v1364 = vpop.f32.mrf.mxu0
    %1365 = vmatprep.mubr.bf16.mxu0 0
    %1366 = vmatmul.mubr.bf16.gmra.mxu0 %v1255
    %v1367 = vpop.f32.mrf.mxu0
    %v1368 = vadd.f32 %v1219, %v1367
    %v1369 = vpop.f32.mrf.mxu0
    %v1370 = vpop.f32.mrf.mxu0
    %v1371 = vadd.f32 %v1219, %v1370
    %v1372 = vpop.f32.mrf.mxu0
    %1373 = vmatprep.mubr.bf16.mxu0 0
    %1374 = vmatmul.mubr.bf16.gmra.mxu0 %v1256
    %v1375 = vpop.f32.mrf.mxu0
    %v1376 = vadd.f32 %v1219, %v1375
    %v1377 = vpop.f32.mrf.mxu0
    %v1378 = vpop.f32.mrf.mxu0
    %v1379 = vadd.f32 %v1219, %v1378
    %v1380 = vpop.f32.mrf.mxu0
    %1381 = vmatprep.mubr.bf16.mxu0 0
    %1382 = vmatmul.mubr.bf16.gmra.mxu0 %v1257
    %v1383 = vpop.f32.mrf.mxu0
    %v1384 = vadd.f32 %v1219, %v1383
    %v1385 = vpop.f32.mrf.mxu0
    %v1386 = vpop.f32.mrf.mxu0
    %v1387 = vadd.f32 %v1219, %v1386
    %v1388 = vpop.f32.mrf.mxu0
    %1389 = vmatprep.mubr.bf16.mxu0 0
    %1390 = vmatmul.mubr.bf16.gmra.mxu0 %v1258
    %v1391 = vpop.f32.mrf.mxu0
    %v1392 = vadd.f32 %v1219, %v1391
    %v1393 = vpop.f32.mrf.mxu0
    %v1394 = vpop.f32.mrf.mxu0
    %v1395 = vadd.f32 %v1219, %v1394
    %v1396 = vpop.f32.mrf.mxu0
    %1397 = vmatprep.mubr.bf16.mxu0 0
    %1398 = vmatmul.mubr.bf16.gmra.mxu0 %v1259
    %v1399 = vpop.f32.mrf.mxu0
    %v1400 = vadd.f32 %v1219, %v1399
    %v1401 = vpop.f32.mrf.mxu0
    %v1402 = vpop.f32.mrf.mxu0
    %v1403 = vadd.f32 %v1219, %v1402
    %v1404 = vpop.f32.mrf.mxu0
    %1405 = vmatprep.mubr.bf16.mxu0 0
    %1406 = vmatmul.mubr.bf16.gmra.mxu0 %v1260
    %v1407 = vpop.f32.mrf.mxu0
    %v1408 = vadd.f32 %v1219, %v1407
    %v1409 = vpop.f32.mrf.mxu0
    %v1410 = vpop.f32.mrf.mxu0
    %v1411 = vadd.f32 %v1219, %v1410
    %v1412 = vpop.f32.mrf.mxu0
    %1413 = vdwg.mxu0
    %1414 = vst [vmem:[#allocation11] sm:$0xff] %v1352
    %1415 = vst [vmem:[#allocation11 + $0x8] sm:$0xff] %v1355
    %1416 = vst [vmem:[#allocation11 + $0x10] sm:$0xff] %v1360
    %1417 = vst [vmem:[#allocation11 + $0x18] sm:$0xff] %v1363
    %1418 = vst [vmem:[#allocation11 + $0x20] sm:$0xff] %v1368
    %1419 = vst [vmem:[#allocation11 + $0x28] sm:$0xff] %v1371
    %1420 = vst [vmem:[#allocation11 + $0x30] sm:$0xff] %v1376
    %1421 = vst [vmem:[#allocation11 + $0x38] sm:$0xff] %v1379
    %1422 = vst [vmem:[#allocation11 + $0x40] sm:$0xff] %v1384
    %1423 = vst [vmem:[#allocation11 + $0x48] sm:$0xff] %v1387
    %1424 = vst [vmem:[#allocation11 + $0x50] sm:$0xff] %v1392
    %1425 = vst [vmem:[#allocation11 + $0x58] sm:$0xff] %v1395
    %1426 = vst [vmem:[#allocation11 + $0x60] sm:$0xff] %v1400
    %1427 = vst [vmem:[#allocation11 + $0x68] sm:$0xff] %v1403
    %1428 = vst [vmem:[#allocation11 + $0x70] sm:$0xff] %v1408
    %1429 = vst [vmem:[#allocation11 + $0x78] sm:$0xff] %v1411
    // Predicated region
    $region54: #{tpu_custom_call.1} parent=1 // pred_check
      _
    $region55: #{tpu_custom_call.1} parent=1 // pred_check_branch
      %1431 = sbr.rel (0) target = $region57
    $region56: #{tpu_custom_call.1} parent=1 // pred_region
      %s1433 = ssub.s32 2048, 2048
      %1434 = vsyncadd [#allocation4], %s1433
      %s1435 = sshll.u32 [#allocation11], 4
      %s1436 = int_to_ptr.vmem [resolvable:$true] %s1435
      %1441 = dma.vmem_to_hbm [thread:$0]  %s1436, 2048, %s7, [#allocation4], 128, 128, 8
    $region57: #{tpu_custom_call.1} parent=1 // pred_fallthru
      _
    // Predicated region
    $region58: #{tpu_custom_call.1} parent=1 // pred_check
      _
    $region59: #{tpu_custom_call.1} parent=1 // pred_check_branch
      %1443 = sbr.rel (0) target = $region61
    $region60: #{tpu_custom_call.1} parent=1 // pred_region
      %s1445 = ssub.s32 1024, 1024
      %1446 = vsyncadd [#allocation13], %s1445
      %s1447 = sshll.u32 [#allocation12], 4
      %s1448 = int_to_ptr.vmem [resolvable:$true] %s1447
      %1453 = dma.vmem_to_hbm [thread:$0]  %s1448, 1024, %s8, [#allocation13], 64, 64, 4
    $region61: #{tpu_custom_call.1} parent=1 // pred_fallthru
      _
    // Predicated region
    $region62: #{tpu_custom_call.1} parent=1 // pred_check
      _
    $region63: #{tpu_custom_call.1} parent=1 // pred_check_branch
      %1455 = sbr.rel (0) target = $region65
    $region64: #{tpu_custom_call.1} parent=1 // pred_region
      %s1457 = ssub.s32 2048, 2048
      %1458 = vsyncadd [#allocation13], %s1457
      %s1459 = sshll.u32 [#allocation14], 4
      %s1460 = int_to_ptr.vmem [resolvable:$true] %s1459
      %1465 = dma.vmem_to_hbm [thread:$0]  %s1460, 2048, %s9, [#allocation13], 128, 128, 8
    $region65: #{tpu_custom_call.1} parent=1 // pred_fallthru
      _
    // Predicated region
    $region66: #{tpu_custom_call.1} parent=1 // pred_check
      _
    $region67: #{tpu_custom_call.1} parent=1 // pred_check_branch
      %1467 = sbr.rel (0) target = $region69
    $region68: #{tpu_custom_call.1} parent=1 // pred_region
      %1468 = dma.done [#allocation4], 2048
    $region69: #{tpu_custom_call.1} parent=1 // pred_fallthru
      _
    // Predicated region
    $region70: #{tpu_custom_call.1} parent=1 // pred_check
      _
    $region71: #{tpu_custom_call.1} parent=1 // pred_check_branch
      %1470 = sbr.rel (0) target = $region73
    $region72: #{tpu_custom_call.1} parent=1 // pred_region
      %1471 = dma.done [#allocation13], 1024
    $region73: #{tpu_custom_call.1} parent=1 // pred_fallthru
      _
    // Predicated region
    $region74: #{tpu_custom_call.1} parent=1 // pred_check
      _
    $region75: #{tpu_custom_call.1} parent=1 // pred_check_branch
      %1473 = sbr.rel (0) target = $region77
    $region76: #{tpu_custom_call.1} parent=1 // pred_region
      %1474 = dma.done [#allocation13], 2048
    $region77: #{tpu_custom_call.1} parent=1 // pred_fallthru
      _
    %1475 = vsyncpa [#allocation3], 1
    %1476 = vsyncpa [#allocation6], 1
    %1477 = vsyncpa [#allocation9], 1
    %1478 = vsyncpa [#allocation4], 1
    %1479 = vsyncpa [#allocation13], 1

// kernel: tpu_custom_call.1
$region0: #{tpu_custom_call.1}
  #allocation0 [shape = 'u32[]', space=smem, size = 0x4, offset = 0x4, fixed_abs, tag = 'smem constant byte address 0x4 - core index']
  #allocation1 [shape = 'u32[144,128]{1,0:T(1,128)}', space=vmem, size = 0x12000, scoped, tag = 'internal scratch']
  %s0 = inlined_call_operand.hbm [shape: f32[128,128], index: 0, kind: input, shape index: {}]
  %s1 = inlined_call_operand.hbm [shape: bf16[128,128], index: 1, kind: input, shape index: {}]
  %s2 = inlined_call_operand.hbm [shape: bf16[128,128], index: 2, kind: input, shape index: {}]
  %s3 = inlined_call_operand.hbm [shape: bf16[128,128], index: 3, kind: input, shape index: {}]
  %s4 = inlined_call_operand.vmem [shape: f32[1,128], index: 4, kind: input, shape index: {}]
  %s5 = inlined_call_operand.hbm [shape: bf16[128,128], index: 5, kind: input, shape index: {}]
  %s6 = inlined_call_operand.vmem [shape: f32[1,128], index: 6, kind: input, shape index: {}]
  %s7 = inlined_call_operand.hbm [shape: f32[128,128], index: 7, kind: output, shape index: {0}]
  %s8 = inlined_call_operand.hbm [shape: bf16[128,128], index: 8, kind: output, shape index: {1}]
  %s9 = inlined_call_operand.hbm [shape: f32[128,128], index: 9, kind: output, shape index: {2}]
  %10 = xla_tuple %s7, %s8, %s9
  %s11 = sld [smem:[#allocation0]]
  $region78: #{tpu_custom_call.1} parent=0
    _
  %s13 = ssub.s32 1, %s11
  %s14 = scalar_select 0, %s13, %s11
  $region1: #{tpu_custom_call.1} parent=0
    #allocation2 [shape = 'u8[65536]{0}', space=vmem, size = 0x10000, scoped, tag = 'input window, operand 0, single buffered']
    #allocation3 [shape = 's32[1]{0}', space=sflag, size = 0x4, scoped, tag = 'scoped memory for tpu_custom_call.1']
    #allocation4 [shape = 's32[1]{0}', space=sflag, size = 0x4, scoped, tag = 'scoped memory for tpu_custom_call.1']
    #allocation5 [shape = 'u8[32768]{0}', space=vmem, size = 0x8000, scoped, tag = 'input window, operand 1, single buffered']
    #allocation6 [shape = 's32[1]{0}', space=sflag, size = 0x4, scoped, tag = 'scoped memory for tpu_custom_call.1']
    #allocation7 [shape = 'u8[32768]{0}', space=vmem, size = 0x8000, scoped, tag = 'input window, operand 2, single buffered']
    #allocation8 [shape = 'u8[32768]{0}', space=vmem, size = 0x8000, scoped, tag = 'input window, operand 3, single buffered']
    #allocation9 [shape = 's32[1]{0}', space=sflag, size = 0x4, scoped, tag = 'scoped memory for tpu_custom_call.1']
    #allocation10 [shape = 'u8[32768]{0}', space=vmem, size = 0x8000, scoped, tag = 'input window, operand 5, single buffered']
    #allocation11 [shape = 'u8[65536]{0}', space=vmem, size = 0x10000, scoped, tag = 'output window, operand 0, single buffered']
    #allocation12 [shape = 'u8[32768]{0}', space=vmem, size = 0x8000, scoped, tag = 'output window, operand 1, single buffered']
    #allocation13 [shape = 's32[1]{0}', space=sflag, size = 0x4, scoped, tag = 'scoped memory for tpu_custom_call.1']
    #allocation14 [shape = 'u8[65536]{0}', space=vmem, size = 0x10000, scoped, tag = 'output window, operand 2, single buffered']
    %15 = vsyncpa [#allocation3], 0
    %16 = vsyncpa [#allocation6], 0
    %17 = vsyncpa [#allocation9], 0
    %18 = vsyncpa [#allocation4], 0
    %19 = vsyncpa [#allocation13], 0
    // Predicated region
    $region2: #{tpu_custom_call.1} parent=1 // pred_check
      _
    $region3: #{tpu_custom_call.1} parent=1 // pred_check_branch
      %21 = sbr.rel (0) target = $region5
    $region4: #{tpu_custom_call.1} parent=1 // pred_region
      %s23 = ssub.s32 2048, 2048
      %24 = vsyncadd [#allocation3], %s23
      %s25 = sshll.u32 [#allocation2], 4
      %s26 = int_to_ptr.vmem [resolvable:$true] %s25
      %31 = dma.hbm_to_vmem [thread:$0]  %s0, 2048, %s26, [#allocation3], 128, 128, 8
    $region5: #{tpu_custom_call.1} parent=1 // pred_fallthru
      _
    // Predicated region
    $region6: #{tpu_custom_call.1} parent=1 // pred_check
      _
    $region7: #{tpu_custom_call.1} parent=1 // pred_check_branch
      %33 = sbr.rel (0) target = $region9
    $region8: #{tpu_custom_call.1} parent=1 // pred_region
      %s35 = ssub.s32 1024, 1024
      %36 = vsyncadd [#allocation6], %s35
      %s37 = sshll.u32 [#allocation5], 4
      %s38 = int_to_ptr.vmem [resolvable:$true] %s37
      %43 = dma.hbm_to_vmem [thread:$0]  %s1, 1024, %s38, [#allocation6], 64, 64, 4
    $region9: #{tpu_custom_call.1} parent=1 // pred_fallthru
      _
    // Predicated region
    $region10: #{tpu_custom_call.1} parent=1 // pred_check
      _
    $region11: #{tpu_custom_call.1} parent=1 // pred_check_branch
      %45 = sbr.rel (0) target = $region13
    $region12: #{tpu_custom_call.1} parent=1 // pred_region
      %s47 = ssub.s32 1024, 1024
      %48 = vsyncadd [#allocation6], %s47
      %s49 = sshll.u32 [#allocation7], 4
      %s50 = int_to_ptr.vmem [resolvable:$true] %s49
      %55 = dma.hbm_to_vmem [thread:$0]  %s2, 1024, %s50, [#allocation6], 64, 64, 4
    $region13: #{tpu_custom_call.1} parent=1 // pred_fallthru
      _
    // Predicated region
    $region14: #{tpu_custom_call.1} parent=1 // pred_check
      _
    $region15: #{tpu_custom_call.1} parent=1 // pred_check_branch
      %57 = sbr.rel (0) target = $region17
    $region16: #{tpu_custom_call.1} parent=1 // pred_region
      %s59 = ssub.s32 1024, 1024
      %60 = vsyncadd [#allocation9], %s59
      %s61 = sshll.u32 [#allocation8], 4
      %s62 = int_to_ptr.vmem [resolvable:$true] %s61
      %67 = dma.hbm_to_vmem [thread:$0]  %s3, 1024, %s62, [#allocation9], 64, 64, 4
    $region17: #{tpu_custom_call.1} parent=1 // pred_fallthru
      _
    // Predicated region
    $region18: #{tpu_custom_call.1} parent=1 // pred_check
      _
    $region19: #{tpu_custom_call.1} parent=1 // pred_check_branch
      %69 = sbr.rel (0) target = $region21
    $region20: #{tpu_custom_call.1} parent=1 // pred_region
      _
    $region21: #{tpu_custom_call.1} parent=1 // pred_fallthru
      _
    // Predicated region
    $region22: #{tpu_custom_call.1} parent=1 // pred_check
      _
    $region23: #{tpu_custom_call.1} parent=1 // pred_check_branch
      %71 = sbr.rel (0) target = $region25
    $region24: #{tpu_custom_call.1} parent=1 // pred_region
      %s73 = ssub.s32 1024, 1024
      %74 = vsyncadd [#allocation9], %s73
      %s75 = sshll.u32 [#allocation10], 4
      %s76 = int_to_ptr.vmem [resolvable:$true] %s75
      %81 = dma.hbm_to_vmem [thread:$0]  %s5, 1024, %s76, [#allocation9], 64, 64, 4
    $region25: #{tpu_custom_call.1} parent=1 // pred_fallthru
      _
    // Predicated region
    $region26: #{tpu_custom_call.1} parent=1 // pred_check
      _
    $region27: #{tpu_custom_call.1} parent=1 // pred_check_branch
      %83 = sbr.rel (0) target = $region29
    $region28: #{tpu_custom_call.1} parent=1 // pred_region
      _
    $region29: #{tpu_custom_call.1} parent=1 // pred_fallthru
      _
    // Predicated region
    $region30: #{tpu_custom_call.1} parent=1 // pred_check
      _
    $region31: #{tpu_custom_call.1} parent=1 // pred_check_branch
      %85 = sbr.rel (0) target = $region33
    $region32: #{tpu_custom_call.1} parent=1 // pred_region
      %86 = dma.done [#allocation3], 2048
    $region33: #{tpu_custom_call.1} parent=1 // pred_fallthru
      _
    // Predicated region
    $region34: #{tpu_custom_call.1} parent=1 // pred_check
      _
    $region35: #{tpu_custom_call.1} parent=1 // pred_check_branch
      %88 = sbr.rel (0) target = $region37
    $region36: #{tpu_custom_call.1} parent=1 // pred_region
      %89 = dma.done [#allocation6], 1024
    $region37: #{tpu_custom_call.1} parent=1 // pred_fallthru
      _
    // Predicated region
    $region38: #{tpu_custom_call.1} parent=1 // pred_check
      _
    $region39: #{tpu_custom_call.1} parent=1 // pred_check_branch
      %91 = sbr.rel (0) target = $region41
    $region40: #{tpu_custom_call.1} parent=1 // pred_region
      %92 = dma.done [#allocation6], 1024
    $region41: #{tpu_custom_call.1} parent=1 // pred_fallthru
      _
    // Predicated region
    $region42: #{tpu_custom_call.1} parent=1 // pred_check
      _
    $region43: #{tpu_custom_call.1} parent=1 // pred_check_branch
      %94 = sbr.rel (0) target = $region45
    $region44: #{tpu_custom_call.1} parent=1 // pred_region
      %95 = dma.done [#allocation9], 1024
    $region45: #{tpu_custom_call.1} parent=1 // pred_fallthru
      _
    // Predicated region
    $region46: #{tpu_custom_call.1} parent=1 // pred_check
      _
    $region47: #{tpu_custom_call.1} parent=1 // pred_check_branch
      %97 = sbr.rel (0) target = $region49
    $region48: #{tpu_custom_call.1} parent=1 // pred_region
      %98 = dma.done [#allocation9], 1024
    $region49: #{tpu_custom_call.1} parent=1 // pred_fallthru
      _
    %p100 = scmp.eq.s32.totalorder 0, 0
    // Predicated region
    $region50: #{tpu_custom_call.1} parent=1 // pred_check
      %p101 = pneg %p100
    $region51: #{tpu_custom_call.1} parent=1 // pred_check_branch
      %103 = sbr.rel (%p101) target = $region53
    $region52: #{tpu_custom_call.1} parent=1 // pred_region
      %v104 = vld [vmem:[#allocation2] sm:$0xff]
      %v105 = vld [vmem:[#allocation2 + $0x8] sm:$0xff]
      %v106 = vld [vmem:[#allocation2 + $0x10] sm:$0xff]
      %v107 = vld [vmem:[#allocation2 + $0x18] sm:$0xff]
      %v108 = vld [vmem:[#allocation2 + $0x20] sm:$0xff]
      %v109 = vld [vmem:[#allocation2 + $0x28] sm:$0xff]
      %v110 = vld [vmem:[#allocation2 + $0x30] sm:$0xff]
      %v111 = vld [vmem:[#allocation2 + $0x38] sm:$0xff]
      %v112 = vld [vmem:[#allocation2 + $0x40] sm:$0xff]
      %v113 = vld [vmem:[#allocation2 + $0x48] sm:$0xff]
      %v114 = vld [vmem:[#allocation2 + $0x50] sm:$0xff]
      %v115 = vld [vmem:[#allocation2 + $0x58] sm:$0xff]
      %v116 = vld [vmem:[#allocation2 + $0x60] sm:$0xff]
      %v117 = vld [vmem:[#allocation2 + $0x68] sm:$0xff]
      %v118 = vld [vmem:[#allocation2 + $0x70] sm:$0xff]
      %v119 = vld [vmem:[#allocation2 + $0x78] sm:$0xff]
      %v120 = vpack.c.bf16 %v105, %v104
      %v121 = vpack.c.bf16 %v107, %v106
      %v122 = vpack.c.bf16 %v109, %v108
      %v123 = vpack.c.bf16 %v111, %v110
      %v124 = vpack.c.bf16 %v113, %v112
      %v125 = vpack.c.bf16 %v115, %v114
      %v126 = vpack.c.bf16 %v117, %v116
      %v127 = vpack.c.bf16 %v119, %v118
      %v128 = vld [vmem:[#allocation5] sm:$0xf]
      %v129 = vld [vmem:[#allocation5 + $0x4] sm:$0xf]
      %v130 = vld [vmem:[#allocation5 + $0x8] sm:$0xf]
      %v131 = vld [vmem:[#allocation5 + $0xc] sm:$0xf]
      %v132 = vld [vmem:[#allocation5 + $0x10] sm:$0xf]
      %v133 = vld [vmem:[#allocation5 + $0x14] sm:$0xf]
      %v134 = vld [vmem:[#allocation5 + $0x18] sm:$0xf]
      %v135 = vld [vmem:[#allocation5 + $0x1c] sm:$0xf]
      %v136 = vld [vmem:[#allocation5 + $0x20] sm:$0xf]
      %v137 = vld [vmem:[#allocation5 + $0x24] sm:$0xf]
      %v138 = vld [vmem:[#allocation5 + $0x28] sm:$0xf]
      %v139 = vld [vmem:[#allocation5 + $0x2c] sm:$0xf]
      %v140 = vld [vmem:[#allocation5 + $0x30] sm:$0xf]
      %v141 = vld [vmem:[#allocation5 + $0x34] sm:$0xf]
      %v142 = vld [vmem:[#allocation5 + $0x38] sm:$0xf]
      %v143 = vld [vmem:[#allocation5 + $0x3c] sm:$0xf]
      %v160 = vunpack.c.l.b16 %v128
      %v161 = vunpack.c.l.b16 %v129
      %v162 = vunpack.c.l.b16 %v130
      %v163 = vunpack.c.l.b16 %v131
      %v164 = vunpack.c.l.b16 %v132
      %v165 = vunpack.c.l.b16 %v133
      %v166 = vunpack.c.l.b16 %v134
      %v167 = vunpack.c.l.b16 %v135
      %v168 = vunpack.c.l.b16 %v136
      %v169 = vunpack.c.l.b16 %v137
      %v170 = vunpack.c.l.b16 %v138
      %v171 = vunpack.c.l.b16 %v139
      %v172 = vunpack.c.l.b16 %v140
      %v173 = vunpack.c.l.b16 %v141
      %v174 = vunpack.c.l.b16 %v142
      %v175 = vunpack.c.l.b16 %v143
      %v176 = vpack.c.b16 %v161, %v160
      %v177 = vpack.c.b16 %v163, %v162
      %v178 = vpack.c.b16 %v165, %v164
      %v179 = vpack.c.b16 %v167, %v166
      %v180 = vpack.c.b16 %v169, %v168
      %v181 = vpack.c.b16 %v171, %v170
      %v182 = vpack.c.b16 %v173, %v172
      %v183 = vpack.c.b16 %v175, %v174
      %192 = vmatprep.subr.bf16.mxu0 0
      %193 = vmatpush1.bf16.xpose.msra.mxu0 %v183
      %194 = vmatprep.subr.bf16.mxu0 0
      %195 = vmatpush1.bf16.xpose.msra.mxu0 %v182
      %196 = vmatprep.subr.bf16.mxu0 0
      %197 = vmatpush1.bf16.xpose.msra.mxu0 %v181
      %198 = vmatprep.subr.bf16.mxu0 0
      %199 = vmatpush1.bf16.xpose.msra.mxu0 %v180
      %200 = vmatprep.subr.bf16.mxu0 0
      %201 = vmatpush1.bf16.xpose.msra.mxu0 %v179
      %202 = vmatprep.subr.bf16.mxu0 0
      %203 = vmatpush1.bf16.xpose.msra.mxu0 %v178
      %204 = vmatprep.subr.bf16.mxu0 0
      %205 = vmatpush1.bf16.xpose.msra.mxu0 %v177
      %206 = vmatprep.subr.bf16.mxu0 0
      %207 = vmatpush1.bf16.xpose.msra.mxu0 %v176
      %208 = vmatprep.subr.bf16.mxu0 0
      %209 = vmatpush2.bf16.xpose.msra.mxu0 0
      %210 = vmatprep.subr.bf16.mxu0 0
      %211 = vmatpush2.bf16.xpose.msra.mxu0 0
      %212 = vmatprep.subr.bf16.mxu0 0
      %213 = vmatpush2.bf16.xpose.msra.mxu0 0
      %214 = vmatprep.subr.bf16.mxu0 0
      %215 = vmatpush2.bf16.xpose.msra.mxu0 0
      %216 = vmatprep.subr.bf16.mxu0 0
      %217 = vmatpush2.bf16.xpose.msra.mxu0 0
      %218 = vmatprep.subr.bf16.mxu0 0
      %219 = vmatpush2.bf16.xpose.msra.mxu0 0
      %220 = vmatprep.subr.bf16.mxu0 0
      %221 = vmatpush2.bf16.xpose.msra.mxu0 0
      %222 = vmatprep.subr.bf16.mxu0 0
      %223 = vmatpush2.bf16.xpose.msra.mxu0 0
      %224 = vmatprep.mubr.bf16.mxu0 0
      %225 = vmatmul.mubr.bf16.gmra.mxu0 %v120
      %v226 = vpop.f32.mrf.mxu0
      %v227 = vadd.f32 0.0, %v226
      %v228 = vpop.f32.mrf.mxu0
      %v229 = vpop.f32.mrf.mxu0
      %v230 = vadd.f32 0.0, %v229
      %v231 = vpop.f32.mrf.mxu0
      %232 = vmatprep.mubr.bf16.mxu0 0
      %233 = vmatmul.mubr.bf16.gmra.mxu0 %v121
      %v234 = vpop.f32.mrf.mxu0
      %v235 = vadd.f32 0.0, %v234
      %v236 = vpop.f32.mrf.mxu0
      %v237 = vpop.f32.mrf.mxu0
      %v238 = vadd.f32 0.0, %v237
      %v239 = vpop.f32.mrf.mxu0
      %240 = vmatprep.mubr.bf16.mxu0 0
      %241 = vmatmul.mubr.bf16.gmra.mxu0 %v122
      %v242 = vpop.f32.mrf.mxu0
      %v243 = vadd.f32 0.0, %v242
      %v244 = vpop.f32.mrf.mxu0
      %v245 = vpop.f32.mrf.mxu0
      %v246 = vadd.f32 0.0, %v245
      %v247 = vpop.f32.mrf.mxu0
      %248 = vmatprep.mubr.bf16.mxu0 0
      %249 = vmatmul.mubr.bf16.gmra.mxu0 %v123
      %v250 = vpop.f32.mrf.mxu0
      %v251 = vadd.f32 0.0, %v250
      %v252 = vpop.f32.mrf.mxu0
      %v253 = vpop.f32.mrf.mxu0
      %v254 = vadd.f32 0.0, %v253
      %v255 = vpop.f32.mrf.mxu0
      %256 = vmatprep.mubr.bf16.mxu0 0
      %257 = vmatmul.mubr.bf16.gmra.mxu0 %v124
      %v258 = vpop.f32.mrf.mxu0
      %v259 = vadd.f32 0.0, %v258
      %v260 = vpop.f32.mrf.mxu0
      %v261 = vpop.f32.mrf.mxu0
      %v262 = vadd.f32 0.0, %v261
      %v263 = vpop.f32.mrf.mxu0
      %264 = vmatprep.mubr.bf16.mxu0 0
      %265 = vmatmul.mubr.bf16.gmra.mxu0 %v125
      %v266 = vpop.f32.mrf.mxu0
      %v267 = vadd.f32 0.0, %v266
      %v268 = vpop.f32.mrf.mxu0
      %v269 = vpop.f32.mrf.mxu0
      %v270 = vadd.f32 0.0, %v269
      %v271 = vpop.f32.mrf.mxu0
      %272 = vmatprep.mubr.bf16.mxu0 0
      %273 = vmatmul.mubr.bf16.gmra.mxu0 %v126
      %v274 = vpop.f32.mrf.mxu0
      %v275 = vadd.f32 0.0, %v274
      %v276 = vpop.f32.mrf.mxu0
      %v277 = vpop.f32.mrf.mxu0
      %v278 = vadd.f32 0.0, %v277
      %v279 = vpop.f32.mrf.mxu0
      %280 = vmatprep.mubr.bf16.mxu0 0
      %281 = vmatmul.mubr.bf16.gmra.mxu0 %v127
      %v282 = vpop.f32.mrf.mxu0
      %v283 = vadd.f32 0.0, %v282
      %v284 = vpop.f32.mrf.mxu0
      %v285 = vpop.f32.mrf.mxu0
      %v286 = vadd.f32 0.0, %v285
      %v287 = vpop.f32.mrf.mxu0
      %288 = vdwg.mxu0
      %v289 = vmul.f32 %v227, 0.17677669
      %v290 = vmul.f32 %v230, 0.17677669
      %v291 = vmul.f32 %v235, 0.17677669
      %v292 = vmul.f32 %v238, 0.17677669
      %v293 = vmul.f32 %v243, 0.17677669
      %v294 = vmul.f32 %v246, 0.17677669
      %v295 = vmul.f32 %v251, 0.17677669
      %v296 = vmul.f32 %v254, 0.17677669
      %v297 = vmul.f32 %v259, 0.17677669
      %v298 = vmul.f32 %v262, 0.17677669
      %v299 = vmul.f32 %v267, 0.17677669
      %v300 = vmul.f32 %v270, 0.17677669
      %v301 = vmul.f32 %v275, 0.17677669
      %v302 = vmul.f32 %v278, 0.17677669
      %v303 = vmul.f32 %v283, 0.17677669
      %v304 = vmul.f32 %v286, 0.17677669
      %v305 = vlaneseq
      %v306 = vand.u32 %v305, 127
      %vm307 = vcmp.lt.s32.totalorder %v306, 16
      %v308 = vsel %vm307, %v289, -1e+30
      %v309 = vsel %vm307, %v290, -1e+30
      %v310 = vsel %vm307, %v291, -1e+30
      %v311 = vsel %vm307, %v292, -1e+30
      %v312 = vsel %vm307, %v293, -1e+30
      %v313 = vsel %vm307, %v294, -1e+30
      %v314 = vsel %vm307, %v295, -1e+30
      %v315 = vsel %vm307, %v296, -1e+30
      %v316 = vsel %vm307, %v297, -1e+30
      %v317 = vsel %vm307, %v298, -1e+30
      %v318 = vsel %vm307, %v299, -1e+30
      %v319 = vsel %vm307, %v300, -1e+30
      %v320 = vsel %vm307, %v301, -1e+30
      %v321 = vsel %vm307, %v302, -1e+30
      %v322 = vsel %vm307, %v303, -1e+30
      %v323 = vsel %vm307, %v304, -1e+30
      %324 = vmax.xlane.f32.xlu0 %v308
      %v325 = vpop.xlane.xlu0 %324
      %326 = vmax.xlane.f32.xlu0 %v309
      %v327 = vpop.xlane.xlu0 %326
      %328 = vmax.xlane.f32.xlu0 %v310
      %v329 = vpop.xlane.xlu0 %328
      %330 = vmax.xlane.f32.xlu0 %v311
      %v331 = vpop.xlane.xlu0 %330
      %332 = vmax.xlane.f32.xlu0 %v312
      %v333 = vpop.xlane.xlu0 %332
      %334 = vmax.xlane.f32.xlu0 %v313
      %v335 = vpop.xlane.xlu0 %334
      %336 = vmax.xlane.f32.xlu0 %v314
      %v337 = vpop.xlane.xlu0 %336
      %338 = vmax.xlane.f32.xlu0 %v315
      %v339 = vpop.xlane.xlu0 %338
      %340 = vmax.xlane.f32.xlu0 %v316
      %v341 = vpop.xlane.xlu0 %340
      %342 = vmax.xlane.f32.xlu0 %v317
      %v343 = vpop.xlane.xlu0 %342
      %344 = vmax.xlane.f32.xlu0 %v318
      %v345 = vpop.xlane.xlu0 %344
      %346 = vmax.xlane.f32.xlu0 %v319
      %v347 = vpop.xlane.xlu0 %346
      %348 = vmax.xlane.f32.xlu0 %v320
      %v349 = vpop.xlane.xlu0 %348
      %350 = vmax.xlane.f32.xlu0 %v321
      %v351 = vpop.xlane.xlu0 %350
      %352 = vmax.xlane.f32.xlu0 %v322
      %v353 = vpop.xlane.xlu0 %352
      %354 = vmax.xlane.f32.xlu0 %v323
      %v355 = vpop.xlane.xlu0 %354
      %v356 = vsub.f32 %v308, %v325
      %v357 = vsub.f32 %v309, %v327
      %v358 = vsub.f32 %v310, %v329
      %v359 = vsub.f32 %v311, %v331
      %v360 = vsub.f32 %v312, %v333
      %v361 = vsub.f32 %v313, %v335
      %v362 = vsub.f32 %v314, %v337
      %v363 = vsub.f32 %v315, %v339
      %v364 = vsub.f32 %v316, %v341
      %v365 = vsub.f32 %v317, %v343
      %v366 = vsub.f32 %v318, %v345
      %v367 = vsub.f32 %v319, %v347
      %v368 = vsub.f32 %v320, %v349
      %v369 = vsub.f32 %v321, %v351
      %v370 = vsub.f32 %v322, %v353
      %v371 = vsub.f32 %v323, %v355
      %v372 = vmul.f32 %v356, 1.442695
      %v373 = vpow.pop %v372
      %v374 = vmul.f32 %v357, 1.442695
      %v375 = vpow.pop %v374
      %v376 = vmul.f32 %v358, 1.442695
      %v377 = vpow.pop %v376
      %v378 = vmul.f32 %v359, 1.442695
      %v379 = vpow.pop %v378
      %v380 = vmul.f32 %v360, 1.442695
      %v381 = vpow.pop %v380
      %v382 = vmul.f32 %v361, 1.442695
      %v383 = vpow.pop %v382
      %v384 = vmul.f32 %v362, 1.442695
      %v385 = vpow.pop %v384
      %v386 = vmul.f32 %v363, 1.442695
      %v387 = vpow.pop %v386
      %v388 = vmul.f32 %v364, 1.442695
      %v389 = vpow.pop %v388
      %v390 = vmul.f32 %v365, 1.442695
      %v391 = vpow.pop %v390
      %v392 = vmul.f32 %v366, 1.442695
      %v393 = vpow.pop %v392
      %v394 = vmul.f32 %v367, 1.442695
      %v395 = vpow.pop %v394
      %v396 = vmul.f32 %v368, 1.442695
      %v397 = vpow.pop %v396
      %v398 = vmul.f32 %v369, 1.442695
      %v399 = vpow.pop %v398
      %v400 = vmul.f32 %v370, 1.442695
      %v401 = vpow.pop %v400
      %v402 = vmul.f32 %v371, 1.442695
      %v403 = vpow.pop %v402
      %404 = vadd.xlane.f32.xlu0 %v373
      %v405 = vpop.xlane.xlu0 %404
      %406 = vadd.xlane.f32.xlu0 %v375
      %v407 = vpop.xlane.xlu0 %406
      %408 = vadd.xlane.f32.xlu0 %v377
      %v409 = vpop.xlane.xlu0 %408
      %410 = vadd.xlane.f32.xlu0 %v379
      %v411 = vpop.xlane.xlu0 %410
      %412 = vadd.xlane.f32.xlu0 %v381
      %v413 = vpop.xlane.xlu0 %412
      %414 = vadd.xlane.f32.xlu0 %v383
      %v415 = vpop.xlane.xlu0 %414
      %416 = vadd.xlane.f32.xlu0 %v385
      %v417 = vpop.xlane.xlu0 %416
      %418 = vadd.xlane.f32.xlu0 %v387
      %v419 = vpop.xlane.xlu0 %418
      %420 = vadd.xlane.f32.xlu0 %v389
      %v421 = vpop.xlane.xlu0 %420
      %422 = vadd.xlane.f32.xlu0 %v391
      %v423 = vpop.xlane.xlu0 %422
      %424 = vadd.xlane.f32.xlu0 %v393
      %v425 = vpop.xlane.xlu0 %424
      %426 = vadd.xlane.f32.xlu0 %v395
      %v427 = vpop.xlane.xlu0 %426
      %428 = vadd.xlane.f32.xlu0 %v397
      %v429 = vpop.xlane.xlu0 %428
      %430 = vadd.xlane.f32.xlu0 %v399
      %v431 = vpop.xlane.xlu0 %430
      %432 = vadd.xlane.f32.xlu0 %v401
      %v433 = vpop.xlane.xlu0 %432
      %434 = vadd.xlane.f32.xlu0 %v403
      %v435 = vpop.xlane.xlu0 %434
      %v436 = vrcp.pop %v405
      %v437 = vrcp.pop %v407
      %v438 = vrcp.pop %v409
      %v439 = vrcp.pop %v411
      %v440 = vrcp.pop %v413
      %v441 = vrcp.pop %v415
      %v442 = vrcp.pop %v417
      %v443 = vrcp.pop %v419
      %v444 = vrcp.pop %v421
      %v445 = vrcp.pop %v423
      %v446 = vrcp.pop %v425
      %v447 = vrcp.pop %v427
      %v448 = vrcp.pop %v429
      %v449 = vrcp.pop %v431
      %v450 = vrcp.pop %v433
      %v451 = vrcp.pop %v435
      %v452 = vmul.f32 %v373, %v436
      %v453 = vmul.f32 %v375, %v437
      %v454 = vmul.f32 %v377, %v438
      %v455 = vmul.f32 %v379, %v439
      %v456 = vmul.f32 %v381, %v440
      %v457 = vmul.f32 %v383, %v441
      %v458 = vmul.f32 %v385, %v442
      %v459 = vmul.f32 %v387, %v443
      %v460 = vmul.f32 %v389, %v444
      %v461 = vmul.f32 %v391, %v445
      %v462 = vmul.f32 %v393, %v446
      %v463 = vmul.f32 %v395, %v447
      %v464 = vmul.f32 %v397, %v448
      %v465 = vmul.f32 %v399, %v449
      %v466 = vmul.f32 %v401, %v450
      %v467 = vmul.f32 %v403, %v451
      %v468 = vpack.c.bf16 %v453, %v452
      %v469 = vpack.c.bf16 %v455, %v454
      %v470 = vpack.c.bf16 %v457, %v456
      %v471 = vpack.c.bf16 %v459, %v458
      %v472 = vpack.c.bf16 %v461, %v460
      %v473 = vpack.c.bf16 %v463, %v462
      %v474 = vpack.c.bf16 %v465, %v464
      %v475 = vpack.c.bf16 %v467, %v466
      %476 = vmatprep.subr.bf16.mxu0 0
      %477 = vmatpush1.bf16.msra.mxu0 %v183
      %478 = vmatprep.subr.bf16.mxu0 0
      %479 = vmatpush1.bf16.msra.mxu0 %v182
      %480 = vmatprep.subr.bf16.mxu0 0
      %481 = vmatpush1.bf16.msra.mxu0 %v181
      %482 = vmatprep.subr.bf16.mxu0 0
      %483 = vmatpush1.bf16.msra.mxu0 %v180
      %484 = vmatprep.subr.bf16.mxu0 0
      %485 = vmatpush1.bf16.msra.mxu0 %v179
      %486 = vmatprep.subr.bf16.mxu0 0
      %487 = vmatpush1.bf16.msra.mxu0 %v178
      %488 = vmatprep.subr.bf16.mxu0 0
      %489 = vmatpush1.bf16.msra.mxu0 %v177
      %490 = vmatprep.subr.bf16.mxu0 0
      %491 = vmatpush1.bf16.msra.mxu0 %v176
      %492 = vmatprep.subr.bf16.mxu0 0
      %493 = vmatpush2.bf16.msra.mxu0 0
      %494 = vmatprep.subr.bf16.mxu0 0
      %495 = vmatpush2.bf16.msra.mxu0 0
      %496 = vmatprep.subr.bf16.mxu0 0
      %497 = vmatpush2.bf16.msra.mxu0 0
      %498 = vmatprep.subr.bf16.mxu0 0
      %499 = vmatpush2.bf16.msra.mxu0 0
      %500 = vmatprep.subr.bf16.mxu0 0
      %501 = vmatpush2.bf16.msra.mxu0 0
      %502 = vmatprep.subr.bf16.mxu0 0
      %503 = vmatpush2.bf16.msra.mxu0 0
      %504 = vmatprep.subr.bf16.mxu0 0
      %505 = vmatpush2.bf16.msra.mxu0 0
      %506 = vmatprep.subr.bf16.mxu0 0
      %507 = vmatpush2.bf16.msra.mxu0 0
      %508 = vmatprep.mubr.bf16.mxu0 0
      %509 = vmatmul.mubr.bf16.gmra.mxu0 %v468
      %v510 = vpop.f32.mrf.mxu0
      %v511 = vadd.f32 0.0, %v510
      %v512 = vpop.f32.mrf.mxu0
      %v513 = vpop.f32.mrf.mxu0
      %v514 = vadd.f32 0.0, %v513
      %v515 = vpop.f32.mrf.mxu0
      %516 = vmatprep.mubr.bf16.mxu0 0
      %517 = vmatmul.mubr.bf16.gmra.mxu0 %v469
      %v518 = vpop.f32.mrf.mxu0
      %v519 = vadd.f32 0.0, %v518
      %v520 = vpop.f32.mrf.mxu0
      %v521 = vpop.f32.mrf.mxu0
      %v522 = vadd.f32 0.0, %v521
      %v523 = vpop.f32.mrf.mxu0
      %524 = vmatprep.mubr.bf16.mxu0 0
      %525 = vmatmul.mubr.bf16.gmra.mxu0 %v470
      %v526 = vpop.f32.mrf.mxu0
      %v527 = vadd.f32 0.0, %v526
      %v528 = vpop.f32.mrf.mxu0
      %v529 = vpop.f32.mrf.mxu0
      %v530 = vadd.f32 0.0, %v529
      %v531 = vpop.f32.mrf.mxu0
      %532 = vmatprep.mubr.bf16.mxu0 0
      %533 = vmatmul.mubr.bf16.gmra.mxu0 %v471
      %v534 = vpop.f32.mrf.mxu0
      %v535 = vadd.f32 0.0, %v534
      %v536 = vpop.f32.mrf.mxu0
      %v537 = vpop.f32.mrf.mxu0
      %v538 = vadd.f32 0.0, %v537
      %v539 = vpop.f32.mrf.mxu0
      %540 = vmatprep.mubr.bf16.mxu0 0
      %541 = vmatmul.mubr.bf16.gmra.mxu0 %v472
      %v542 = vpop.f32.mrf.mxu0
      %v543 = vadd.f32 0.0, %v542
      %v544 = vpop.f32.mrf.mxu0
      %v545 = vpop.f32.mrf.mxu0
      %v546 = vadd.f32 0.0, %v545
      %v547 = vpop.f32.mrf.mxu0
      %548 = vmatprep.mubr.bf16.mxu0 0
      %549 = vmatmul.mubr.bf16.gmra.mxu0 %v473
      %v550 = vpop.f32.mrf.mxu0
      %v551 = vadd.f32 0.0, %v550
      %v552 = vpop.f32.mrf.mxu0
      %v553 = vpop.f32.mrf.mxu0
      %v554 = vadd.f32 0.0, %v553
      %v555 = vpop.f32.mrf.mxu0
      %556 = vmatprep.mubr.bf16.mxu0 0
      %557 = vmatmul.mubr.bf16.gmra.mxu0 %v474
      %v558 = vpop.f32.mrf.mxu0
      %v559 = vadd.f32 0.0, %v558
      %v560 = vpop.f32.mrf.mxu0
      %v561 = vpop.f32.mrf.mxu0
      %v562 = vadd.f32 0.0, %v561
      %v563 = vpop.f32.mrf.mxu0
      %564 = vmatprep.mubr.bf16.mxu0 0
      %565 = vmatmul.mubr.bf16.gmra.mxu0 %v475
      %v566 = vpop.f32.mrf.mxu0
      %v567 = vadd.f32 0.0, %v566
      %v568 = vpop.f32.mrf.mxu0
      %v569 = vpop.f32.mrf.mxu0
      %v570 = vadd.f32 0.0, %v569
      %v571 = vpop.f32.mrf.mxu0
      %572 = vdwg.mxu0
      %v573 = vld [vmem:[#allocation7] sm:$0xf]
      %v574 = vld [vmem:[#allocation7 + $0x4] sm:$0xf]
      %v575 = vld [vmem:[#allocation7 + $0x8] sm:$0xf]
      %v576 = vld [vmem:[#allocation7 + $0xc] sm:$0xf]
      %v577 = vld [vmem:[#allocation7 + $0x10] sm:$0xf]
      %v578 = vld [vmem:[#allocation7 + $0x14] sm:$0xf]
      %v579 = vld [vmem:[#allocation7 + $0x18] sm:$0xf]
      %v580 = vld [vmem:[#allocation7 + $0x1c] sm:$0xf]
      %v581 = vld [vmem:[#allocation7 + $0x20] sm:$0xf]
      %v582 = vld [vmem:[#allocation7 + $0x24] sm:$0xf]
      %v583 = vld [vmem:[#allocation7 + $0x28] sm:$0xf]
      %v584 = vld [vmem:[#allocation7 + $0x2c] sm:$0xf]
      %v585 = vld [vmem:[#allocation7 + $0x30] sm:$0xf]
      %v586 = vld [vmem:[#allocation7 + $0x34] sm:$0xf]
      %v587 = vld [vmem:[#allocation7 + $0x38] sm:$0xf]
      %v588 = vld [vmem:[#allocation7 + $0x3c] sm:$0xf]
      %v589 = vpack.c.bf16 %v514, %v511
      %v590 = vpack.c.bf16 %v522, %v519
      %v591 = vpack.c.bf16 %v530, %v527
      %v592 = vpack.c.bf16 %v538, %v535
      %v593 = vpack.c.bf16 %v546, %v543
      %v594 = vpack.c.bf16 %v554, %v551
      %v595 = vpack.c.bf16 %v562, %v559
      %v596 = vpack.c.bf16 %v570, %v567
      %v597 = vld [vmem:[#allocation8] sm:$0xf]
      %v598 = vld [vmem:[#allocation8 + $0x4] sm:$0xf]
      %v599 = vld [vmem:[#allocation8 + $0x8] sm:$0xf]
      %v600 = vld [vmem:[#allocation8 + $0xc] sm:$0xf]
      %v601 = vld [vmem:[#allocation8 + $0x10] sm:$0xf]
      %v602 = vld [vmem:[#allocation8 + $0x14] sm:$0xf]
      %v603 = vld [vmem:[#allocation8 + $0x18] sm:$0xf]
      %v604 = vld [vmem:[#allocation8 + $0x1c] sm:$0xf]
      %v605 = vld [vmem:[#allocation8 + $0x20] sm:$0xf]
      %v606 = vld [vmem:[#allocation8 + $0x24] sm:$0xf]
      %v607 = vld [vmem:[#allocation8 + $0x28] sm:$0xf]
      %v608 = vld [vmem:[#allocation8 + $0x2c] sm:$0xf]
      %v609 = vld [vmem:[#allocation8 + $0x30] sm:$0xf]
      %v610 = vld [vmem:[#allocation8 + $0x34] sm:$0xf]
      %v611 = vld [vmem:[#allocation8 + $0x38] sm:$0xf]
      %v612 = vld [vmem:[#allocation8 + $0x3c] sm:$0xf]
      %v629 = vunpack.c.l.b16 %v597
      %v630 = vunpack.c.l.b16 %v598
      %v631 = vunpack.c.l.b16 %v599
      %v632 = vunpack.c.l.b16 %v600
      %v633 = vunpack.c.l.b16 %v601
      %v634 = vunpack.c.l.b16 %v602
      %v635 = vunpack.c.l.b16 %v603
      %v636 = vunpack.c.l.b16 %v604
      %v637 = vunpack.c.l.b16 %v605
      %v638 = vunpack.c.l.b16 %v606
      %v639 = vunpack.c.l.b16 %v607
      %v640 = vunpack.c.l.b16 %v608
      %v641 = vunpack.c.l.b16 %v609
      %v642 = vunpack.c.l.b16 %v610
      %v643 = vunpack.c.l.b16 %v611
      %v644 = vunpack.c.l.b16 %v612
      %v645 = vpack.c.b16 %v630, %v629
      %v646 = vpack.c.b16 %v632, %v631
      %v647 = vpack.c.b16 %v634, %v633
      %v648 = vpack.c.b16 %v636, %v635
      %v649 = vpack.c.b16 %v638, %v637
      %v650 = vpack.c.b16 %v640, %v639
      %v651 = vpack.c.b16 %v642, %v641
      %v652 = vpack.c.b16 %v644, %v643
      %661 = vmatprep.subr.bf16.mxu0 0
      %662 = vmatpush1.bf16.msra.mxu0 %v652
      %663 = vmatprep.subr.bf16.mxu0 0
      %664 = vmatpush1.bf16.msra.mxu0 %v651
      %665 = vmatprep.subr.bf16.mxu0 0
      %666 = vmatpush1.bf16.msra.mxu0 %v650
      %667 = vmatprep.subr.bf16.mxu0 0
      %668 = vmatpush1.bf16.msra.mxu0 %v649
      %669 = vmatprep.subr.bf16.mxu0 0
      %670 = vmatpush1.bf16.msra.mxu0 %v648
      %671 = vmatprep.subr.bf16.mxu0 0
      %672 = vmatpush1.bf16.msra.mxu0 %v647
      %673 = vmatprep.subr.bf16.mxu0 0
      %674 = vmatpush1.bf16.msra.mxu0 %v646
      %675 = vmatprep.subr.bf16.mxu0 0
      %676 = vmatpush1.bf16.msra.mxu0 %v645
      %677 = vmatprep.subr.bf16.mxu0 0
      %678 = vmatpush2.bf16.msra.mxu0 0
      %679 = vmatprep.subr.bf16.mxu0 0
      %680 = vmatpush2.bf16.msra.mxu0 0
      %681 = vmatprep.subr.bf16.mxu0 0
      %682 = vmatpush2.bf16.msra.mxu0 0
      %683 = vmatprep.subr.bf16.mxu0 0
      %684 = vmatpush2.bf16.msra.mxu0 0
      %685 = vmatprep.subr.bf16.mxu0 0
      %686 = vmatpush2.bf16.msra.mxu0 0
      %687 = vmatprep.subr.bf16.mxu0 0
      %688 = vmatpush2.bf16.msra.mxu0 0
      %689 = vmatprep.subr.bf16.mxu0 0
      %690 = vmatpush2.bf16.msra.mxu0 0
      %691 = vmatprep.subr.bf16.mxu0 0
      %692 = vmatpush2.bf16.msra.mxu0 0
      %693 = vmatprep.mubr.bf16.mxu0 0
      %694 = vmatmul.mubr.bf16.gmra.mxu0 %v589
      %v695 = vpop.f32.mrf.mxu0
      %v696 = vadd.f32 0.0, %v695
      %v697 = vpop.f32.mrf.mxu0
      %v698 = vpop.f32.mrf.mxu0
      %v699 = vadd.f32 0.0, %v698
      %v700 = vpop.f32.mrf.mxu0
      %701 = vmatprep.mubr.bf16.mxu0 0
      %702 = vmatmul.mubr.bf16.gmra.mxu0 %v590
      %v703 = vpop.f32.mrf.mxu0
      %v704 = vadd.f32 0.0, %v703
      %v705 = vpop.f32.mrf.mxu0
      %v706 = vpop.f32.mrf.mxu0
      %v707 = vadd.f32 0.0, %v706
      %v708 = vpop.f32.mrf.mxu0
      %709 = vmatprep.mubr.bf16.mxu0 0
      %710 = vmatmul.mubr.bf16.gmra.mxu0 %v591
      %v711 = vpop.f32.mrf.mxu0
      %v712 = vadd.f32 0.0, %v711
      %v713 = vpop.f32.mrf.mxu0
      %v714 = vpop.f32.mrf.mxu0
      %v715 = vadd.f32 0.0, %v714
      %v716 = vpop.f32.mrf.mxu0
      %717 = vmatprep.mubr.bf16.mxu0 0
      %718 = vmatmul.mubr.bf16.gmra.mxu0 %v592
      %v719 = vpop.f32.mrf.mxu0
      %v720 = vadd.f32 0.0, %v719
      %v721 = vpop.f32.mrf.mxu0
      %v722 = vpop.f32.mrf.mxu0
      %v723 = vadd.f32 0.0, %v722
      %v724 = vpop.f32.mrf.mxu0
      %725 = vmatprep.mubr.bf16.mxu0 0
      %726 = vmatmul.mubr.bf16.gmra.mxu0 %v593
      %v727 = vpop.f32.mrf.mxu0
      %v728 = vadd.f32 0.0, %v727
      %v729 = vpop.f32.mrf.mxu0
      %v730 = vpop.f32.mrf.mxu0
      %v731 = vadd.f32 0.0, %v730
      %v732 = vpop.f32.mrf.mxu0
      %733 = vmatprep.mubr.bf16.mxu0 0
      %734 = vmatmul.mubr.bf16.gmra.mxu0 %v594
      %v735 = vpop.f32.mrf.mxu0
      %v736 = vadd.f32 0.0, %v735
      %v737 = vpop.f32.mrf.mxu0
      %v738 = vpop.f32.mrf.mxu0
      %v739 = vadd.f32 0.0, %v738
      %v740 = vpop.f32.mrf.mxu0
      %741 = vmatprep.mubr.bf16.mxu0 0
      %742 = vmatmul.mubr.bf16.gmra.mxu0 %v595
      %v743 = vpop.f32.mrf.mxu0
      %v744 = vadd.f32 0.0, %v743
      %v745 = vpop.f32.mrf.mxu0
      %v746 = vpop.f32.mrf.mxu0
      %v747 = vadd.f32 0.0, %v746
      %v748 = vpop.f32.mrf.mxu0
      %749 = vmatprep.mubr.bf16.mxu0 0
      %750 = vmatmul.mubr.bf16.gmra.mxu0 %v596
      %v751 = vpop.f32.mrf.mxu0
      %v752 = vadd.f32 0.0, %v751
      %v753 = vpop.f32.mrf.mxu0
      %v754 = vpop.f32.mrf.mxu0
      %v755 = vadd.f32 0.0, %v754
      %v756 = vpop.f32.mrf.mxu0
      %757 = vdwg.mxu0
      %v774 = vunpack.c.l.b16 %v573
      %v775 = vunpack.c.l.b16 %v574
      %v776 = vunpack.c.l.b16 %v575
      %v777 = vunpack.c.l.b16 %v576
      %v778 = vunpack.c.l.b16 %v577
      %v779 = vunpack.c.l.b16 %v578
      %v780 = vunpack.c.l.b16 %v579
      %v781 = vunpack.c.l.b16 %v580
      %v782 = vunpack.c.l.b16 %v581
      %v783 = vunpack.c.l.b16 %v582
      %v784 = vunpack.c.l.b16 %v583
      %v785 = vunpack.c.l.b16 %v584
      %v786 = vunpack.c.l.b16 %v585
      %v787 = vunpack.c.l.b16 %v586
      %v788 = vunpack.c.l.b16 %v587
      %v789 = vunpack.c.l.b16 %v588
      %v790 = vpack.c.b16 %v775, %v774
      %v791 = vpack.c.b16 %v777, %v776
      %v792 = vpack.c.b16 %v779, %v778
      %v793 = vpack.c.b16 %v781, %v780
      %v794 = vpack.c.b16 %v783, %v782
      %v795 = vpack.c.b16 %v785, %v784
      %v796 = vpack.c.b16 %v787, %v786
      %v797 = vpack.c.b16 %v789, %v788
      %806 = vmatprep.subr.bf16.mxu0 0
      %807 = vmatpush1.bf16.msra.mxu0 %v797
      %808 = vmatprep.subr.bf16.mxu0 0
      %809 = vmatpush1.bf16.msra.mxu0 %v796
      %810 = vmatprep.subr.bf16.mxu0 0
      %811 = vmatpush1.bf16.msra.mxu0 %v795
      %812 = vmatprep.subr.bf16.mxu0 0
      %813 = vmatpush1.bf16.msra.mxu0 %v794
      %814 = vmatprep.subr.bf16.mxu0 0
      %815 = vmatpush1.bf16.msra.mxu0 %v793
      %816 = vmatprep.subr.bf16.mxu0 0
      %817 = vmatpush1.bf16.msra.mxu0 %v792
      %818 = vmatprep.subr.bf16.mxu0 0
      %819 = vmatpush1.bf16.msra.mxu0 %v791
      %820 = vmatprep.subr.bf16.mxu0 0
      %821 = vmatpush1.bf16.msra.mxu0 %v790
      %822 = vmatprep.subr.bf16.mxu0 0
      %823 = vmatpush2.bf16.msra.mxu0 0
      %824 = vmatprep.subr.bf16.mxu0 0
      %825 = vmatpush2.bf16.msra.mxu0 0
      %826 = vmatprep.subr.bf16.mxu0 0
      %827 = vmatpush2.bf16.msra.mxu0 0
      %828 = vmatprep.subr.bf16.mxu0 0
      %829 = vmatpush2.bf16.msra.mxu0 0
      %830 = vmatprep.subr.bf16.mxu0 0
      %831 = vmatpush2.bf16.msra.mxu0 0
      %832 = vmatprep.subr.bf16.mxu0 0
      %833 = vmatpush2.bf16.msra.mxu0 0
      %834 = vmatprep.subr.bf16.mxu0 0
      %835 = vmatpush2.bf16.msra.mxu0 0
      %836 = vmatprep.subr.bf16.mxu0 0
      %837 = vmatpush2.bf16.msra.mxu0 0
      %838 = vmatprep.mubr.bf16.mxu0 0
      %839 = vmatmul.mubr.bf16.gmra.mxu0 %v120
      %v840 = vpop.f32.mrf.mxu0
      %v841 = vadd.f32 %v696, %v840
      %v842 = vpop.f32.mrf.mxu0
      %v843 = vpop.f32.mrf.mxu0
      %v844 = vadd.f32 %v699, %v843
      %v845 = vpop.f32.mrf.mxu0
      %846 = vmatprep.mubr.bf16.mxu0 0
      %847 = vmatmul.mubr.bf16.gmra.mxu0 %v121
      %v848 = vpop.f32.mrf.mxu0
      %v849 = vadd.f32 %v704, %v848
      %v850 = vpop.f32.mrf.mxu0
      %v851 = vpop.f32.mrf.mxu0
      %v852 = vadd.f32 %v707, %v851
      %v853 = vpop.f32.mrf.mxu0
      %854 = vmatprep.mubr.bf16.mxu0 0
      %855 = vmatmul.mubr.bf16.gmra.mxu0 %v122
      %v856 = vpop.f32.mrf.mxu0
      %v857 = vadd.f32 %v712, %v856
      %v858 = vpop.f32.mrf.mxu0
      %v859 = vpop.f32.mrf.mxu0
      %v860 = vadd.f32 %v715, %v859
      %v861 = vpop.f32.mrf.mxu0
      %862 = vmatprep.mubr.bf16.mxu0 0
      %863 = vmatmul.mubr.bf16.gmra.mxu0 %v123
      %v864 = vpop.f32.mrf.mxu0
      %v865 = vadd.f32 %v720, %v864
      %v866 = vpop.f32.mrf.mxu0
      %v867 = vpop.f32.mrf.mxu0
      %v868 = vadd.f32 %v723, %v867
      %v869 = vpop.f32.mrf.mxu0
      %870 = vmatprep.mubr.bf16.mxu0 0
      %871 = vmatmul.mubr.bf16.gmra.mxu0 %v124
      %v872 = vpop.f32.mrf.mxu0
      %v873 = vadd.f32 %v728, %v872
      %v874 = vpop.f32.mrf.mxu0
      %v875 = vpop.f32.mrf.mxu0
      %v876 = vadd.f32 %v731, %v875
      %v877 = vpop.f32.mrf.mxu0
      %878 = vmatprep.mubr.bf16.mxu0 0
      %879 = vmatmul.mubr.bf16.gmra.mxu0 %v125
      %v880 = vpop.f32.mrf.mxu0
      %v881 = vadd.f32 %v736, %v880
      %v882 = vpop.f32.mrf.mxu0
      %v883 = vpop.f32.mrf.mxu0
      %v884 = vadd.f32 %v739, %v883
      %v885 = vpop.f32.mrf.mxu0
      %886 = vmatprep.mubr.bf16.mxu0 0
      %887 = vmatmul.mubr.bf16.gmra.mxu0 %v126
      %v888 = vpop.f32.mrf.mxu0
      %v889 = vadd.f32 %v744, %v888
      %v890 = vpop.f32.mrf.mxu0
      %v891 = vpop.f32.mrf.mxu0
      %v892 = vadd.f32 %v747, %v891
      %v893 = vpop.f32.mrf.mxu0
      %894 = vmatprep.mubr.bf16.mxu0 0
      %895 = vmatmul.mubr.bf16.gmra.mxu0 %v127
      %v896 = vpop.f32.mrf.mxu0
      %v897 = vadd.f32 %v752, %v896
      %v898 = vpop.f32.mrf.mxu0
      %v899 = vpop.f32.mrf.mxu0
      %v900 = vadd.f32 %v755, %v899
      %v901 = vpop.f32.mrf.mxu0
      %902 = vdwg.mxu0
      %v903 = vld [vmem:[%s4] sm:$0x1]
      %v905 = vlaneseq
      %v906 = vshrl.u32 %v905, 7
      %v907 = vsub.s32 0, %v906
      %v908 = vrot.slane %v903, %v907
      %v910 = vadd.f32 %v841, %v908
      %v911 = vadd.f32 %v844, %v908
      %v912 = vadd.f32 %v849, %v908
      %v913 = vadd.f32 %v852, %v908
      %v914 = vadd.f32 %v857, %v908
      %v915 = vadd.f32 %v860, %v908
      %v916 = vadd.f32 %v865, %v908
      %v917 = vadd.f32 %v868, %v908
      %v918 = vadd.f32 %v873, %v908
      %v919 = vadd.f32 %v876, %v908
      %v920 = vadd.f32 %v881, %v908
      %v921 = vadd.f32 %v884, %v908
      %v922 = vadd.f32 %v889, %v908
      %v923 = vadd.f32 %v892, %v908
      %v924 = vadd.f32 %v897, %v908
      %v925 = vadd.f32 %v900, %v908
      %v926 = vxor.u32 %v910, 2147483648
      %v927 = vxor.u32 %v911, 2147483648
      %v928 = vxor.u32 %v912, 2147483648
      %v929 = vxor.u32 %v913, 2147483648
      %v930 = vxor.u32 %v914, 2147483648
      %v931 = vxor.u32 %v915, 2147483648
      %v932 = vxor.u32 %v916, 2147483648
      %v933 = vxor.u32 %v917, 2147483648
      %v934 = vxor.u32 %v918, 2147483648
      %v935 = vxor.u32 %v919, 2147483648
      %v936 = vxor.u32 %v920, 2147483648
      %v937 = vxor.u32 %v921, 2147483648
      %v938 = vxor.u32 %v922, 2147483648
      %v939 = vxor.u32 %v923, 2147483648
      %v940 = vxor.u32 %v924, 2147483648
      %v941 = vxor.u32 %v925, 2147483648
      %v942 = vmul.f32 %v926, 1.442695
      %v943 = vpow.pop %v942
      %v944 = vmul.f32 %v927, 1.442695
      %v945 = vpow.pop %v944
      %v946 = vmul.f32 %v928, 1.442695
      %v947 = vpow.pop %v946
      %v948 = vmul.f32 %v929, 1.442695
      %v949 = vpow.pop %v948
      %v950 = vmul.f32 %v930, 1.442695
      %v951 = vpow.pop %v950
      %v952 = vmul.f32 %v931, 1.442695
      %v953 = vpow.pop %v952
      %v954 = vmul.f32 %v932, 1.442695
      %v955 = vpow.pop %v954
      %v956 = vmul.f32 %v933, 1.442695
      %v957 = vpow.pop %v956
      %v958 = vmul.f32 %v934, 1.442695
      %v959 = vpow.pop %v958
      %v960 = vmul.f32 %v935, 1.442695
      %v961 = vpow.pop %v960
      %v962 = vmul.f32 %v936, 1.442695
      %v963 = vpow.pop %v962
      %v964 = vmul.f32 %v937, 1.442695
      %v965 = vpow.pop %v964
      %v966 = vmul.f32 %v938, 1.442695
      %v967 = vpow.pop %v966
      %v968 = vmul.f32 %v939, 1.442695
      %v969 = vpow.pop %v968
      %v970 = vmul.f32 %v940, 1.442695
      %v971 = vpow.pop %v970
      %v972 = vmul.f32 %v941, 1.442695
      %v973 = vpow.pop %v972
      %v974 = vadd.f32 %v943, 1.0
      %v975 = vadd.f32 %v945, 1.0
      %v976 = vadd.f32 %v947, 1.0
      %v977 = vadd.f32 %v949, 1.0
      %v978 = vadd.f32 %v951, 1.0
      %v979 = vadd.f32 %v953, 1.0
      %v980 = vadd.f32 %v955, 1.0
      %v981 = vadd.f32 %v957, 1.0
      %v982 = vadd.f32 %v959, 1.0
      %v983 = vadd.f32 %v961, 1.0
      %v984 = vadd.f32 %v963, 1.0
      %v985 = vadd.f32 %v965, 1.0
      %v986 = vadd.f32 %v967, 1.0
      %v987 = vadd.f32 %v969, 1.0
      %v988 = vadd.f32 %v971, 1.0
      %v989 = vadd.f32 %v973, 1.0
      %v990 = vrcp.pop %v974
      %v991 = vmul.f32 1.0, %v990
      %v992 = vrcp.pop %v975
      %v993 = vmul.f32 1.0, %v992
      %v994 = vrcp.pop %v976
      %v995 = vmul.f32 1.0, %v994
      %v996 = vrcp.pop %v977
      %v997 = vmul.f32 1.0, %v996
      %v998 = vrcp.pop %v978
      %v999 = vmul.f32 1.0, %v998
      %v1000 = vrcp.pop %v979
      %v1001 = vmul.f32 1.0, %v1000
      %v1002 = vrcp.pop %v980
      %v1003 = vmul.f32 1.0, %v1002
      %v1004 = vrcp.pop %v981
      %v1005 = vmul.f32 1.0, %v1004
      %v1006 = vrcp.pop %v982
      %v1007 = vmul.f32 1.0, %v1006
      %v1008 = vrcp.pop %v983
      %v1009 = vmul.f32 1.0, %v1008
      %v1010 = vrcp.pop %v984
      %v1011 = vmul.f32 1.0, %v1010
      %v1012 = vrcp.pop %v985
      %v1013 = vmul.f32 1.0, %v1012
      %v1014 = vrcp.pop %v986
      %v1015 = vmul.f32 1.0, %v1014
      %v1016 = vrcp.pop %v987
      %v1017 = vmul.f32 1.0, %v1016
      %v1018 = vrcp.pop %v988
      %v1019 = vmul.f32 1.0, %v1018
      %v1020 = vrcp.pop %v989
      %v1021 = vmul.f32 1.0, %v1020
      %v1022 = vmul.f32 %v991, %v104
      %v1023 = vmul.f32 %v993, %v105
      %v1024 = vmul.f32 %v995, %v106
      %v1025 = vmul.f32 %v997, %v107
      %v1026 = vmul.f32 %v999, %v108
      %v1027 = vmul.f32 %v1001, %v109
      %v1028 = vmul.f32 %v1003, %v110
      %v1029 = vmul.f32 %v1005, %v111
      %v1030 = vmul.f32 %v1007, %v112
      %v1031 = vmul.f32 %v1009, %v113
      %v1032 = vmul.f32 %v1011, %v114
      %v1033 = vmul.f32 %v1013, %v115
      %v1034 = vmul.f32 %v1015, %v116
      %v1035 = vmul.f32 %v1017, %v117
      %v1036 = vmul.f32 %v1019, %v118
      %v1037 = vmul.f32 %v1021, %v119
      %v1038 = vsub.f32 1.0, %v991
      %v1039 = vsub.f32 1.0, %v993
      %v1040 = vsub.f32 1.0, %v995
      %v1041 = vsub.f32 1.0, %v997
      %v1042 = vsub.f32 1.0, %v999
      %v1043 = vsub.f32 1.0, %v1001
      %v1044 = vsub.f32 1.0, %v1003
      %v1045 = vsub.f32 1.0, %v1005
      %v1046 = vsub.f32 1.0, %v1007
      %v1047 = vsub.f32 1.0, %v1009
      %v1048 = vsub.f32 1.0, %v1011
      %v1049 = vsub.f32 1.0, %v1013
      %v1050 = vsub.f32 1.0, %v1015
      %v1051 = vsub.f32 1.0, %v1017
      %v1052 = vsub.f32 1.0, %v1019
      %v1053 = vsub.f32 1.0, %v1021
      %v1054 = vmul.f32 %v1038, %v511
      %v1055 = vmul.f32 %v1039, %v514
      %v1056 = vmul.f32 %v1040, %v519
      %v1057 = vmul.f32 %v1041, %v522
      %v1058 = vmul.f32 %v1042, %v527
      %v1059 = vmul.f32 %v1043, %v530
      %v1060 = vmul.f32 %v1044, %v535
      %v1061 = vmul.f32 %v1045, %v538
      %v1062 = vmul.f32 %v1046, %v543
      %v1063 = vmul.f32 %v1047, %v546
      %v1064 = vmul.f32 %v1048, %v551
      %v1065 = vmul.f32 %v1049, %v554
      %v1066 = vmul.f32 %v1050, %v559
      %v1067 = vmul.f32 %v1051, %v562
      %v1068 = vmul.f32 %v1052, %v567
      %v1069 = vmul.f32 %v1053, %v570
      %v1070 = vadd.f32 %v1022, %v1054
      %v1071 = vadd.f32 %v1023, %v1055
      %v1072 = vadd.f32 %v1024, %v1056
      %v1073 = vadd.f32 %v1025, %v1057
      %v1074 = vadd.f32 %v1026, %v1058
      %v1075 = vadd.f32 %v1027, %v1059
      %v1076 = vadd.f32 %v1028, %v1060
      %v1077 = vadd.f32 %v1029, %v1061
      %v1078 = vadd.f32 %v1030, %v1062
      %v1079 = vadd.f32 %v1031, %v1063
      %v1080 = vadd.f32 %v1032, %v1064
      %v1081 = vadd.f32 %v1033, %v1065
      %v1082 = vadd.f32 %v1034, %v1066
      %v1083 = vadd.f32 %v1035, %v1067
      %v1084 = vadd.f32 %v1036, %v1068
      %v1085 = vadd.f32 %v1037, %v1069
      %1086 = vst [vmem:[#allocation14] sm:$0xff] %v308
      %1087 = vst [vmem:[#allocation14 + $0x8] sm:$0xff] %v309
      %1088 = vst [vmem:[#allocation14 + $0x10] sm:$0xff] %v310
      %1089 = vst [vmem:[#allocation14 + $0x18] sm:$0xff] %v311
      %1090 = vst [vmem:[#allocation14 + $0x20] sm:$0xff] %v312
      %1091 = vst [vmem:[#allocation14 + $0x28] sm:$0xff] %v313
      %1092 = vst [vmem:[#allocation14 + $0x30] sm:$0xff] %v314
      %1093 = vst [vmem:[#allocation14 + $0x38] sm:$0xff] %v315
      %1094 = vst [vmem:[#allocation14 + $0x40] sm:$0xff] %v316
      %1095 = vst [vmem:[#allocation14 + $0x48] sm:$0xff] %v317
      %1096 = vst [vmem:[#allocation14 + $0x50] sm:$0xff] %v318
      %1097 = vst [vmem:[#allocation14 + $0x58] sm:$0xff] %v319
      %1098 = vst [vmem:[#allocation14 + $0x60] sm:$0xff] %v320
      %1099 = vst [vmem:[#allocation14 + $0x68] sm:$0xff] %v321
      %1100 = vst [vmem:[#allocation14 + $0x70] sm:$0xff] %v322
      %1101 = vst [vmem:[#allocation14 + $0x78] sm:$0xff] %v323
      %v1102 = vpack.c.bf16 %v1071, %v1070
      %v1103 = vpack.c.bf16 %v1073, %v1072
      %v1104 = vpack.c.bf16 %v1075, %v1074
      %v1105 = vpack.c.bf16 %v1077, %v1076
      %v1106 = vpack.c.bf16 %v1079, %v1078
      %v1107 = vpack.c.bf16 %v1081, %v1080
      %v1108 = vpack.c.bf16 %v1083, %v1082
      %v1109 = vpack.c.bf16 %v1085, %v1084
      %v1118 = vunpack.c.l.b16 %v1102
      %v1119 = vunpack.c.h.b16 %v1102
      %v1120 = vunpack.c.l.b16 %v1103
      %v1121 = vunpack.c.h.b16 %v1103
      %v1122 = vunpack.c.l.b16 %v1104
      %v1123 = vunpack.c.h.b16 %v1104
      %v1124 = vunpack.c.l.b16 %v1105
      %v1125 = vunpack.c.h.b16 %v1105
      %v1126 = vunpack.c.l.b16 %v1106
      %v1127 = vunpack.c.h.b16 %v1106
      %v1128 = vunpack.c.l.b16 %v1107
      %v1129 = vunpack.c.h.b16 %v1107
      %v1130 = vunpack.c.l.b16 %v1108
      %v1131 = vunpack.c.h.b16 %v1108
      %v1132 = vunpack.c.l.b16 %v1109
      %v1133 = vunpack.c.h.b16 %v1109
      %v1134 = vpack.c.b16 %v1118, %v1118
      %v1135 = vpack.c.b16 %v1119, %v1119
      %v1136 = vpack.c.b16 %v1120, %v1120
      %v1137 = vpack.c.b16 %v1121, %v1121
      %v1138 = vpack.c.b16 %v1122, %v1122
      %v1139 = vpack.c.b16 %v1123, %v1123
      %v1140 = vpack.c.b16 %v1124, %v1124
      %v1141 = vpack.c.b16 %v1125, %v1125
      %v1142 = vpack.c.b16 %v1126, %v1126
      %v1143 = vpack.c.b16 %v1127, %v1127
      %v1144 = vpack.c.b16 %v1128, %v1128
      %v1145 = vpack.c.b16 %v1129, %v1129
      %v1146 = vpack.c.b16 %v1130, %v1130
      %v1147 = vpack.c.b16 %v1131, %v1131
      %v1148 = vpack.c.b16 %v1132, %v1132
      %v1149 = vpack.c.b16 %v1133, %v1133
      %1166 = vst [vmem:[#allocation12] sm:$0xf] %v1134
      %1167 = vst [vmem:[#allocation12 + $0x4] sm:$0xf] %v1135
      %1168 = vst [vmem:[#allocation12 + $0x8] sm:$0xf] %v1136
      %1169 = vst [vmem:[#allocation12 + $0xc] sm:$0xf] %v1137
      %1170 = vst [vmem:[#allocation12 + $0x10] sm:$0xf] %v1138
      %1171 = vst [vmem:[#allocation12 + $0x14] sm:$0xf] %v1139
      %1172 = vst [vmem:[#allocation12 + $0x18] sm:$0xf] %v1140
      %1173 = vst [vmem:[#allocation12 + $0x1c] sm:$0xf] %v1141
      %1174 = vst [vmem:[#allocation12 + $0x20] sm:$0xf] %v1142
      %1175 = vst [vmem:[#allocation12 + $0x24] sm:$0xf] %v1143
      %1176 = vst [vmem:[#allocation12 + $0x28] sm:$0xf] %v1144
      %1177 = vst [vmem:[#allocation12 + $0x2c] sm:$0xf] %v1145
      %1178 = vst [vmem:[#allocation12 + $0x30] sm:$0xf] %v1146
      %1179 = vst [vmem:[#allocation12 + $0x34] sm:$0xf] %v1147
      %1180 = vst [vmem:[#allocation12 + $0x38] sm:$0xf] %v1148
      %1181 = vst [vmem:[#allocation12 + $0x3c] sm:$0xf] %v1149
    $region53: #{tpu_custom_call.1} parent=1 // pred_fallthru
      _
    %v1182 = vld [vmem:[#allocation12] sm:$0xf]
    %v1183 = vld [vmem:[#allocation12 + $0x4] sm:$0xf]
    %v1184 = vld [vmem:[#allocation12 + $0x8] sm:$0xf]
    %v1185 = vld [vmem:[#allocation12 + $0xc] sm:$0xf]
    %v1186 = vld [vmem:[#allocation12 + $0x10] sm:$0xf]
    %v1187 = vld [vmem:[#allocation12 + $0x14] sm:$0xf]
    %v1188 = vld [vmem:[#allocation12 + $0x18] sm:$0xf]
    %v1189 = vld [vmem:[#allocation12 + $0x1c] sm:$0xf]
    %v1190 = vld [vmem:[#allocation12 + $0x20] sm:$0xf]
    %v1191 = vld [vmem:[#allocation12 + $0x24] sm:$0xf]
    %v1192 = vld [vmem:[#allocation12 + $0x28] sm:$0xf]
    %v1193 = vld [vmem:[#allocation12 + $0x2c] sm:$0xf]
    %v1194 = vld [vmem:[#allocation12 + $0x30] sm:$0xf]
    %v1195 = vld [vmem:[#allocation12 + $0x34] sm:$0xf]
    %v1196 = vld [vmem:[#allocation12 + $0x38] sm:$0xf]
    %v1197 = vld [vmem:[#allocation12 + $0x3c] sm:$0xf]
    %v1198 = vld [vmem:[#allocation10] sm:$0xf]
    %v1199 = vld [vmem:[#allocation10 + $0x4] sm:$0xf]
    %v1200 = vld [vmem:[#allocation10 + $0x8] sm:$0xf]
    %v1201 = vld [vmem:[#allocation10 + $0xc] sm:$0xf]
    %v1202 = vld [vmem:[#allocation10 + $0x10] sm:$0xf]
    %v1203 = vld [vmem:[#allocation10 + $0x14] sm:$0xf]
    %v1204 = vld [vmem:[#allocation10 + $0x18] sm:$0xf]
    %v1205 = vld [vmem:[#allocation10 + $0x1c] sm:$0xf]
    %v1206 = vld [vmem:[#allocation10 + $0x20] sm:$0xf]
    %v1207 = vld [vmem:[#allocation10 + $0x24] sm:$0xf]
    %v1208 = vld [vmem:[#allocation10 + $0x28] sm:$0xf]
    %v1209 = vld [vmem:[#allocation10 + $0x2c] sm:$0xf]
    %v1210 = vld [vmem:[#allocation10 + $0x30] sm:$0xf]
    %v1211 = vld [vmem:[#allocation10 + $0x34] sm:$0xf]
    %v1212 = vld [vmem:[#allocation10 + $0x38] sm:$0xf]
    %v1213 = vld [vmem:[#allocation10 + $0x3c] sm:$0xf]
    %v1214 = vld [vmem:[%s6] sm:$0x1]
    %v1216 = vlaneseq
    %v1217 = vshrl.u32 %v1216, 7
    %v1218 = vsub.s32 0, %v1217
    %v1219 = vrot.slane %v1214, %v1218
    %v1237 = vunpack.c.l.b16 %v1182
    %v1238 = vunpack.c.l.b16 %v1183
    %v1239 = vunpack.c.l.b16 %v1184
    %v1240 = vunpack.c.l.b16 %v1185
    %v1241 = vunpack.c.l.b16 %v1186
    %v1242 = vunpack.c.l.b16 %v1187
    %v1243 = vunpack.c.l.b16 %v1188
    %v1244 = vunpack.c.l.b16 %v1189
    %v1245 = vunpack.c.l.b16 %v1190
    %v1246 = vunpack.c.l.b16 %v1191
    %v1247 = vunpack.c.l.b16 %v1192
    %v1248 = vunpack.c.l.b16 %v1193
    %v1249 = vunpack.c.l.b16 %v1194
    %v1250 = vunpack.c.l.b16 %v1195
    %v1251 = vunpack.c.l.b16 %v1196
    %v1252 = vunpack.c.l.b16 %v1197
    %v1253 = vpack.c.b16 %v1238, %v1237
    %v1254 = vpack.c.b16 %v1240, %v1239
    %v1255 = vpack.c.b16 %v1242, %v1241
    %v1256 = vpack.c.b16 %v1244, %v1243
    %v1257 = vpack.c.b16 %v1246, %v1245
    %v1258 = vpack.c.b16 %v1248, %v1247
    %v1259 = vpack.c.b16 %v1250, %v1249
    %v1260 = vpack.c.b16 %v1252, %v1251
    %v1285 = vunpack.c.l.b16 %v1198
    %v1286 = vunpack.c.l.b16 %v1199
    %v1287 = vunpack.c.l.b16 %v1200
    %v1288 = vunpack.c.l.b16 %v1201
    %v1289 = vunpack.c.l.b16 %v1202
    %v1290 = vunpack.c.l.b16 %v1203
    %v1291 = vunpack.c.l.b16 %v1204
    %v1292 = vunpack.c.l.b16 %v1205
    %v1293 = vunpack.c.l.b16 %v1206
    %v1294 = vunpack.c.l.b16 %v1207
    %v1295 = vunpack.c.l.b16 %v1208
    %v1296 = vunpack.c.l.b16 %v1209
    %v1297 = vunpack.c.l.b16 %v1210
    %v1298 = vunpack.c.l.b16 %v1211
    %v1299 = vunpack.c.l.b16 %v1212
    %v1300 = vunpack.c.l.b16 %v1213
    %v1301 = vpack.c.b16 %v1286, %v1285
    %v1302 = vpack.c.b16 %v1288, %v1287
    %v1303 = vpack.c.b16 %v1290, %v1289
    %v1304 = vpack.c.b16 %v1292, %v1291
    %v1305 = vpack.c.b16 %v1294, %v1293
    %v1306 = vpack.c.b16 %v1296, %v1295
    %v1307 = vpack.c.b16 %v1298, %v1297
    %v1308 = vpack.c.b16 %v1300, %v1299
    %1317 = vmatprep.subr.bf16.mxu0 0
    %1318 = vmatpush1.bf16.msra.mxu0 %v1308
    %1319 = vmatprep.subr.bf16.mxu0 0
    %1320 = vmatpush1.bf16.msra.mxu0 %v1307
    %1321 = vmatprep.subr.bf16.mxu0 0
    %1322 = vmatpush1.bf16.msra.mxu0 %v1306
    %1323 = vmatprep.subr.bf16.mxu0 0
    %1324 = vmatpush1.bf16.msra.mxu0 %v1305
    %1325 = vmatprep.subr.bf16.mxu0 0
    %1326 = vmatpush1.bf16.msra.mxu0 %v1304
    %1327 = vmatprep.subr.bf16.mxu0 0
    %1328 = vmatpush1.bf16.msra.mxu0 %v1303
    %1329 = vmatprep.subr.bf16.mxu0 0
    %1330 = vmatpush1.bf16.msra.mxu0 %v1302
    %1331 = vmatprep.subr.bf16.mxu0 0
    %1332 = vmatpush1.bf16.msra.mxu0 %v1301
    %1333 = vmatprep.subr.bf16.mxu0 0
    %1334 = vmatpush2.bf16.msra.mxu0 0
    %1335 = vmatprep.subr.bf16.mxu0 0
    %1336 = vmatpush2.bf16.msra.mxu0 0
    %1337 = vmatprep.subr.bf16.mxu0 0
    %1338 = vmatpush2.bf16.msra.mxu0 0
    %1339 = vmatprep.subr.bf16.mxu0 0
    %1340 = vmatpush2.bf16.msra.mxu0 0
    %1341 = vmatprep.subr.bf16.mxu0 0
    %1342 = vmatpush2.bf16.msra.mxu0 0
    %1343 = vmatprep.subr.bf16.mxu0 0
    %1344 = vmatpush2.bf16.msra.mxu0 0
    %1345 = vmatprep.subr.bf16.mxu0 0
    %1346 = vmatpush2.bf16.msra.mxu0 0
    %1347 = vmatprep.subr.bf16.mxu0 0
    %1348 = vmatpush2.bf16.msra.mxu0 0
    %1349 = vmatprep.mubr.bf16.mxu0 0
    %1350 = vmatmul.mubr.bf16.gmra.mxu0 %v1253
    %v1351 = vpop.f32.mrf.mxu0
    %v1352 = vadd.f32 %v1219, %v1351
    %v1353 = vpop.f32.mrf.mxu0
    %v1354 = vpop.f32.mrf.mxu0
    %v1355 = vadd.f32 %v1219, %v1354
    %v1356 = vpop.f32.mrf.mxu0
    %1357 = vmatprep.mubr.bf16.mxu0 0
    %1358 = vmatmul.mubr.bf16.gmra.mxu0 %v1254
    %v1359 = vpop.f32.mrf.mxu0
    %v1360 = vadd.f32 %v1219, %v1359
    %v1361 = vpop.f32.mrf.mxu0
    %v1362 = vpop.f32.mrf.mxu0
    %v1363 = vadd.f32 %v1219, %v1362
    %v1364 = vpop.f32.mrf.mxu0
    %1365 = vmatprep.mubr.bf16.mxu0 0
    %1366 = vmatmul.mubr.bf16.gmra.mxu0 %v1255
    %v1367 = vpop.f32.mrf.mxu0
    %v1368 = vadd.f32 %v1219, %v1367
    %v1369 = vpop.f32.mrf.mxu0
    %v1370 = vpop.f32.mrf.mxu0
    %v1371 = vadd.f32 %v1219, %v1370
    %v1372 = vpop.f32.mrf.mxu0
    %1373 = vmatprep.mubr.bf16.mxu0 0
    %1374 = vmatmul.mubr.bf16.gmra.mxu0 %v1256
    %v1375 = vpop.f32.mrf.mxu0
    %v1376 = vadd.f32 %v1219, %v1375
    %v1377 = vpop.f32.mrf.mxu0
    %v1378 = vpop.f32.mrf.mxu0
    %v1379 = vadd.f32 %v1219, %v1378
    %v1380 = vpop.f32.mrf.mxu0
    %1381 = vmatprep.mubr.bf16.mxu0 0
    %1382 = vmatmul.mubr.bf16.gmra.mxu0 %v1257
    %v1383 = vpop.f32.mrf.mxu0
    %v1384 = vadd.f32 %v1219, %v1383
    %v1385 = vpop.f32.mrf.mxu0
    %v1386 = vpop.f32.mrf.mxu0
    %v1387 = vadd.f32 %v1219, %v1386
    %v1388 = vpop.f32.mrf.mxu0
    %1389 = vmatprep.mubr.bf16.mxu0 0
    %1390 = vmatmul.mubr.bf16.gmra.mxu0 %v1258
    %v1391 = vpop.f32.mrf.mxu0
    %v1392 = vadd.f32 %v1219, %v1391
    %v1393 = vpop.f32.mrf.mxu0
    %v1394 = vpop.f32.mrf.mxu0
    %v1395 = vadd.f32 %v1219, %v1394
    %v1396 = vpop.f32.mrf.mxu0
    %1397 = vmatprep.mubr.bf16.mxu0 0
    %1398 = vmatmul.mubr.bf16.gmra.mxu0 %v1259
    %v1399 = vpop.f32.mrf.mxu0
    %v1400 = vadd.f32 %v1219, %v1399
    %v1401 = vpop.f32.mrf.mxu0
    %v1402 = vpop.f32.mrf.mxu0
    %v1403 = vadd.f32 %v1219, %v1402
    %v1404 = vpop.f32.mrf.mxu0
    %1405 = vmatprep.mubr.bf16.mxu0 0
    %1406 = vmatmul.mubr.bf16.gmra.mxu0 %v1260
    %v1407 = vpop.f32.mrf.mxu0
    %v1408 = vadd.f32 %v1219, %v1407
    %v1409 = vpop.f32.mrf.mxu0
    %v1410 = vpop.f32.mrf.mxu0
    %v1411 = vadd.f32 %v1219, %v1410
    %v1412 = vpop.f32.mrf.mxu0
    %1413 = vdwg.mxu0
    %1414 = vst [vmem:[#allocation11] sm:$0xff] %v1352
    %1415 = vst [vmem:[#allocation11 + $0x8] sm:$0xff] %v1355
    %1416 = vst [vmem:[#allocation11 + $0x10] sm:$0xff] %v1360
    %1417 = vst [vmem:[#allocation11 + $0x18] sm:$0xff] %v1363
    %1418 = vst [vmem:[#allocation11 + $0x20] sm:$0xff] %v1368
    %1419 = vst [vmem:[#allocation11 + $0x28] sm:$0xff] %v1371
    %1420 = vst [vmem:[#allocation11 + $0x30] sm:$0xff] %v1376
    %1421 = vst [vmem:[#allocation11 + $0x38] sm:$0xff] %v1379
    %1422 = vst [vmem:[#allocation11 + $0x40] sm:$0xff] %v1384
    %1423 = vst [vmem:[#allocation11 + $0x48] sm:$0xff] %v1387
    %1424 = vst [vmem:[#allocation11 + $0x50] sm:$0xff] %v1392
    %1425 = vst [vmem:[#allocation11 + $0x58] sm:$0xff] %v1395
    %1426 = vst [vmem:[#allocation11 + $0x60] sm:$0xff] %v1400
    %1427 = vst [vmem:[#allocation11 + $0x68] sm:$0xff] %v1403
    %1428 = vst [vmem:[#allocation11 + $0x70] sm:$0xff] %v1408
    %1429 = vst [vmem:[#allocation11 + $0x78] sm:$0xff] %v1411
    // Predicated region
    $region54: #{tpu_custom_call.1} parent=1 // pred_check
      _
    $region55: #{tpu_custom_call.1} parent=1 // pred_check_branch
      %1431 = sbr.rel (0) target = $region57
    $region56: #{tpu_custom_call.1} parent=1 // pred_region
      %s1433 = ssub.s32 2048, 2048
      %1434 = vsyncadd [#allocation4], %s1433
      %s1435 = sshll.u32 [#allocation11], 4
      %s1436 = int_to_ptr.vmem [resolvable:$true] %s1435
      %1441 = dma.vmem_to_hbm [thread:$0]  %s1436, 2048, %s7, [#allocation4], 128, 128, 8
    $region57: #{tpu_custom_call.1} parent=1 // pred_fallthru
      _
    // Predicated region
    $region58: #{tpu_custom_call.1} parent=1 // pred_check
      _
    $region59: #{tpu_custom_call.1} parent=1 // pred_check_branch
      %1443 = sbr.rel (0) target = $region61
    $region60: #{tpu_custom_call.1} parent=1 // pred_region
      %s1445 = ssub.s32 1024, 1024
      %1446 = vsyncadd [#allocation13], %s1445
      %s1447 = sshll.u32 [#allocation12], 4
      %s1448 = int_to_ptr.vmem [resolvable:$true] %s1447
      %1453 = dma.vmem_to_hbm [thread:$0]  %s1448, 1024, %s8, [#allocation13], 64, 64, 4
    $region61: #{tpu_custom_call.1} parent=1 // pred_fallthru
      _
    // Predicated region
    $region62: #{tpu_custom_call.1} parent=1 // pred_check
      _
    $region63: #{tpu_custom_call.1} parent=1 // pred_check_branch
      %1455 = sbr.rel (0) target = $region65
    $region64: #{tpu_custom_call.1} parent=1 // pred_region
      %s1457 = ssub.s32 2048, 2048
      %1458 = vsyncadd [#allocation13], %s1457
      %s1459 = sshll.u32 [#allocation14], 4
      %s1460 = int_to_ptr.vmem [resolvable:$true] %s1459
      %1465 = dma.vmem_to_hbm [thread:$0]  %s1460, 2048, %s9, [#allocation13], 128, 128, 8
    $region65: #{tpu_custom_call.1} parent=1 // pred_fallthru
      _
    // Predicated region
    $region66: #{tpu_custom_call.1} parent=1 // pred_check
      _
    $region67: #{tpu_custom_call.1} parent=1 // pred_check_branch
      %1467 = sbr.rel (0) target = $region69
    $region68: #{tpu_custom_call.1} parent=1 // pred_region
      %1468 = dma.done [#allocation4], 2048
    $region69: #{tpu_custom_call.1} parent=1 // pred_fallthru
      _
    // Predicated region
    $region70: #{tpu_custom_call.1} parent=1 // pred_check
      _
    $region71: #{tpu_custom_call.1} parent=1 // pred_check_branch
      %1470 = sbr.rel (0) target = $region73
    $region72: #{tpu_custom_call.1} parent=1 // pred_region
      %1471 = dma.done [#allocation13], 1024
    $region73: #{tpu_custom_call.1} parent=1 // pred_fallthru
      _
    // Predicated region
    $region74: #{tpu_custom_call.1} parent=1 // pred_check
      _
    $region75: #{tpu_custom_call.1} parent=1 // pred_check_branch
      %1473 = sbr.rel (0) target = $region77
    $region76: #{tpu_custom_call.1} parent=1 // pred_region
      %1474 = dma.done [#allocation13], 2048
    $region77: #{tpu_custom_call.1} parent=1 // pred_fallthru
      _
    %1475 = vsyncpa [#allocation3], 1
    %1476 = vsyncpa [#allocation6], 1
    %1477 = vsyncpa [#allocation9], 1
    %1478 = vsyncpa [#allocation4], 1
    %1479 = vsyncpa [#allocation13], 1

</llo_original>
